<compile_context>
chip_gen: v7x
topology: tpu7x:2x2x1
jax: 0.10.0
libtpu: 0.0.40
codegen_flags: <defaults>
</compile_context>

<pallas_src>
import jax
import jax.numpy as jnp
from jax.experimental import pallas as pl
from jax.experimental.pallas import tpu as pltpu

IN_FEATURES = 71 * 74        # 5254
HIDDEN = 256
OUT_FEATURES = 3

SUBLANE = 8
K_PAD = 5376                 # round_up(5254, 128) = 42 * 128
N_PAD = 128                  # round_up(3, 128): lane-dense output block
TB_MAX = 256                 # max batch tile; VMEM stays ~11 MiB at this size


def _round_up(x, m):
    return (x + m - 1) // m * m


def dqn_kernel(x_ref, w1_ref, b1_ref, w2_ref, b2_ref, o_ref):
    """One batch tile: out = relu(x @ w1 + b1) @ w2 + b2.

    Weights are bf16 and resident in VMEM (constant index_map); both matmuls
    use the MXU with f32 accumulation.  Bias add + ReLU run on the VPU in f32.
    """
    x = x_ref[...].astype(jnp.bfloat16)           # no-op (wrapper sends bf16)
    h = jnp.dot(x, w1_ref[...], preferred_element_type=jnp.float32)
    h = jnp.maximum(h + b1_ref[...], 0.0)                      # fc1 bias+ReLU
    o = jnp.dot(h.astype(jnp.bfloat16), w2_ref[...],
                preferred_element_type=jnp.float32)
    o_ref[...] = o + b2_ref[...]                               # fc2 bias


def prepare_dqn_params(w1, b1, w2, b2):
    """One-time weight prep (transpose + zero-pad + bf16 cast).

    Call once and reuse across forwards; rebuilding per call would re-stream
    ~2.7 MiB of weights through XLA every step.
    """
    w1p = jnp.zeros((K_PAD, HIDDEN), jnp.bfloat16).at[:IN_FEATURES, :].set(
        w1.T.astype(jnp.bfloat16))
    b1p = b1.reshape(1, HIDDEN).astype(jnp.float32)
    w2p = jnp.zeros((HIDDEN, N_PAD), jnp.bfloat16).at[:, :OUT_FEATURES].set(
        w2.T.astype(jnp.bfloat16))
    b2p = jnp.zeros((1, N_PAD), jnp.float32).at[0, :OUT_FEATURES].set(
        b2.astype(jnp.float32))
    return w1p, b1p, w2p, b2p


@jax.jit
def dqn_forward(x, params):
    """x: (B, 5254) f32; params: output of prepare_dqn_params."""
    w1p, b1p, w2p, b2p = params
    B, K = x.shape
    assert K == IN_FEATURES, K

    tb = min(TB_MAX, _round_up(B, SUBLANE))   # sublane-aligned batch tile
    Bp = _round_up(B, tb)

    # Pad batch/K and cast to bf16 in ONE pass (half the bytes of an f32 pad).
    xp = jnp.pad(x.astype(jnp.bfloat16), ((0, Bp - B), (0, K_PAD - K)))

    grid = (Bp // tb,)

    out_padded = pl.pallas_call(
        dqn_kernel,
        out_shape=jax.ShapeDtypeStruct((Bp, N_PAD), jnp.float32),
        grid_spec=pltpu.PrefetchScalarGridSpec(
            num_scalar_prefetch=0,
            grid=grid,
            in_specs=[
                pl.BlockSpec((tb, K_PAD), lambda i: (i, 0)),        # x (bf16)
                pl.BlockSpec((K_PAD, HIDDEN), lambda i: (0, 0)),    # w1 resident
                pl.BlockSpec((1, HIDDEN), lambda i: (0, 0)),        # b1
                pl.BlockSpec((HIDDEN, N_PAD), lambda i: (0, 0)),    # w2 resident
                pl.BlockSpec((1, N_PAD), lambda i: (0, 0)),         # b2
            ],
            out_specs=pl.BlockSpec((tb, N_PAD), lambda i: (i, 0)),
        ),
        compiler_params=pltpu.CompilerParams(
            dimension_semantics=("parallel",)),   # megacore over batch tiles
    )(xp, w1p, b1p, w2p, b2p)

    return out_padded[:B, :OUT_FEATURES]


if __name__ == "__main__":
    key = jax.random.PRNGKey(0)
    k_x, k_w1, k_b1, k_w2, k_b2 = jax.random.split(key, 5)

    batch = 2
    # Deterministic parameter init mirroring the module's __init__:
    # weights ~ Normal(0, 0.1) (as in weight.data.normal_(0, 0.1)),
    # biases drawn small & deterministic (torch default is uniform; synthetic).
    x = jax.random.normal(k_x, (batch, IN_FEATURES), dtype=jnp.float32)
    w1 = 0.1 * jax.random.normal(k_w1, (HIDDEN, IN_FEATURES), dtype=jnp.float32)
    b1 = 0.01 * jax.random.normal(k_b1, (HIDDEN,), dtype=jnp.float32)
    w2 = 0.1 * jax.random.normal(k_w2, (OUT_FEATURES, HIDDEN), dtype=jnp.float32)
    b2 = 0.01 * jax.random.normal(k_b2, (OUT_FEATURES,), dtype=jnp.float32)

    # One-time weight prep (cached/reused across forwards).
    params = jax.block_until_ready(prepare_dqn_params(w1, b1, w2, b2))

    out = dqn_forward(x, params)
    out = jax.block_until_ready(out)
    assert out.shape == (batch, OUT_FEATURES), out.shape

    # Reference 1: same bf16-weight/activation precision path as the kernel.
    w1b = w1.astype(jnp.bfloat16).astype(jnp.float32)
    w2b = w2.astype(jnp.bfloat16).astype(jnp.float32)
    xb = x.astype(jnp.bfloat16).astype(jnp.float32)
    h_ref = jnp.maximum(xb @ w1b.T + b1, 0.0)
    ref_bf16 = h_ref.astype(jnp.bfloat16).astype(jnp.float32) @ w2b.T + b2
    assert jnp.allclose(out, ref_bf16, atol=2e-2, rtol=2e-2), \
        "mismatch vs bf16-matched reference"

    # Reference 2: full-f32 torch semantics (loose -- bf16 rounding of weights).
    ref_f32 = jnp.maximum(x @ w1.T + b1, 0.0) @ w2.T + b2
    assert jnp.allclose(out, ref_f32, atol=2.5e-1, rtol=5e-2), \
        "mismatch vs f32 reference"

    print("KERNEL_OK")
</pallas_src>

<mosaic_0001>
module attributes {stable_mosaic.version = 11 : i64} {
  func.func @dqn_kernel(%arg0: i32, %arg1: memref<8x5376xbf16, #tpu.memory_space<vmem>>, %arg2: memref<5376x256xbf16, #tpu.memory_space<vmem>>, %arg3: memref<1x256xf32, #tpu.memory_space<vmem>>, %arg4: memref<256x128xbf16, #tpu.memory_space<vmem>>, %arg5: memref<1x128xf32, #tpu.memory_space<vmem>>, %arg6: memref<8x128xf32, #tpu.memory_space<vmem>>) attributes {dimension_semantics = [#tpu.dimension_semantics<parallel>], iteration_bounds = array<i64: 1>, scalar_prefetch = 0 : i64, scratch_operands = 0 : i64, tpu.core_type = #tpu.core_type<tc>, window_params = [{transform_indices = @transform_0, window_bounds = array<i64: 8, 5376>}, {pipeline_mode = #tpu.pipeline_mode<synchronous>, transform_indices = @transform_1, window_bounds = array<i64: 5376, 256>}, {pipeline_mode = #tpu.pipeline_mode<synchronous>, transform_indices = @transform_2, window_bounds = array<i64: 1, 256>}, {pipeline_mode = #tpu.pipeline_mode<synchronous>, transform_indices = @transform_3, window_bounds = array<i64: 256, 128>}, {pipeline_mode = #tpu.pipeline_mode<synchronous>, transform_indices = @transform_4, window_bounds = array<i64: 1, 128>}, {transform_indices = @transform_5, window_bounds = array<i64: 8, 128>}]} {
    %c0 = arith.constant 0 : index
    %c0_0 = arith.constant 0 : index
    %0 = vector.load %arg1[%c0, %c0_0] : memref<8x5376xbf16, #tpu.memory_space<vmem>>, vector<8x5376xbf16>
    %c0_1 = arith.constant 0 : index
    %c0_2 = arith.constant 0 : index
    %1 = vector.load %arg2[%c0_1, %c0_2] : memref<5376x256xbf16, #tpu.memory_space<vmem>>, vector<5376x256xbf16>
    %cst = arith.constant dense<0.000000e+00> : vector<8x256xf32>
    %2 = tpu.matmul %0, %1, %cst {dimension_numbers = #tpu.dot_dimension_numbers<[1], [0], [0], [1], [0, 0, 1, 1], [], []>} : vector<8x5376xbf16>, vector<5376x256xbf16>, vector<8x256xf32> -> vector<8x256xf32>
    %c0_3 = arith.constant 0 : index
    %c0_4 = arith.constant 0 : index
    %3 = vector.load %arg3[%c0_3, %c0_4] : memref<1x256xf32, #tpu.memory_space<vmem>>, vector<1x256xf32>
    %4 = vector.broadcast %3 : vector<1x256xf32> to vector<8x256xf32>
    %5 = arith.addf %2, %4 : vector<8x256xf32>
    %cst_5 = arith.constant 0.000000e+00 : f32
    %6 = vector.broadcast %cst_5 : f32 to vector<8x256xf32>
    %7 = arith.maximumf %5, %6 : vector<8x256xf32>
    %8 = arith.truncf %7 : vector<8x256xf32> to vector<8x256xbf16>
    %c0_6 = arith.constant 0 : index
    %c0_7 = arith.constant 0 : index
    %9 = vector.load %arg4[%c0_6, %c0_7] : memref<256x128xbf16, #tpu.memory_space<vmem>>, vector<256x128xbf16>
    %cst_8 = arith.constant dense<0.000000e+00> : vector<8x128xf32>
    %10 = tpu.matmul %8, %9, %cst_8 {dimension_numbers = #tpu.dot_dimension_numbers<[1], [0], [0], [1], [0, 0, 1, 1], [], []>} : vector<8x256xbf16>, vector<256x128xbf16>, vector<8x128xf32> -> vector<8x128xf32>
    %c0_9 = arith.constant 0 : index
    %c0_10 = arith.constant 0 : index
    %11 = vector.load %arg5[%c0_9, %c0_10] : memref<1x128xf32, #tpu.memory_space<vmem>>, vector<1x128xf32>
    %12 = vector.broadcast %11 : vector<1x128xf32> to vector<8x128xf32>
    %13 = arith.addf %10, %12 : vector<8x128xf32>
    %c0_11 = arith.constant 0 : index
    %c0_12 = arith.constant 0 : index
    %14 = vector.load %arg6[%c0_11, %c0_12] : memref<8x128xf32, #tpu.memory_space<vmem>>, vector<8x128xf32>
    tpu.vector_store %arg6[%c0_11, %c0_12], %13 {strides = array<i32>} : memref<8x128xf32, #tpu.memory_space<vmem>>, vector<8x128xf32>,
    return
  }
  func.func @transform_0(%arg0: i32) -> (i32, i32) {
    %c0_i32 = arith.constant 0 : i32
    %c0_i32_0 = arith.constant 0 : i32
    return %arg0, %c0_i32 : i32, i32
  }
  func.func @transform_1(%arg0: i32) -> (i32, i32) {
    %c0_i32 = arith.constant 0 : i32
    %c0_i32_0 = arith.constant 0 : i32
    %c0_i32_1 = arith.constant 0 : i32
    return %c0_i32, %c0_i32_0 : i32, i32
  }
  func.func @transform_2(%arg0: i32) -> (i32, i32) {
    %c0_i32 = arith.constant 0 : i32
    %c0_i32_0 = arith.constant 0 : i32
    %c0_i32_1 = arith.constant 0 : i32
    return %c0_i32, %c0_i32_0 : i32, i32
  }
  func.func @transform_3(%arg0: i32) -> (i32, i32) {
    %c0_i32 = arith.constant 0 : i32
    %c0_i32_0 = arith.constant 0 : i32
    %c0_i32_1 = arith.constant 0 : i32
    return %c0_i32, %c0_i32_0 : i32, i32
  }
  func.func @transform_4(%arg0: i32) -> (i32, i32) {
    %c0_i32 = arith.constant 0 : i32
    %c0_i32_0 = arith.constant 0 : i32
    %c0_i32_1 = arith.constant 0 : i32
    return %c0_i32, %c0_i32_0 : i32, i32
  }
  func.func @transform_5(%arg0: i32) -> (i32, i32) {
    %c0_i32 = arith.constant 0 : i32
    %c0_i32_0 = arith.constant 0 : i32
    return %arg0, %c0_i32 : i32, i32
  }
}

</mosaic_0001>

<llo_original>
// kernel: dqn_forward.1
$region0: #{dqn_forward.1}
  #allocation0 [shape = 'u32[]', space=smem, size = 0x4, offset = 0x4, fixed_abs, tag = 'smem constant byte address 0x4 - core index']
  #allocation1 [shape = 'u32[144,128]{1,0:T(1,128)}', space=vmem, size = 0x12000, scoped, tag = 'internal scratch']
  %s0 = inlined_call_operand.vmem [shape: bf16[8,5376], index: 0, kind: input, shape index: {}]
  %s1 = inlined_call_operand.hbm [shape: bf16[5376,256], index: 1, kind: input, shape index: {}]
  %s2 = inlined_call_operand.hbm [shape: f32[1,256], index: 2, kind: input, shape index: {}]
  %s3 = inlined_call_operand.hbm [shape: bf16[256,128], index: 3, kind: input, shape index: {}]
  %s4 = inlined_call_operand.hbm [shape: f32[1,128], index: 4, kind: input, shape index: {}]
  %s5 = inlined_call_operand.vmem [shape: f32[8,128], index: 5, kind: output, shape index: {}]
  %s6 = sld [smem:[#allocation0]]
  $region46: #{dqn_forward.1} parent=0
    _
  %s8 = ssub.s32 1, %s6
  %s9 = scalar_select 0, %s8, %s6
  $region1: #{dqn_forward.1} parent=0
    #allocation2 [shape = 'u8[2752512]{0}', space=vmem, size = 0x2a0000, scoped, tag = 'input window, operand 1, single buffered']
    #allocation3 [shape = 's32[1]{0}', space=sflag, size = 0x4, scoped, tag = 'scoped memory for dqn_forward.1']
    #allocation4 [shape = 'u8[1024]{0}', space=vmem, size = 0x400, scoped, tag = 'input window, operand 2, single buffered']
    #allocation5 [shape = 's32[1]{0}', space=sflag, size = 0x4, scoped, tag = 'scoped memory for dqn_forward.1']
    #allocation6 [shape = 'u8[65536]{0}', space=vmem, size = 0x10000, scoped, tag = 'input window, operand 3, single buffered']
    #allocation7 [shape = 'u8[512]{0}', space=vmem, size = 0x400, scoped, tag = 'input window, operand 4, single buffered']
    #allocation8 [shape = 's32[1]{0}', space=sflag, size = 0x4, scoped, tag = 'scoped memory for dqn_forward.1']
    %10 = vsyncpa [#allocation3], 0
    %11 = vsyncpa [#allocation5], 0
    %12 = vsyncpa [#allocation8], 0
    // Predicated region
    $region2: #{dqn_forward.1} parent=1 // pred_check
      _
    $region3: #{dqn_forward.1} parent=1 // pred_check_branch
      %14 = sbr.rel (0) target = $region5
    $region4: #{dqn_forward.1} parent=1 // pred_region
      _
    $region5: #{dqn_forward.1} parent=1 // pred_fallthru
      _
    // Predicated region
    $region6: #{dqn_forward.1} parent=1 // pred_check
      _
    $region7: #{dqn_forward.1} parent=1 // pred_check_branch
      %16 = sbr.rel (0) target = $region9
    $region8: #{dqn_forward.1} parent=1 // pred_region
      %s18 = ssub.s32 86016, 86016
      %19 = vsyncadd [#allocation3], %s18
      %s20 = sshll.u32 [#allocation2], 4
      %s21 = int_to_ptr.vmem [resolvable:$true] %s20
      %26 = dma.hbm_to_vmem [thread:$0]  %s1, 86016, %s21, [#allocation3], 128, 128, 8
    $region9: #{dqn_forward.1} parent=1 // pred_fallthru
      _
    // Predicated region
    $region10: #{dqn_forward.1} parent=1 // pred_check
      _
    $region11: #{dqn_forward.1} parent=1 // pred_check_branch
      %28 = sbr.rel (0) target = $region13
    $region12: #{dqn_forward.1} parent=1 // pred_region
      %s30 = ssub.s32 32, 32
      %31 = vsyncadd [#allocation5], %s30
      %s33 = sshll.u32 [#allocation4], 4
      %s34 = int_to_ptr.vmem [resolvable:$true] %s33
      %36 = dma.hbm_to_vmem [thread:$0]  %s2, 32, %s34, [#allocation5]
    $region13: #{dqn_forward.1} parent=1 // pred_fallthru
      _
    // Predicated region
    $region14: #{dqn_forward.1} parent=1 // pred_check
      _
    $region15: #{dqn_forward.1} parent=1 // pred_check_branch
      %38 = sbr.rel (0) target = $region17
    $region16: #{dqn_forward.1} parent=1 // pred_region
      %s40 = ssub.s32 2048, 2048
      %41 = vsyncadd [#allocation5], %s40
      %s42 = sshll.u32 [#allocation6], 4
      %s43 = int_to_ptr.vmem [resolvable:$true] %s42
      %48 = dma.hbm_to_vmem [thread:$0]  %s3, 2048, %s43, [#allocation5], 64, 64, 4
    $region17: #{dqn_forward.1} parent=1 // pred_fallthru
      _
    // Predicated region
    $region18: #{dqn_forward.1} parent=1 // pred_check
      _
    $region19: #{dqn_forward.1} parent=1 // pred_check_branch
      %50 = sbr.rel (0) target = $region21
    $region20: #{dqn_forward.1} parent=1 // pred_region
      %s52 = ssub.s32 16, 16
      %53 = vsyncadd [#allocation8], %s52
      %s55 = sshll.u32 [#allocation7], 4
      %s56 = int_to_ptr.vmem [resolvable:$true] %s55
      %58 = dma.hbm_to_vmem [thread:$0]  %s4, 16, %s56, [#allocation8]
    $region21: #{dqn_forward.1} parent=1 // pred_fallthru
      _
    // Predicated region
    $region22: #{dqn_forward.1} parent=1 // pred_check
      _
    $region23: #{dqn_forward.1} parent=1 // pred_check_branch
      %60 = sbr.rel (0) target = $region25
    $region24: #{dqn_forward.1} parent=1 // pred_region
      %61 = dma.done [#allocation3], 86016
    $region25: #{dqn_forward.1} parent=1 // pred_fallthru
      _
    // Predicated region
    $region26: #{dqn_forward.1} parent=1 // pred_check
      _
    $region27: #{dqn_forward.1} parent=1 // pred_check_branch
      %63 = sbr.rel (0) target = $region29
    $region28: #{dqn_forward.1} parent=1 // pred_region
      %64 = dma.done [#allocation5], 32
    $region29: #{dqn_forward.1} parent=1 // pred_fallthru
      _
    // Predicated region
    $region30: #{dqn_forward.1} parent=1 // pred_check
      _
    $region31: #{dqn_forward.1} parent=1 // pred_check_branch
      %66 = sbr.rel (0) target = $region33
    $region32: #{dqn_forward.1} parent=1 // pred_region
      %67 = dma.done [#allocation5], 2048
    $region33: #{dqn_forward.1} parent=1 // pred_fallthru
      _
    // Predicated region
    $region34: #{dqn_forward.1} parent=1 // pred_check
      _
    $region35: #{dqn_forward.1} parent=1 // pred_check_branch
      %69 = sbr.rel (0) target = $region37
    $region36: #{dqn_forward.1} parent=1 // pred_region
      %70 = dma.done [#allocation8], 16
    $region37: #{dqn_forward.1} parent=1 // pred_fallthru
      _
    %v72 = vld [vmem:[%s0] sm:$0xff]
    %v73 = vld [vmem:[%s0 + $0x8] sm:$0xff]
    %v74 = vld [vmem:[%s0 + $0x10] sm:$0xff]
    %v75 = vld [vmem:[%s0 + $0x18] sm:$0xff]
    %v76 = vld [vmem:[%s0 + $0x20] sm:$0xff]
    %v77 = vld [vmem:[%s0 + $0x28] sm:$0xff]
    %v78 = vld [vmem:[%s0 + $0x30] sm:$0xff]
    %v79 = vld [vmem:[%s0 + $0x38] sm:$0xff]
    %v80 = vld [vmem:[%s0 + $0x40] sm:$0xff]
    %v81 = vld [vmem:[%s0 + $0x48] sm:$0xff]
    %v82 = vld [vmem:[%s0 + $0x50] sm:$0xff]
    %v83 = vld [vmem:[%s0 + $0x58] sm:$0xff]
    %v84 = vld [vmem:[%s0 + $0x60] sm:$0xff]
    %v85 = vld [vmem:[%s0 + $0x68] sm:$0xff]
    %v86 = vld [vmem:[%s0 + $0x70] sm:$0xff]
    %v87 = vld [vmem:[%s0 + $0x78] sm:$0xff]
    %v88 = vld [vmem:[%s0 + $0x80] sm:$0xff]
    %v89 = vld [vmem:[%s0 + $0x88] sm:$0xff]
    %v90 = vld [vmem:[%s0 + $0x90] sm:$0xff]
    %v91 = vld [vmem:[%s0 + $0x98] sm:$0xff]
    %v92 = vld [vmem:[%s0 + $0xa0] sm:$0xff]
    %v93 = vld [vmem:[#allocation2] sm:$0xff]
    %v94 = vld [vmem:[#allocation2 + $0x8] sm:$0xff]
    %v95 = vld [vmem:[#allocation2 + $0x10] sm:$0xff]
    %v96 = vld [vmem:[#allocation2 + $0x18] sm:$0xff]
    %v97 = vld [vmem:[#allocation2 + $0x20] sm:$0xff]
    %v98 = vld [vmem:[#allocation2 + $0x28] sm:$0xff]
    %v99 = vld [vmem:[#allocation2 + $0x30] sm:$0xff]
    %v100 = vld [vmem:[#allocation2 + $0x38] sm:$0xff]
    %v101 = vld [vmem:[#allocation2 + $0x40] sm:$0xff]
    %v102 = vld [vmem:[#allocation2 + $0x48] sm:$0xff]
    %v103 = vld [vmem:[#allocation2 + $0x50] sm:$0xff]
    %v104 = vld [vmem:[#allocation2 + $0x58] sm:$0xff]
    %v105 = vld [vmem:[#allocation2 + $0x60] sm:$0xff]
    %v106 = vld [vmem:[#allocation2 + $0x68] sm:$0xff]
    %v107 = vld [vmem:[#allocation2 + $0x70] sm:$0xff]
    %v108 = vld [vmem:[#allocation2 + $0x78] sm:$0xff]
    %v109 = vld [vmem:[#allocation2 + $0x80] sm:$0xff]
    %v110 = vld [vmem:[#allocation2 + $0x88] sm:$0xff]
    %v111 = vld [vmem:[#allocation2 + $0x90] sm:$0xff]
    %v112 = vld [vmem:[#allocation2 + $0x98] sm:$0xff]
    %v113 = vld [vmem:[#allocation2 + $0xa0] sm:$0xff]
    %v114 = vld [vmem:[#allocation2 + $0xa8] sm:$0xff]
    %v115 = vld [vmem:[#allocation2 + $0xb0] sm:$0xff]
    %v116 = vld [vmem:[#allocation2 + $0xb8] sm:$0xff]
    %v117 = vld [vmem:[#allocation2 + $0xc0] sm:$0xff]
    %v118 = vld [vmem:[#allocation2 + $0xc8] sm:$0xff]
    %v119 = vld [vmem:[#allocation2 + $0xd0] sm:$0xff]
    %v120 = vld [vmem:[#allocation2 + $0xd8] sm:$0xff]
    %v121 = vld [vmem:[#allocation2 + $0xe0] sm:$0xff]
    %v122 = vld [vmem:[#allocation2 + $0xe8] sm:$0xff]
    %v123 = vld [vmem:[#allocation2 + $0xf0] sm:$0xff]
    %v124 = vld [vmem:[#allocation2 + $0xf8] sm:$0xff]
    %v125 = vld [vmem:[#allocation2 + $0x100] sm:$0xff]
    %v126 = vld [vmem:[#allocation2 + $0x108] sm:$0xff]
    %v127 = vld [vmem:[#allocation2 + $0x110] sm:$0xff]
    %v128 = vld [vmem:[#allocation2 + $0x118] sm:$0xff]
    %v129 = vld [vmem:[#allocation2 + $0x120] sm:$0xff]
    %v130 = vld [vmem:[#allocation2 + $0x128] sm:$0xff]
    %v131 = vld [vmem:[#allocation2 + $0x130] sm:$0xff]
    %v132 = vld [vmem:[#allocation2 + $0x138] sm:$0xff]
    %v133 = vld [vmem:[#allocation2 + $0x140] sm:$0xff]
    %v134 = vld [vmem:[#allocation2 + $0x148] sm:$0xff]
    %v135 = vld [vmem:[#allocation2 + $0x150] sm:$0xff]
    %v136 = vld [vmem:[#allocation2 + $0x158] sm:$0xff]
    %v137 = vld [vmem:[#allocation2 + $0x160] sm:$0xff]
    %v138 = vld [vmem:[#allocation2 + $0x168] sm:$0xff]
    %v139 = vld [vmem:[#allocation2 + $0x170] sm:$0xff]
    %v140 = vld [vmem:[#allocation2 + $0x178] sm:$0xff]
    %v141 = vld [vmem:[#allocation2 + $0x180] sm:$0xff]
    %v142 = vld [vmem:[#allocation2 + $0x188] sm:$0xff]
    %v143 = vld [vmem:[#allocation2 + $0x190] sm:$0xff]
    %v144 = vld [vmem:[#allocation2 + $0x198] sm:$0xff]
    %v145 = vld [vmem:[#allocation2 + $0x1a0] sm:$0xff]
    %v146 = vld [vmem:[#allocation2 + $0x1a8] sm:$0xff]
    %v147 = vld [vmem:[#allocation2 + $0x1b0] sm:$0xff]
    %v148 = vld [vmem:[#allocation2 + $0x1b8] sm:$0xff]
    %v149 = vld [vmem:[#allocation2 + $0x1c0] sm:$0xff]
    %v150 = vld [vmem:[#allocation2 + $0x1c8] sm:$0xff]
    %v151 = vld [vmem:[#allocation2 + $0x1d0] sm:$0xff]
    %v152 = vld [vmem:[#allocation2 + $0x1d8] sm:$0xff]
    %v153 = vld [vmem:[#allocation2 + $0x1e0] sm:$0xff]
    %v154 = vld [vmem:[#allocation2 + $0x1e8] sm:$0xff]
    %v155 = vld [vmem:[#allocation2 + $0x1f0] sm:$0xff]
    %v156 = vld [vmem:[#allocation2 + $0x1f8] sm:$0xff]
    %v157 = vld [vmem:[#allocation2 + $0x200] sm:$0xff]
    %v158 = vld [vmem:[#allocation2 + $0x208] sm:$0xff]
    %v159 = vld [vmem:[#allocation2 + $0x210] sm:$0xff]
    %v160 = vld [vmem:[#allocation2 + $0x218] sm:$0xff]
    %v161 = vld [vmem:[#allocation2 + $0x220] sm:$0xff]
    %v162 = vld [vmem:[#allocation2 + $0x228] sm:$0xff]
    %v163 = vld [vmem:[#allocation2 + $0x230] sm:$0xff]
    %v164 = vld [vmem:[#allocation2 + $0x238] sm:$0xff]
    %v165 = vld [vmem:[#allocation2 + $0x240] sm:$0xff]
    %v166 = vld [vmem:[#allocation2 + $0x248] sm:$0xff]
    %v167 = vld [vmem:[#allocation2 + $0x250] sm:$0xff]
    %v168 = vld [vmem:[#allocation2 + $0x258] sm:$0xff]
    %v169 = vld [vmem:[#allocation2 + $0x260] sm:$0xff]
    %v170 = vld [vmem:[#allocation2 + $0x268] sm:$0xff]
    %v171 = vld [vmem:[#allocation2 + $0x270] sm:$0xff]
    %v172 = vld [vmem:[#allocation2 + $0x278] sm:$0xff]
    %v173 = vld [vmem:[#allocation2 + $0x280] sm:$0xff]
    %v174 = vld [vmem:[#allocation2 + $0x288] sm:$0xff]
    %v175 = vld [vmem:[#allocation2 + $0x290] sm:$0xff]
    %v176 = vld [vmem:[#allocation2 + $0x298] sm:$0xff]
    %v177 = vld [vmem:[#allocation2 + $0x2a0] sm:$0xff]
    %v178 = vld [vmem:[#allocation2 + $0x2a8] sm:$0xff]
    %v179 = vld [vmem:[#allocation2 + $0x2b0] sm:$0xff]
    %v180 = vld [vmem:[#allocation2 + $0x2b8] sm:$0xff]
    %v181 = vld [vmem:[#allocation2 + $0x2c0] sm:$0xff]
    %v182 = vld [vmem:[#allocation2 + $0x2c8] sm:$0xff]
    %v183 = vld [vmem:[#allocation2 + $0x2d0] sm:$0xff]
    %v184 = vld [vmem:[#allocation2 + $0x2d8] sm:$0xff]
    %v185 = vld [vmem:[#allocation2 + $0x2e0] sm:$0xff]
    %v186 = vld [vmem:[#allocation2 + $0x2e8] sm:$0xff]
    %v187 = vld [vmem:[#allocation2 + $0x2f0] sm:$0xff]
    %v188 = vld [vmem:[#allocation2 + $0x2f8] sm:$0xff]
    %v189 = vld [vmem:[#allocation2 + $0x300] sm:$0xff]
    %v190 = vld [vmem:[#allocation2 + $0x308] sm:$0xff]
    %v191 = vld [vmem:[#allocation2 + $0x310] sm:$0xff]
    %v192 = vld [vmem:[#allocation2 + $0x318] sm:$0xff]
    %v193 = vld [vmem:[#allocation2 + $0x320] sm:$0xff]
    %v194 = vld [vmem:[#allocation2 + $0x328] sm:$0xff]
    %v195 = vld [vmem:[#allocation2 + $0x330] sm:$0xff]
    %v196 = vld [vmem:[#allocation2 + $0x338] sm:$0xff]
    %v197 = vld [vmem:[#allocation2 + $0x340] sm:$0xff]
    %v198 = vld [vmem:[#allocation2 + $0x348] sm:$0xff]
    %v199 = vld [vmem:[#allocation2 + $0x350] sm:$0xff]
    %v200 = vld [vmem:[#allocation2 + $0x358] sm:$0xff]
    %v201 = vld [vmem:[#allocation2 + $0x360] sm:$0xff]
    %v202 = vld [vmem:[#allocation2 + $0x368] sm:$0xff]
    %v203 = vld [vmem:[#allocation2 + $0x370] sm:$0xff]
    %v204 = vld [vmem:[#allocation2 + $0x378] sm:$0xff]
    %v205 = vld [vmem:[#allocation2 + $0x380] sm:$0xff]
    %v206 = vld [vmem:[#allocation2 + $0x388] sm:$0xff]
    %v207 = vld [vmem:[#allocation2 + $0x390] sm:$0xff]
    %v208 = vld [vmem:[#allocation2 + $0x398] sm:$0xff]
    %v209 = vld [vmem:[#allocation2 + $0x3a0] sm:$0xff]
    %v210 = vld [vmem:[#allocation2 + $0x3a8] sm:$0xff]
    %v211 = vld [vmem:[#allocation2 + $0x3b0] sm:$0xff]
    %v212 = vld [vmem:[#allocation2 + $0x3b8] sm:$0xff]
    %v213 = vld [vmem:[#allocation2 + $0x3c0] sm:$0xff]
    %v214 = vld [vmem:[#allocation2 + $0x3c8] sm:$0xff]
    %v215 = vld [vmem:[#allocation2 + $0x3d0] sm:$0xff]
    %v216 = vld [vmem:[#allocation2 + $0x3d8] sm:$0xff]
    %v217 = vld [vmem:[#allocation2 + $0x3e0] sm:$0xff]
    %v218 = vld [vmem:[#allocation2 + $0x3e8] sm:$0xff]
    %v219 = vld [vmem:[#allocation2 + $0x3f0] sm:$0xff]
    %v220 = vld [vmem:[#allocation2 + $0x3f8] sm:$0xff]
    %v221 = vld [vmem:[#allocation2 + $0x400] sm:$0xff]
    %v222 = vld [vmem:[#allocation2 + $0x408] sm:$0xff]
    %v223 = vld [vmem:[#allocation2 + $0x410] sm:$0xff]
    %v224 = vld [vmem:[#allocation2 + $0x418] sm:$0xff]
    %v225 = vld [vmem:[#allocation2 + $0x420] sm:$0xff]
    %v226 = vld [vmem:[#allocation2 + $0x428] sm:$0xff]
    %v227 = vld [vmem:[#allocation2 + $0x430] sm:$0xff]
    %v228 = vld [vmem:[#allocation2 + $0x438] sm:$0xff]
    %v229 = vld [vmem:[#allocation2 + $0x440] sm:$0xff]
    %v230 = vld [vmem:[#allocation2 + $0x448] sm:$0xff]
    %v231 = vld [vmem:[#allocation2 + $0x450] sm:$0xff]
    %v232 = vld [vmem:[#allocation2 + $0x458] sm:$0xff]
    %v233 = vld [vmem:[#allocation2 + $0x460] sm:$0xff]
    %v234 = vld [vmem:[#allocation2 + $0x468] sm:$0xff]
    %v235 = vld [vmem:[#allocation2 + $0x470] sm:$0xff]
    %v236 = vld [vmem:[#allocation2 + $0x478] sm:$0xff]
    %v237 = vld [vmem:[#allocation2 + $0x480] sm:$0xff]
    %v238 = vld [vmem:[#allocation2 + $0x488] sm:$0xff]
    %v239 = vld [vmem:[#allocation2 + $0x490] sm:$0xff]
    %v240 = vld [vmem:[#allocation2 + $0x498] sm:$0xff]
    %v241 = vld [vmem:[#allocation2 + $0x4a0] sm:$0xff]
    %v242 = vld [vmem:[#allocation2 + $0x4a8] sm:$0xff]
    %v243 = vld [vmem:[#allocation2 + $0x4b0] sm:$0xff]
    %v244 = vld [vmem:[#allocation2 + $0x4b8] sm:$0xff]
    %v245 = vld [vmem:[#allocation2 + $0x4c0] sm:$0xff]
    %v246 = vld [vmem:[#allocation2 + $0x4c8] sm:$0xff]
    %v247 = vld [vmem:[#allocation2 + $0x4d0] sm:$0xff]
    %v248 = vld [vmem:[#allocation2 + $0x4d8] sm:$0xff]
    %v249 = vld [vmem:[#allocation2 + $0x4e0] sm:$0xff]
    %v250 = vld [vmem:[#allocation2 + $0x4e8] sm:$0xff]
    %v251 = vld [vmem:[#allocation2 + $0x4f0] sm:$0xff]
    %v252 = vld [vmem:[#allocation2 + $0x4f8] sm:$0xff]
    %v253 = vld [vmem:[#allocation2 + $0x500] sm:$0xff]
    %v254 = vld [vmem:[#allocation2 + $0x508] sm:$0xff]
    %v255 = vld [vmem:[#allocation2 + $0x510] sm:$0xff]
    %v256 = vld [vmem:[#allocation2 + $0x518] sm:$0xff]
    %v257 = vld [vmem:[#allocation2 + $0x520] sm:$0xff]
    %v258 = vld [vmem:[#allocation2 + $0x528] sm:$0xff]
    %v259 = vld [vmem:[#allocation2 + $0x530] sm:$0xff]
    %v260 = vld [vmem:[#allocation2 + $0x538] sm:$0xff]
    %v261 = vld [vmem:[#allocation2 + $0x540] sm:$0xff]
    %v262 = vld [vmem:[#allocation2 + $0x548] sm:$0xff]
    %v263 = vld [vmem:[#allocation2 + $0x550] sm:$0xff]
    %v264 = vld [vmem:[#allocation2 + $0x558] sm:$0xff]
    %v265 = vld [vmem:[#allocation2 + $0x560] sm:$0xff]
    %v266 = vld [vmem:[#allocation2 + $0x568] sm:$0xff]
    %v267 = vld [vmem:[#allocation2 + $0x570] sm:$0xff]
    %v268 = vld [vmem:[#allocation2 + $0x578] sm:$0xff]
    %v269 = vld [vmem:[#allocation2 + $0x580] sm:$0xff]
    %v270 = vld [vmem:[#allocation2 + $0x588] sm:$0xff]
    %v271 = vld [vmem:[#allocation2 + $0x590] sm:$0xff]
    %v272 = vld [vmem:[#allocation2 + $0x598] sm:$0xff]
    %v273 = vld [vmem:[#allocation2 + $0x5a0] sm:$0xff]
    %v274 = vld [vmem:[#allocation2 + $0x5a8] sm:$0xff]
    %v275 = vld [vmem:[#allocation2 + $0x5b0] sm:$0xff]
    %v276 = vld [vmem:[#allocation2 + $0x5b8] sm:$0xff]
    %v277 = vld [vmem:[#allocation2 + $0x5c0] sm:$0xff]
    %v278 = vld [vmem:[#allocation2 + $0x5c8] sm:$0xff]
    %v279 = vld [vmem:[#allocation2 + $0x5d0] sm:$0xff]
    %v280 = vld [vmem:[#allocation2 + $0x5d8] sm:$0xff]
    %v281 = vld [vmem:[#allocation2 + $0x5e0] sm:$0xff]
    %v282 = vld [vmem:[#allocation2 + $0x5e8] sm:$0xff]
    %v283 = vld [vmem:[#allocation2 + $0x5f0] sm:$0xff]
    %v284 = vld [vmem:[#allocation2 + $0x5f8] sm:$0xff]
    %v285 = vld [vmem:[#allocation2 + $0x600] sm:$0xff]
    %v286 = vld [vmem:[#allocation2 + $0x608] sm:$0xff]
    %v287 = vld [vmem:[#allocation2 + $0x610] sm:$0xff]
    %v288 = vld [vmem:[#allocation2 + $0x618] sm:$0xff]
    %v289 = vld [vmem:[#allocation2 + $0x620] sm:$0xff]
    %v290 = vld [vmem:[#allocation2 + $0x628] sm:$0xff]
    %v291 = vld [vmem:[#allocation2 + $0x630] sm:$0xff]
    %v292 = vld [vmem:[#allocation2 + $0x638] sm:$0xff]
    %v293 = vld [vmem:[#allocation2 + $0x640] sm:$0xff]
    %v294 = vld [vmem:[#allocation2 + $0x648] sm:$0xff]
    %v295 = vld [vmem:[#allocation2 + $0x650] sm:$0xff]
    %v296 = vld [vmem:[#allocation2 + $0x658] sm:$0xff]
    %v297 = vld [vmem:[#allocation2 + $0x660] sm:$0xff]
    %v298 = vld [vmem:[#allocation2 + $0x668] sm:$0xff]
    %v299 = vld [vmem:[#allocation2 + $0x670] sm:$0xff]
    %v300 = vld [vmem:[#allocation2 + $0x678] sm:$0xff]
    %v301 = vld [vmem:[#allocation2 + $0x680] sm:$0xff]
    %v302 = vld [vmem:[#allocation2 + $0x688] sm:$0xff]
    %v303 = vld [vmem:[#allocation2 + $0x690] sm:$0xff]
    %v304 = vld [vmem:[#allocation2 + $0x698] sm:$0xff]
    %v305 = vld [vmem:[#allocation2 + $0x6a0] sm:$0xff]
    %v306 = vld [vmem:[#allocation2 + $0x6a8] sm:$0xff]
    %v307 = vld [vmem:[#allocation2 + $0x6b0] sm:$0xff]
    %v308 = vld [vmem:[#allocation2 + $0x6b8] sm:$0xff]
    %v309 = vld [vmem:[#allocation2 + $0x6c0] sm:$0xff]
    %v310 = vld [vmem:[#allocation2 + $0x6c8] sm:$0xff]
    %v311 = vld [vmem:[#allocation2 + $0x6d0] sm:$0xff]
    %v312 = vld [vmem:[#allocation2 + $0x6d8] sm:$0xff]
    %v313 = vld [vmem:[#allocation2 + $0x6e0] sm:$0xff]
    %v314 = vld [vmem:[#allocation2 + $0x6e8] sm:$0xff]
    %v315 = vld [vmem:[#allocation2 + $0x6f0] sm:$0xff]
    %v316 = vld [vmem:[#allocation2 + $0x6f8] sm:$0xff]
    %v317 = vld [vmem:[#allocation2 + $0x700] sm:$0xff]
    %v318 = vld [vmem:[#allocation2 + $0x708] sm:$0xff]
    %v319 = vld [vmem:[#allocation2 + $0x710] sm:$0xff]
    %v320 = vld [vmem:[#allocation2 + $0x718] sm:$0xff]
    %v321 = vld [vmem:[#allocation2 + $0x720] sm:$0xff]
    %v322 = vld [vmem:[#allocation2 + $0x728] sm:$0xff]
    %v323 = vld [vmem:[#allocation2 + $0x730] sm:$0xff]
    %v324 = vld [vmem:[#allocation2 + $0x738] sm:$0xff]
    %v325 = vld [vmem:[#allocation2 + $0x740] sm:$0xff]
    %v326 = vld [vmem:[#allocation2 + $0x748] sm:$0xff]
    %v327 = vld [vmem:[#allocation2 + $0x750] sm:$0xff]
    %v328 = vld [vmem:[#allocation2 + $0x758] sm:$0xff]
    %v329 = vld [vmem:[#allocation2 + $0x760] sm:$0xff]
    %v330 = vld [vmem:[#allocation2 + $0x768] sm:$0xff]
    %v331 = vld [vmem:[#allocation2 + $0x770] sm:$0xff]
    %v332 = vld [vmem:[#allocation2 + $0x778] sm:$0xff]
    %v333 = vld [vmem:[#allocation2 + $0x780] sm:$0xff]
    %v334 = vld [vmem:[#allocation2 + $0x788] sm:$0xff]
    %v335 = vld [vmem:[#allocation2 + $0x790] sm:$0xff]
    %v336 = vld [vmem:[#allocation2 + $0x798] sm:$0xff]
    %v337 = vld [vmem:[#allocation2 + $0x7a0] sm:$0xff]
    %v338 = vld [vmem:[#allocation2 + $0x7a8] sm:$0xff]
    %v339 = vld [vmem:[#allocation2 + $0x7b0] sm:$0xff]
    %v340 = vld [vmem:[#allocation2 + $0x7b8] sm:$0xff]
    %v341 = vld [vmem:[#allocation2 + $0x7c0] sm:$0xff]
    %v342 = vld [vmem:[#allocation2 + $0x7c8] sm:$0xff]
    %v343 = vld [vmem:[#allocation2 + $0x7d0] sm:$0xff]
    %v344 = vld [vmem:[#allocation2 + $0x7d8] sm:$0xff]
    %v345 = vld [vmem:[#allocation2 + $0x7e0] sm:$0xff]
    %v346 = vld [vmem:[#allocation2 + $0x7e8] sm:$0xff]
    %v347 = vld [vmem:[#allocation2 + $0x7f0] sm:$0xff]
    %v348 = vld [vmem:[#allocation2 + $0x7f8] sm:$0xff]
    %v349 = vld [vmem:[#allocation2 + $0x800] sm:$0xff]
    %v350 = vld [vmem:[#allocation2 + $0x808] sm:$0xff]
    %v351 = vld [vmem:[#allocation2 + $0x810] sm:$0xff]
    %v352 = vld [vmem:[#allocation2 + $0x818] sm:$0xff]
    %v353 = vld [vmem:[#allocation2 + $0x820] sm:$0xff]
    %v354 = vld [vmem:[#allocation2 + $0x828] sm:$0xff]
    %v355 = vld [vmem:[#allocation2 + $0x830] sm:$0xff]
    %v356 = vld [vmem:[#allocation2 + $0x838] sm:$0xff]
    %v357 = vld [vmem:[#allocation2 + $0x840] sm:$0xff]
    %v358 = vld [vmem:[#allocation2 + $0x848] sm:$0xff]
    %v359 = vld [vmem:[#allocation2 + $0x850] sm:$0xff]
    %v360 = vld [vmem:[#allocation2 + $0x858] sm:$0xff]
    %v361 = vld [vmem:[#allocation2 + $0x860] sm:$0xff]
    %v362 = vld [vmem:[#allocation2 + $0x868] sm:$0xff]
    %v363 = vld [vmem:[#allocation2 + $0x870] sm:$0xff]
    %v364 = vld [vmem:[#allocation2 + $0x878] sm:$0xff]
    %v365 = vld [vmem:[#allocation2 + $0x880] sm:$0xff]
    %v366 = vld [vmem:[#allocation2 + $0x888] sm:$0xff]
    %v367 = vld [vmem:[#allocation2 + $0x890] sm:$0xff]
    %v368 = vld [vmem:[#allocation2 + $0x898] sm:$0xff]
    %v369 = vld [vmem:[#allocation2 + $0x8a0] sm:$0xff]
    %v370 = vld [vmem:[#allocation2 + $0x8a8] sm:$0xff]
    %v371 = vld [vmem:[#allocation2 + $0x8b0] sm:$0xff]
    %v372 = vld [vmem:[#allocation2 + $0x8b8] sm:$0xff]
    %v373 = vld [vmem:[#allocation2 + $0x8c0] sm:$0xff]
    %v374 = vld [vmem:[#allocation2 + $0x8c8] sm:$0xff]
    %v375 = vld [vmem:[#allocation2 + $0x8d0] sm:$0xff]
    %v376 = vld [vmem:[#allocation2 + $0x8d8] sm:$0xff]
    %v377 = vld [vmem:[#allocation2 + $0x8e0] sm:$0xff]
    %v378 = vld [vmem:[#allocation2 + $0x8e8] sm:$0xff]
    %v379 = vld [vmem:[#allocation2 + $0x8f0] sm:$0xff]
    %v380 = vld [vmem:[#allocation2 + $0x8f8] sm:$0xff]
    %v381 = vld [vmem:[#allocation2 + $0x900] sm:$0xff]
    %v382 = vld [vmem:[#allocation2 + $0x908] sm:$0xff]
    %v383 = vld [vmem:[#allocation2 + $0x910] sm:$0xff]
    %v384 = vld [vmem:[#allocation2 + $0x918] sm:$0xff]
    %v385 = vld [vmem:[#allocation2 + $0x920] sm:$0xff]
    %v386 = vld [vmem:[#allocation2 + $0x928] sm:$0xff]
    %v387 = vld [vmem:[#allocation2 + $0x930] sm:$0xff]
    %v388 = vld [vmem:[#allocation2 + $0x938] sm:$0xff]
    %v389 = vld [vmem:[#allocation2 + $0x940] sm:$0xff]
    %v390 = vld [vmem:[#allocation2 + $0x948] sm:$0xff]
    %v391 = vld [vmem:[#allocation2 + $0x950] sm:$0xff]
    %v392 = vld [vmem:[#allocation2 + $0x958] sm:$0xff]
    %v393 = vld [vmem:[#allocation2 + $0x960] sm:$0xff]
    %v394 = vld [vmem:[#allocation2 + $0x968] sm:$0xff]
    %v395 = vld [vmem:[#allocation2 + $0x970] sm:$0xff]
    %v396 = vld [vmem:[#allocation2 + $0x978] sm:$0xff]
    %v397 = vld [vmem:[#allocation2 + $0x980] sm:$0xff]
    %v398 = vld [vmem:[#allocation2 + $0x988] sm:$0xff]
    %v399 = vld [vmem:[#allocation2 + $0x990] sm:$0xff]
    %v400 = vld [vmem:[#allocation2 + $0x998] sm:$0xff]
    %v401 = vld [vmem:[#allocation2 + $0x9a0] sm:$0xff]
    %v402 = vld [vmem:[#allocation2 + $0x9a8] sm:$0xff]
    %v403 = vld [vmem:[#allocation2 + $0x9b0] sm:$0xff]
    %v404 = vld [vmem:[#allocation2 + $0x9b8] sm:$0xff]
    %v405 = vld [vmem:[#allocation2 + $0x9c0] sm:$0xff]
    %v406 = vld [vmem:[#allocation2 + $0x9c8] sm:$0xff]
    %v407 = vld [vmem:[#allocation2 + $0x9d0] sm:$0xff]
    %v408 = vld [vmem:[#allocation2 + $0x9d8] sm:$0xff]
    %v409 = vld [vmem:[#allocation2 + $0x9e0] sm:$0xff]
    %v410 = vld [vmem:[#allocation2 + $0x9e8] sm:$0xff]
    %v411 = vld [vmem:[#allocation2 + $0x9f0] sm:$0xff]
    %v412 = vld [vmem:[#allocation2 + $0x9f8] sm:$0xff]
    %v413 = vld [vmem:[#allocation2 + $0xa00] sm:$0xff]
    %v414 = vld [vmem:[#allocation2 + $0xa08] sm:$0xff]
    %v415 = vld [vmem:[#allocation2 + $0xa10] sm:$0xff]
    %v416 = vld [vmem:[#allocation2 + $0xa18] sm:$0xff]
    %v417 = vld [vmem:[#allocation2 + $0xa20] sm:$0xff]
    %v418 = vld [vmem:[#allocation2 + $0xa28] sm:$0xff]
    %v419 = vld [vmem:[#allocation2 + $0xa30] sm:$0xff]
    %v420 = vld [vmem:[#allocation2 + $0xa38] sm:$0xff]
    %v421 = vld [vmem:[#allocation2 + $0xa40] sm:$0xff]
    %v422 = vld [vmem:[#allocation2 + $0xa48] sm:$0xff]
    %v423 = vld [vmem:[#allocation2 + $0xa50] sm:$0xff]
    %v424 = vld [vmem:[#allocation2 + $0xa58] sm:$0xff]
    %v425 = vld [vmem:[#allocation2 + $0xa60] sm:$0xff]
    %v426 = vld [vmem:[#allocation2 + $0xa68] sm:$0xff]
    %v427 = vld [vmem:[#allocation2 + $0xa70] sm:$0xff]
    %v428 = vld [vmem:[#allocation2 + $0xa78] sm:$0xff]
    %v429 = vld [vmem:[#allocation2 + $0xa80] sm:$0xff]
    %v430 = vld [vmem:[#allocation2 + $0xa88] sm:$0xff]
    %v431 = vld [vmem:[#allocation2 + $0xa90] sm:$0xff]
    %v432 = vld [vmem:[#allocation2 + $0xa98] sm:$0xff]
    %v433 = vld [vmem:[#allocation2 + $0xaa0] sm:$0xff]
    %v434 = vld [vmem:[#allocation2 + $0xaa8] sm:$0xff]
    %v435 = vld [vmem:[#allocation2 + $0xab0] sm:$0xff]
    %v436 = vld [vmem:[#allocation2 + $0xab8] sm:$0xff]
    %v437 = vld [vmem:[#allocation2 + $0xac0] sm:$0xff]
    %v438 = vld [vmem:[#allocation2 + $0xac8] sm:$0xff]
    %v439 = vld [vmem:[#allocation2 + $0xad0] sm:$0xff]
    %v440 = vld [vmem:[#allocation2 + $0xad8] sm:$0xff]
    %v441 = vld [vmem:[#allocation2 + $0xae0] sm:$0xff]
    %v442 = vld [vmem:[#allocation2 + $0xae8] sm:$0xff]
    %v443 = vld [vmem:[#allocation2 + $0xaf0] sm:$0xff]
    %v444 = vld [vmem:[#allocation2 + $0xaf8] sm:$0xff]
    %v445 = vld [vmem:[#allocation2 + $0xb00] sm:$0xff]
    %v446 = vld [vmem:[#allocation2 + $0xb08] sm:$0xff]
    %v447 = vld [vmem:[#allocation2 + $0xb10] sm:$0xff]
    %v448 = vld [vmem:[#allocation2 + $0xb18] sm:$0xff]
    %v449 = vld [vmem:[#allocation2 + $0xb20] sm:$0xff]
    %v450 = vld [vmem:[#allocation2 + $0xb28] sm:$0xff]
    %v451 = vld [vmem:[#allocation2 + $0xb30] sm:$0xff]
    %v452 = vld [vmem:[#allocation2 + $0xb38] sm:$0xff]
    %v453 = vld [vmem:[#allocation2 + $0xb40] sm:$0xff]
    %v454 = vld [vmem:[#allocation2 + $0xb48] sm:$0xff]
    %v455 = vld [vmem:[#allocation2 + $0xb50] sm:$0xff]
    %v456 = vld [vmem:[#allocation2 + $0xb58] sm:$0xff]
    %v457 = vld [vmem:[#allocation2 + $0xb60] sm:$0xff]
    %v458 = vld [vmem:[#allocation2 + $0xb68] sm:$0xff]
    %v459 = vld [vmem:[#allocation2 + $0xb70] sm:$0xff]
    %v460 = vld [vmem:[#allocation2 + $0xb78] sm:$0xff]
    %v461 = vld [vmem:[#allocation2 + $0xb80] sm:$0xff]
    %v462 = vld [vmem:[#allocation2 + $0xb88] sm:$0xff]
    %v463 = vld [vmem:[#allocation2 + $0xb90] sm:$0xff]
    %v464 = vld [vmem:[#allocation2 + $0xb98] sm:$0xff]
    %v465 = vld [vmem:[#allocation2 + $0xba0] sm:$0xff]
    %v466 = vld [vmem:[#allocation2 + $0xba8] sm:$0xff]
    %v467 = vld [vmem:[#allocation2 + $0xbb0] sm:$0xff]
    %v468 = vld [vmem:[#allocation2 + $0xbb8] sm:$0xff]
    %v469 = vld [vmem:[#allocation2 + $0xbc0] sm:$0xff]
    %v470 = vld [vmem:[#allocation2 + $0xbc8] sm:$0xff]
    %v471 = vld [vmem:[#allocation2 + $0xbd0] sm:$0xff]
    %v472 = vld [vmem:[#allocation2 + $0xbd8] sm:$0xff]
    %v473 = vld [vmem:[#allocation2 + $0xbe0] sm:$0xff]
    %v474 = vld [vmem:[#allocation2 + $0xbe8] sm:$0xff]
    %v475 = vld [vmem:[#allocation2 + $0xbf0] sm:$0xff]
    %v476 = vld [vmem:[#allocation2 + $0xbf8] sm:$0xff]
    %v477 = vld [vmem:[#allocation2 + $0xc00] sm:$0xff]
    %v478 = vld [vmem:[#allocation2 + $0xc08] sm:$0xff]
    %v479 = vld [vmem:[#allocation2 + $0xc10] sm:$0xff]
    %v480 = vld [vmem:[#allocation2 + $0xc18] sm:$0xff]
    %v481 = vld [vmem:[#allocation2 + $0xc20] sm:$0xff]
    %v482 = vld [vmem:[#allocation2 + $0xc28] sm:$0xff]
    %v483 = vld [vmem:[#allocation2 + $0xc30] sm:$0xff]
    %v484 = vld [vmem:[#allocation2 + $0xc38] sm:$0xff]
    %v485 = vld [vmem:[#allocation2 + $0xc40] sm:$0xff]
    %v486 = vld [vmem:[#allocation2 + $0xc48] sm:$0xff]
    %v487 = vld [vmem:[#allocation2 + $0xc50] sm:$0xff]
    %v488 = vld [vmem:[#allocation2 + $0xc58] sm:$0xff]
    %v489 = vld [vmem:[#allocation2 + $0xc60] sm:$0xff]
    %v490 = vld [vmem:[#allocation2 + $0xc68] sm:$0xff]
    %v491 = vld [vmem:[#allocation2 + $0xc70] sm:$0xff]
    %v492 = vld [vmem:[#allocation2 + $0xc78] sm:$0xff]
    %v493 = vld [vmem:[#allocation2 + $0xc80] sm:$0xff]
    %v494 = vld [vmem:[#allocation2 + $0xc88] sm:$0xff]
    %v495 = vld [vmem:[#allocation2 + $0xc90] sm:$0xff]
    %v496 = vld [vmem:[#allocation2 + $0xc98] sm:$0xff]
    %v497 = vld [vmem:[#allocation2 + $0xca0] sm:$0xff]
    %v498 = vld [vmem:[#allocation2 + $0xca8] sm:$0xff]
    %v499 = vld [vmem:[#allocation2 + $0xcb0] sm:$0xff]
    %v500 = vld [vmem:[#allocation2 + $0xcb8] sm:$0xff]
    %v501 = vld [vmem:[#allocation2 + $0xcc0] sm:$0xff]
    %v502 = vld [vmem:[#allocation2 + $0xcc8] sm:$0xff]
    %v503 = vld [vmem:[#allocation2 + $0xcd0] sm:$0xff]
    %v504 = vld [vmem:[#allocation2 + $0xcd8] sm:$0xff]
    %v505 = vld [vmem:[#allocation2 + $0xce0] sm:$0xff]
    %v506 = vld [vmem:[#allocation2 + $0xce8] sm:$0xff]
    %v507 = vld [vmem:[#allocation2 + $0xcf0] sm:$0xff]
    %v508 = vld [vmem:[#allocation2 + $0xcf8] sm:$0xff]
    %v509 = vld [vmem:[#allocation2 + $0xd00] sm:$0xff]
    %v510 = vld [vmem:[#allocation2 + $0xd08] sm:$0xff]
    %v511 = vld [vmem:[#allocation2 + $0xd10] sm:$0xff]
    %v512 = vld [vmem:[#allocation2 + $0xd18] sm:$0xff]
    %v513 = vld [vmem:[#allocation2 + $0xd20] sm:$0xff]
    %v514 = vld [vmem:[#allocation2 + $0xd28] sm:$0xff]
    %v515 = vld [vmem:[#allocation2 + $0xd30] sm:$0xff]
    %v516 = vld [vmem:[#allocation2 + $0xd38] sm:$0xff]
    %v517 = vld [vmem:[#allocation2 + $0xd40] sm:$0xff]
    %v518 = vld [vmem:[#allocation2 + $0xd48] sm:$0xff]
    %v519 = vld [vmem:[#allocation2 + $0xd50] sm:$0xff]
    %v520 = vld [vmem:[#allocation2 + $0xd58] sm:$0xff]
    %v521 = vld [vmem:[#allocation2 + $0xd60] sm:$0xff]
    %v522 = vld [vmem:[#allocation2 + $0xd68] sm:$0xff]
    %v523 = vld [vmem:[#allocation2 + $0xd70] sm:$0xff]
    %v524 = vld [vmem:[#allocation2 + $0xd78] sm:$0xff]
    %v525 = vld [vmem:[#allocation2 + $0xd80] sm:$0xff]
    %v526 = vld [vmem:[#allocation2 + $0xd88] sm:$0xff]
    %v527 = vld [vmem:[#allocation2 + $0xd90] sm:$0xff]
    %v528 = vld [vmem:[#allocation2 + $0xd98] sm:$0xff]
    %v529 = vld [vmem:[#allocation2 + $0xda0] sm:$0xff]
    %v530 = vld [vmem:[#allocation2 + $0xda8] sm:$0xff]
    %v531 = vld [vmem:[#allocation2 + $0xdb0] sm:$0xff]
    %v532 = vld [vmem:[#allocation2 + $0xdb8] sm:$0xff]
    %v533 = vld [vmem:[#allocation2 + $0xdc0] sm:$0xff]
    %v534 = vld [vmem:[#allocation2 + $0xdc8] sm:$0xff]
    %v535 = vld [vmem:[#allocation2 + $0xdd0] sm:$0xff]
    %v536 = vld [vmem:[#allocation2 + $0xdd8] sm:$0xff]
    %v537 = vld [vmem:[#allocation2 + $0xde0] sm:$0xff]
    %v538 = vld [vmem:[#allocation2 + $0xde8] sm:$0xff]
    %v539 = vld [vmem:[#allocation2 + $0xdf0] sm:$0xff]
    %v540 = vld [vmem:[#allocation2 + $0xdf8] sm:$0xff]
    %v541 = vld [vmem:[#allocation2 + $0xe00] sm:$0xff]
    %v542 = vld [vmem:[#allocation2 + $0xe08] sm:$0xff]
    %v543 = vld [vmem:[#allocation2 + $0xe10] sm:$0xff]
    %v544 = vld [vmem:[#allocation2 + $0xe18] sm:$0xff]
    %v545 = vld [vmem:[#allocation2 + $0xe20] sm:$0xff]
    %v546 = vld [vmem:[#allocation2 + $0xe28] sm:$0xff]
    %v547 = vld [vmem:[#allocation2 + $0xe30] sm:$0xff]
    %v548 = vld [vmem:[#allocation2 + $0xe38] sm:$0xff]
    %v549 = vld [vmem:[#allocation2 + $0xe40] sm:$0xff]
    %v550 = vld [vmem:[#allocation2 + $0xe48] sm:$0xff]
    %v551 = vld [vmem:[#allocation2 + $0xe50] sm:$0xff]
    %v552 = vld [vmem:[#allocation2 + $0xe58] sm:$0xff]
    %v553 = vld [vmem:[#allocation2 + $0xe60] sm:$0xff]
    %v554 = vld [vmem:[#allocation2 + $0xe68] sm:$0xff]
    %v555 = vld [vmem:[#allocation2 + $0xe70] sm:$0xff]
    %v556 = vld [vmem:[#allocation2 + $0xe78] sm:$0xff]
    %v557 = vld [vmem:[#allocation2 + $0xe80] sm:$0xff]
    %v558 = vld [vmem:[#allocation2 + $0xe88] sm:$0xff]
    %v559 = vld [vmem:[#allocation2 + $0xe90] sm:$0xff]
    %v560 = vld [vmem:[#allocation2 + $0xe98] sm:$0xff]
    %v561 = vld [vmem:[#allocation2 + $0xea0] sm:$0xff]
    %v562 = vld [vmem:[#allocation2 + $0xea8] sm:$0xff]
    %v563 = vld [vmem:[#allocation2 + $0xeb0] sm:$0xff]
    %v564 = vld [vmem:[#allocation2 + $0xeb8] sm:$0xff]
    %v565 = vld [vmem:[#allocation2 + $0xec0] sm:$0xff]
    %v566 = vld [vmem:[#allocation2 + $0xec8] sm:$0xff]
    %v567 = vld [vmem:[#allocation2 + $0xed0] sm:$0xff]
    %v568 = vld [vmem:[#allocation2 + $0xed8] sm:$0xff]
    %v569 = vld [vmem:[#allocation2 + $0xee0] sm:$0xff]
    %v570 = vld [vmem:[#allocation2 + $0xee8] sm:$0xff]
    %v571 = vld [vmem:[#allocation2 + $0xef0] sm:$0xff]
    %v572 = vld [vmem:[#allocation2 + $0xef8] sm:$0xff]
    %v573 = vld [vmem:[#allocation2 + $0xf00] sm:$0xff]
    %v574 = vld [vmem:[#allocation2 + $0xf08] sm:$0xff]
    %v575 = vld [vmem:[#allocation2 + $0xf10] sm:$0xff]
    %v576 = vld [vmem:[#allocation2 + $0xf18] sm:$0xff]
    %v577 = vld [vmem:[#allocation2 + $0xf20] sm:$0xff]
    %v578 = vld [vmem:[#allocation2 + $0xf28] sm:$0xff]
    %v579 = vld [vmem:[#allocation2 + $0xf30] sm:$0xff]
    %v580 = vld [vmem:[#allocation2 + $0xf38] sm:$0xff]
    %v581 = vld [vmem:[#allocation2 + $0xf40] sm:$0xff]
    %v582 = vld [vmem:[#allocation2 + $0xf48] sm:$0xff]
    %v583 = vld [vmem:[#allocation2 + $0xf50] sm:$0xff]
    %v584 = vld [vmem:[#allocation2 + $0xf58] sm:$0xff]
    %v585 = vld [vmem:[#allocation2 + $0xf60] sm:$0xff]
    %v586 = vld [vmem:[#allocation2 + $0xf68] sm:$0xff]
    %v587 = vld [vmem:[#allocation2 + $0xf70] sm:$0xff]
    %v588 = vld [vmem:[#allocation2 + $0xf78] sm:$0xff]
    %v589 = vld [vmem:[#allocation2 + $0xf80] sm:$0xff]
    %v590 = vld [vmem:[#allocation2 + $0xf88] sm:$0xff]
    %v591 = vld [vmem:[#allocation2 + $0xf90] sm:$0xff]
    %v592 = vld [vmem:[#allocation2 + $0xf98] sm:$0xff]
    %v593 = vld [vmem:[#allocation2 + $0xfa0] sm:$0xff]
    %v594 = vld [vmem:[#allocation2 + $0xfa8] sm:$0xff]
    %v595 = vld [vmem:[#allocation2 + $0xfb0] sm:$0xff]
    %v596 = vld [vmem:[#allocation2 + $0xfb8] sm:$0xff]
    %v597 = vld [vmem:[#allocation2 + $0xfc0] sm:$0xff]
    %v598 = vld [vmem:[#allocation2 + $0xfc8] sm:$0xff]
    %v599 = vld [vmem:[#allocation2 + $0xfd0] sm:$0xff]
    %v600 = vld [vmem:[#allocation2 + $0xfd8] sm:$0xff]
    %v601 = vld [vmem:[#allocation2 + $0xfe0] sm:$0xff]
    %v602 = vld [vmem:[#allocation2 + $0xfe8] sm:$0xff]
    %v603 = vld [vmem:[#allocation2 + $0xff0] sm:$0xff]
    %v604 = vld [vmem:[#allocation2 + $0xff8] sm:$0xff]
    %v605 = vld [vmem:[#allocation2 + $0x1000] sm:$0xff]
    %v606 = vld [vmem:[#allocation2 + $0x1008] sm:$0xff]
    %v607 = vld [vmem:[#allocation2 + $0x1010] sm:$0xff]
    %v608 = vld [vmem:[#allocation2 + $0x1018] sm:$0xff]
    %v609 = vld [vmem:[#allocation2 + $0x1020] sm:$0xff]
    %v610 = vld [vmem:[#allocation2 + $0x1028] sm:$0xff]
    %v611 = vld [vmem:[#allocation2 + $0x1030] sm:$0xff]
    %v612 = vld [vmem:[#allocation2 + $0x1038] sm:$0xff]
    %v613 = vld [vmem:[#allocation2 + $0x1040] sm:$0xff]
    %v614 = vld [vmem:[#allocation2 + $0x1048] sm:$0xff]
    %v615 = vld [vmem:[#allocation2 + $0x1050] sm:$0xff]
    %v616 = vld [vmem:[#allocation2 + $0x1058] sm:$0xff]
    %v617 = vld [vmem:[#allocation2 + $0x1060] sm:$0xff]
    %v618 = vld [vmem:[#allocation2 + $0x1068] sm:$0xff]
    %v619 = vld [vmem:[#allocation2 + $0x1070] sm:$0xff]
    %v620 = vld [vmem:[#allocation2 + $0x1078] sm:$0xff]
    %v621 = vld [vmem:[#allocation2 + $0x1080] sm:$0xff]
    %v622 = vld [vmem:[#allocation2 + $0x1088] sm:$0xff]
    %v623 = vld [vmem:[#allocation2 + $0x1090] sm:$0xff]
    %v624 = vld [vmem:[#allocation2 + $0x1098] sm:$0xff]
    %v625 = vld [vmem:[#allocation2 + $0x10a0] sm:$0xff]
    %v626 = vld [vmem:[#allocation2 + $0x10a8] sm:$0xff]
    %v627 = vld [vmem:[#allocation2 + $0x10b0] sm:$0xff]
    %v628 = vld [vmem:[#allocation2 + $0x10b8] sm:$0xff]
    %v629 = vld [vmem:[#allocation2 + $0x10c0] sm:$0xff]
    %v630 = vld [vmem:[#allocation2 + $0x10c8] sm:$0xff]
    %v631 = vld [vmem:[#allocation2 + $0x10d0] sm:$0xff]
    %v632 = vld [vmem:[#allocation2 + $0x10d8] sm:$0xff]
    %v633 = vld [vmem:[#allocation2 + $0x10e0] sm:$0xff]
    %v634 = vld [vmem:[#allocation2 + $0x10e8] sm:$0xff]
    %v635 = vld [vmem:[#allocation2 + $0x10f0] sm:$0xff]
    %v636 = vld [vmem:[#allocation2 + $0x10f8] sm:$0xff]
    %v637 = vld [vmem:[#allocation2 + $0x1100] sm:$0xff]
    %v638 = vld [vmem:[#allocation2 + $0x1108] sm:$0xff]
    %v639 = vld [vmem:[#allocation2 + $0x1110] sm:$0xff]
    %v640 = vld [vmem:[#allocation2 + $0x1118] sm:$0xff]
    %v641 = vld [vmem:[#allocation2 + $0x1120] sm:$0xff]
    %v642 = vld [vmem:[#allocation2 + $0x1128] sm:$0xff]
    %v643 = vld [vmem:[#allocation2 + $0x1130] sm:$0xff]
    %v644 = vld [vmem:[#allocation2 + $0x1138] sm:$0xff]
    %v645 = vld [vmem:[#allocation2 + $0x1140] sm:$0xff]
    %v646 = vld [vmem:[#allocation2 + $0x1148] sm:$0xff]
    %v647 = vld [vmem:[#allocation2 + $0x1150] sm:$0xff]
    %v648 = vld [vmem:[#allocation2 + $0x1158] sm:$0xff]
    %v649 = vld [vmem:[#allocation2 + $0x1160] sm:$0xff]
    %v650 = vld [vmem:[#allocation2 + $0x1168] sm:$0xff]
    %v651 = vld [vmem:[#allocation2 + $0x1170] sm:$0xff]
    %v652 = vld [vmem:[#allocation2 + $0x1178] sm:$0xff]
    %v653 = vld [vmem:[#allocation2 + $0x1180] sm:$0xff]
    %v654 = vld [vmem:[#allocation2 + $0x1188] sm:$0xff]
    %v655 = vld [vmem:[#allocation2 + $0x1190] sm:$0xff]
    %v656 = vld [vmem:[#allocation2 + $0x1198] sm:$0xff]
    %v657 = vld [vmem:[#allocation2 + $0x11a0] sm:$0xff]
    %v658 = vld [vmem:[#allocation2 + $0x11a8] sm:$0xff]
    %v659 = vld [vmem:[#allocation2 + $0x11b0] sm:$0xff]
    %v660 = vld [vmem:[#allocation2 + $0x11b8] sm:$0xff]
    %v661 = vld [vmem:[#allocation2 + $0x11c0] sm:$0xff]
    %v662 = vld [vmem:[#allocation2 + $0x11c8] sm:$0xff]
    %v663 = vld [vmem:[#allocation2 + $0x11d0] sm:$0xff]
    %v664 = vld [vmem:[#allocation2 + $0x11d8] sm:$0xff]
    %v665 = vld [vmem:[#allocation2 + $0x11e0] sm:$0xff]
    %v666 = vld [vmem:[#allocation2 + $0x11e8] sm:$0xff]
    %v667 = vld [vmem:[#allocation2 + $0x11f0] sm:$0xff]
    %v668 = vld [vmem:[#allocation2 + $0x11f8] sm:$0xff]
    %v669 = vld [vmem:[#allocation2 + $0x1200] sm:$0xff]
    %v670 = vld [vmem:[#allocation2 + $0x1208] sm:$0xff]
    %v671 = vld [vmem:[#allocation2 + $0x1210] sm:$0xff]
    %v672 = vld [vmem:[#allocation2 + $0x1218] sm:$0xff]
    %v673 = vld [vmem:[#allocation2 + $0x1220] sm:$0xff]
    %v674 = vld [vmem:[#allocation2 + $0x1228] sm:$0xff]
    %v675 = vld [vmem:[#allocation2 + $0x1230] sm:$0xff]
    %v676 = vld [vmem:[#allocation2 + $0x1238] sm:$0xff]
    %v677 = vld [vmem:[#allocation2 + $0x1240] sm:$0xff]
    %v678 = vld [vmem:[#allocation2 + $0x1248] sm:$0xff]
    %v679 = vld [vmem:[#allocation2 + $0x1250] sm:$0xff]
    %v680 = vld [vmem:[#allocation2 + $0x1258] sm:$0xff]
    %v681 = vld [vmem:[#allocation2 + $0x1260] sm:$0xff]
    %v682 = vld [vmem:[#allocation2 + $0x1268] sm:$0xff]
    %v683 = vld [vmem:[#allocation2 + $0x1270] sm:$0xff]
    %v684 = vld [vmem:[#allocation2 + $0x1278] sm:$0xff]
    %v685 = vld [vmem:[#allocation2 + $0x1280] sm:$0xff]
    %v686 = vld [vmem:[#allocation2 + $0x1288] sm:$0xff]
    %v687 = vld [vmem:[#allocation2 + $0x1290] sm:$0xff]
    %v688 = vld [vmem:[#allocation2 + $0x1298] sm:$0xff]
    %v689 = vld [vmem:[#allocation2 + $0x12a0] sm:$0xff]
    %v690 = vld [vmem:[#allocation2 + $0x12a8] sm:$0xff]
    %v691 = vld [vmem:[#allocation2 + $0x12b0] sm:$0xff]
    %v692 = vld [vmem:[#allocation2 + $0x12b8] sm:$0xff]
    %v693 = vld [vmem:[#allocation2 + $0x12c0] sm:$0xff]
    %v694 = vld [vmem:[#allocation2 + $0x12c8] sm:$0xff]
    %v695 = vld [vmem:[#allocation2 + $0x12d0] sm:$0xff]
    %v696 = vld [vmem:[#allocation2 + $0x12d8] sm:$0xff]
    %v697 = vld [vmem:[#allocation2 + $0x12e0] sm:$0xff]
    %v698 = vld [vmem:[#allocation2 + $0x12e8] sm:$0xff]
    %v699 = vld [vmem:[#allocation2 + $0x12f0] sm:$0xff]
    %v700 = vld [vmem:[#allocation2 + $0x12f8] sm:$0xff]
    %v701 = vld [vmem:[#allocation2 + $0x1300] sm:$0xff]
    %v702 = vld [vmem:[#allocation2 + $0x1308] sm:$0xff]
    %v703 = vld [vmem:[#allocation2 + $0x1310] sm:$0xff]
    %v704 = vld [vmem:[#allocation2 + $0x1318] sm:$0xff]
    %v705 = vld [vmem:[#allocation2 + $0x1320] sm:$0xff]
    %v706 = vld [vmem:[#allocation2 + $0x1328] sm:$0xff]
    %v707 = vld [vmem:[#allocation2 + $0x1330] sm:$0xff]
    %v708 = vld [vmem:[#allocation2 + $0x1338] sm:$0xff]
    %v709 = vld [vmem:[#allocation2 + $0x1340] sm:$0xff]
    %v710 = vld [vmem:[#allocation2 + $0x1348] sm:$0xff]
    %v711 = vld [vmem:[#allocation2 + $0x1350] sm:$0xff]
    %v712 = vld [vmem:[#allocation2 + $0x1358] sm:$0xff]
    %v713 = vld [vmem:[#allocation2 + $0x1360] sm:$0xff]
    %v714 = vld [vmem:[#allocation2 + $0x1368] sm:$0xff]
    %v715 = vld [vmem:[#allocation2 + $0x1370] sm:$0xff]
    %v716 = vld [vmem:[#allocation2 + $0x1378] sm:$0xff]
    %v717 = vld [vmem:[#allocation2 + $0x1380] sm:$0xff]
    %v718 = vld [vmem:[#allocation2 + $0x1388] sm:$0xff]
    %v719 = vld [vmem:[#allocation2 + $0x1390] sm:$0xff]
    %v720 = vld [vmem:[#allocation2 + $0x1398] sm:$0xff]
    %v721 = vld [vmem:[#allocation2 + $0x13a0] sm:$0xff]
    %v722 = vld [vmem:[#allocation2 + $0x13a8] sm:$0xff]
    %v723 = vld [vmem:[#allocation2 + $0x13b0] sm:$0xff]
    %v724 = vld [vmem:[#allocation2 + $0x13b8] sm:$0xff]
    %v725 = vld [vmem:[#allocation2 + $0x13c0] sm:$0xff]
    %v726 = vld [vmem:[#allocation2 + $0x13c8] sm:$0xff]
    %v727 = vld [vmem:[#allocation2 + $0x13d0] sm:$0xff]
    %v728 = vld [vmem:[#allocation2 + $0x13d8] sm:$0xff]
    %v729 = vld [vmem:[#allocation2 + $0x13e0] sm:$0xff]
    %v730 = vld [vmem:[#allocation2 + $0x13e8] sm:$0xff]
    %v731 = vld [vmem:[#allocation2 + $0x13f0] sm:$0xff]
    %v732 = vld [vmem:[#allocation2 + $0x13f8] sm:$0xff]
    %v733 = vld [vmem:[#allocation2 + $0x1400] sm:$0xff]
    %v734 = vld [vmem:[#allocation2 + $0x1408] sm:$0xff]
    %v735 = vld [vmem:[#allocation2 + $0x1410] sm:$0xff]
    %v736 = vld [vmem:[#allocation2 + $0x1418] sm:$0xff]
    %v737 = vld [vmem:[#allocation2 + $0x1420] sm:$0xff]
    %v738 = vld [vmem:[#allocation2 + $0x1428] sm:$0xff]
    %v739 = vld [vmem:[#allocation2 + $0x1430] sm:$0xff]
    %v740 = vld [vmem:[#allocation2 + $0x1438] sm:$0xff]
    %v741 = vld [vmem:[#allocation2 + $0x1440] sm:$0xff]
    %v742 = vld [vmem:[#allocation2 + $0x1448] sm:$0xff]
    %v743 = vld [vmem:[#allocation2 + $0x1450] sm:$0xff]
    %v744 = vld [vmem:[#allocation2 + $0x1458] sm:$0xff]
    %v745 = vld [vmem:[#allocation2 + $0x1460] sm:$0xff]
    %v746 = vld [vmem:[#allocation2 + $0x1468] sm:$0xff]
    %v747 = vld [vmem:[#allocation2 + $0x1470] sm:$0xff]
    %v748 = vld [vmem:[#allocation2 + $0x1478] sm:$0xff]
    %v749 = vld [vmem:[#allocation2 + $0x1480] sm:$0xff]
    %v750 = vld [vmem:[#allocation2 + $0x1488] sm:$0xff]
    %v751 = vld [vmem:[#allocation2 + $0x1490] sm:$0xff]
    %v752 = vld [vmem:[#allocation2 + $0x1498] sm:$0xff]
    %v753 = vld [vmem:[#allocation2 + $0x14a0] sm:$0xff]
    %v754 = vld [vmem:[#allocation2 + $0x14a8] sm:$0xff]
    %v755 = vld [vmem:[#allocation2 + $0x14b0] sm:$0xff]
    %v756 = vld [vmem:[#allocation2 + $0x14b8] sm:$0xff]
    %v757 = vld [vmem:[#allocation2 + $0x14c0] sm:$0xff]
    %v758 = vld [vmem:[#allocation2 + $0x14c8] sm:$0xff]
    %v759 = vld [vmem:[#allocation2 + $0x14d0] sm:$0xff]
    %v760 = vld [vmem:[#allocation2 + $0x14d8] sm:$0xff]
    %v761 = vld [vmem:[#allocation2 + $0x14e0] sm:$0xff]
    %v762 = vld [vmem:[#allocation2 + $0x14e8] sm:$0xff]
    %v763 = vld [vmem:[#allocation2 + $0x14f0] sm:$0xff]
    %v764 = vld [vmem:[#allocation2 + $0x14f8] sm:$0xff]
    %v765 = vld [vmem:[#allocation4] sm:$0x3]
    %v767 = vlaneseq
    %v768 = vshrl.u32 %v767, 7
    %v769 = vsub.s32 0, %v768
    %v770 = vrot.slane %v765, %v769
    %v771 = vlaneseq
    %v772 = vshrl.u32 %v771, 7
    %v773 = vsub.s32 1, %v772
    %v774 = vrot.slane %v765, %v773
    %v798 = vunpack.c.l.b16 %v72
    %v799 = vunpack.c.h.b16 %v72
    %v800 = vunpack.c.l.b16 %v73
    %v801 = vunpack.c.h.b16 %v73
    %v802 = vunpack.c.l.b16 %v74
    %v803 = vunpack.c.h.b16 %v74
    %v804 = vunpack.c.l.b16 %v75
    %v805 = vunpack.c.h.b16 %v75
    %v806 = vunpack.c.l.b16 %v76
    %v807 = vunpack.c.h.b16 %v76
    %v808 = vunpack.c.l.b16 %v77
    %v809 = vunpack.c.h.b16 %v77
    %v810 = vunpack.c.l.b16 %v78
    %v811 = vunpack.c.h.b16 %v78
    %v812 = vunpack.c.l.b16 %v79
    %v813 = vunpack.c.h.b16 %v79
    %v814 = vunpack.c.l.b16 %v80
    %v815 = vunpack.c.h.b16 %v80
    %v816 = vunpack.c.l.b16 %v81
    %v817 = vunpack.c.h.b16 %v81
    %v818 = vunpack.c.l.b16 %v82
    %v819 = vunpack.c.h.b16 %v82
    %v820 = vunpack.c.l.b16 %v83
    %v821 = vunpack.c.h.b16 %v83
    %v822 = vunpack.c.l.b16 %v84
    %v823 = vunpack.c.h.b16 %v84
    %v824 = vunpack.c.l.b16 %v85
    %v825 = vunpack.c.h.b16 %v85
    %v826 = vunpack.c.l.b16 %v86
    %v827 = vunpack.c.h.b16 %v86
    %v828 = vunpack.c.l.b16 %v87
    %v829 = vunpack.c.h.b16 %v87
    %v830 = vunpack.c.l.b16 %v88
    %v831 = vunpack.c.h.b16 %v88
    %v832 = vunpack.c.l.b16 %v89
    %v833 = vunpack.c.h.b16 %v89
    %v834 = vunpack.c.l.b16 %v90
    %v835 = vunpack.c.h.b16 %v90
    %v836 = vunpack.c.l.b16 %v91
    %v837 = vunpack.c.h.b16 %v91
    %v838 = vunpack.c.l.b16 %v92
    %v839 = vunpack.c.h.b16 %v92
    %v840 = vpack.c.b16 %v798, %v798
    %v841 = vpack.c.b16 %v799, %v799
    %v842 = vpack.c.b16 %v800, %v800
    %v843 = vpack.c.b16 %v801, %v801
    %v844 = vpack.c.b16 %v802, %v802
    %v845 = vpack.c.b16 %v803, %v803
    %v846 = vpack.c.b16 %v804, %v804
    %v847 = vpack.c.b16 %v805, %v805
    %v848 = vpack.c.b16 %v806, %v806
    %v849 = vpack.c.b16 %v807, %v807
    %v850 = vpack.c.b16 %v808, %v808
    %v851 = vpack.c.b16 %v809, %v809
    %v852 = vpack.c.b16 %v810, %v810
    %v853 = vpack.c.b16 %v811, %v811
    %v854 = vpack.c.b16 %v812, %v812
    %v855 = vpack.c.b16 %v813, %v813
    %v856 = vpack.c.b16 %v814, %v814
    %v857 = vpack.c.b16 %v815, %v815
    %v858 = vpack.c.b16 %v816, %v816
    %v859 = vpack.c.b16 %v817, %v817
    %v860 = vpack.c.b16 %v818, %v818
    %v861 = vpack.c.b16 %v819, %v819
    %v862 = vpack.c.b16 %v820, %v820
    %v863 = vpack.c.b16 %v821, %v821
    %v864 = vpack.c.b16 %v822, %v822
    %v865 = vpack.c.b16 %v823, %v823
    %v866 = vpack.c.b16 %v824, %v824
    %v867 = vpack.c.b16 %v825, %v825
    %v868 = vpack.c.b16 %v826, %v826
    %v869 = vpack.c.b16 %v827, %v827
    %v870 = vpack.c.b16 %v828, %v828
    %v871 = vpack.c.b16 %v829, %v829
    %v872 = vpack.c.b16 %v830, %v830
    %v873 = vpack.c.b16 %v831, %v831
    %v874 = vpack.c.b16 %v832, %v832
    %v875 = vpack.c.b16 %v833, %v833
    %v876 = vpack.c.b16 %v834, %v834
    %v877 = vpack.c.b16 %v835, %v835
    %v878 = vpack.c.b16 %v836, %v836
    %v879 = vpack.c.b16 %v837, %v837
    %v880 = vpack.c.b16 %v838, %v838
    %v881 = vpack.c.b16 %v839, %v839
    %v1596 = vunpack.c.l.b16 %v93
    %v1597 = vunpack.c.h.b16 %v93
    %v1598 = vunpack.c.l.b16 %v94
    %v1599 = vunpack.c.h.b16 %v94
    %v1600 = vunpack.c.l.b16 %v95
    %v1601 = vunpack.c.h.b16 %v95
    %v1602 = vunpack.c.l.b16 %v96
    %v1603 = vunpack.c.h.b16 %v96
    %v1604 = vunpack.c.l.b16 %v97
    %v1605 = vunpack.c.h.b16 %v97
    %v1606 = vunpack.c.l.b16 %v98
    %v1607 = vunpack.c.h.b16 %v98
    %v1608 = vunpack.c.l.b16 %v99
    %v1609 = vunpack.c.h.b16 %v99
    %v1610 = vunpack.c.l.b16 %v100
    %v1611 = vunpack.c.h.b16 %v100
    %v1612 = vunpack.c.l.b16 %v101
    %v1613 = vunpack.c.h.b16 %v101
    %v1614 = vunpack.c.l.b16 %v102
    %v1615 = vunpack.c.h.b16 %v102
    %v1616 = vunpack.c.l.b16 %v103
    %v1617 = vunpack.c.h.b16 %v103
    %v1618 = vunpack.c.l.b16 %v104
    %v1619 = vunpack.c.h.b16 %v104
    %v1620 = vunpack.c.l.b16 %v105
    %v1621 = vunpack.c.h.b16 %v105
    %v1622 = vunpack.c.l.b16 %v106
    %v1623 = vunpack.c.h.b16 %v106
    %v1624 = vunpack.c.l.b16 %v107
    %v1625 = vunpack.c.h.b16 %v107
    %v1626 = vunpack.c.l.b16 %v108
    %v1627 = vunpack.c.h.b16 %v108
    %v1628 = vunpack.c.l.b16 %v109
    %v1629 = vunpack.c.h.b16 %v109
    %v1630 = vunpack.c.l.b16 %v110
    %v1631 = vunpack.c.h.b16 %v110
    %v1632 = vunpack.c.l.b16 %v111
    %v1633 = vunpack.c.h.b16 %v111
    %v1634 = vunpack.c.l.b16 %v112
    %v1635 = vunpack.c.h.b16 %v112
    %v1636 = vunpack.c.l.b16 %v113
    %v1637 = vunpack.c.h.b16 %v113
    %v1638 = vunpack.c.l.b16 %v114
    %v1639 = vunpack.c.h.b16 %v114
    %v1640 = vunpack.c.l.b16 %v115
    %v1641 = vunpack.c.h.b16 %v115
    %v1642 = vunpack.c.l.b16 %v116
    %v1643 = vunpack.c.h.b16 %v116
    %v1644 = vunpack.c.l.b16 %v117
    %v1645 = vunpack.c.h.b16 %v117
    %v1646 = vunpack.c.l.b16 %v118
    %v1647 = vunpack.c.h.b16 %v118
    %v1648 = vunpack.c.l.b16 %v119
    %v1649 = vunpack.c.h.b16 %v119
    %v1650 = vunpack.c.l.b16 %v120
    %v1651 = vunpack.c.h.b16 %v120
    %v1652 = vunpack.c.l.b16 %v121
    %v1653 = vunpack.c.h.b16 %v121
    %v1654 = vunpack.c.l.b16 %v122
    %v1655 = vunpack.c.h.b16 %v122
    %v1656 = vunpack.c.l.b16 %v123
    %v1657 = vunpack.c.h.b16 %v123
    %v1658 = vunpack.c.l.b16 %v124
    %v1659 = vunpack.c.h.b16 %v124
    %v1660 = vunpack.c.l.b16 %v125
    %v1661 = vunpack.c.h.b16 %v125
    %v1662 = vunpack.c.l.b16 %v126
    %v1663 = vunpack.c.h.b16 %v126
    %v1664 = vunpack.c.l.b16 %v127
    %v1665 = vunpack.c.h.b16 %v127
    %v1666 = vunpack.c.l.b16 %v128
    %v1667 = vunpack.c.h.b16 %v128
    %v1668 = vunpack.c.l.b16 %v129
    %v1669 = vunpack.c.h.b16 %v129
    %v1670 = vunpack.c.l.b16 %v130
    %v1671 = vunpack.c.h.b16 %v130
    %v1672 = vunpack.c.l.b16 %v131
    %v1673 = vunpack.c.h.b16 %v131
    %v1674 = vunpack.c.l.b16 %v132
    %v1675 = vunpack.c.h.b16 %v132
    %v1676 = vunpack.c.l.b16 %v133
    %v1677 = vunpack.c.h.b16 %v133
    %v1678 = vunpack.c.l.b16 %v134
    %v1679 = vunpack.c.h.b16 %v134
    %v1680 = vunpack.c.l.b16 %v135
    %v1681 = vunpack.c.h.b16 %v135
    %v1682 = vunpack.c.l.b16 %v136
    %v1683 = vunpack.c.h.b16 %v136
    %v1684 = vunpack.c.l.b16 %v137
    %v1685 = vunpack.c.h.b16 %v137
    %v1686 = vunpack.c.l.b16 %v138
    %v1687 = vunpack.c.h.b16 %v138
    %v1688 = vunpack.c.l.b16 %v139
    %v1689 = vunpack.c.h.b16 %v139
    %v1690 = vunpack.c.l.b16 %v140
    %v1691 = vunpack.c.h.b16 %v140
    %v1692 = vunpack.c.l.b16 %v141
    %v1693 = vunpack.c.h.b16 %v141
    %v1694 = vunpack.c.l.b16 %v142
    %v1695 = vunpack.c.h.b16 %v142
    %v1696 = vunpack.c.l.b16 %v143
    %v1697 = vunpack.c.h.b16 %v143
    %v1698 = vunpack.c.l.b16 %v144
    %v1699 = vunpack.c.h.b16 %v144
    %v1700 = vunpack.c.l.b16 %v145
    %v1701 = vunpack.c.h.b16 %v145
    %v1702 = vunpack.c.l.b16 %v146
    %v1703 = vunpack.c.h.b16 %v146
    %v1704 = vunpack.c.l.b16 %v147
    %v1705 = vunpack.c.h.b16 %v147
    %v1706 = vunpack.c.l.b16 %v148
    %v1707 = vunpack.c.h.b16 %v148
    %v1708 = vunpack.c.l.b16 %v149
    %v1709 = vunpack.c.h.b16 %v149
    %v1710 = vunpack.c.l.b16 %v150
    %v1711 = vunpack.c.h.b16 %v150
    %v1712 = vunpack.c.l.b16 %v151
    %v1713 = vunpack.c.h.b16 %v151
    %v1714 = vunpack.c.l.b16 %v152
    %v1715 = vunpack.c.h.b16 %v152
    %v1716 = vunpack.c.l.b16 %v153
    %v1717 = vunpack.c.h.b16 %v153
    %v1718 = vunpack.c.l.b16 %v154
    %v1719 = vunpack.c.h.b16 %v154
    %v1720 = vunpack.c.l.b16 %v155
    %v1721 = vunpack.c.h.b16 %v155
    %v1722 = vunpack.c.l.b16 %v156
    %v1723 = vunpack.c.h.b16 %v156
    %v1724 = vunpack.c.l.b16 %v157
    %v1725 = vunpack.c.h.b16 %v157
    %v1726 = vunpack.c.l.b16 %v158
    %v1727 = vunpack.c.h.b16 %v158
    %v1728 = vunpack.c.l.b16 %v159
    %v1729 = vunpack.c.h.b16 %v159
    %v1730 = vunpack.c.l.b16 %v160
    %v1731 = vunpack.c.h.b16 %v160
    %v1732 = vunpack.c.l.b16 %v161
    %v1733 = vunpack.c.h.b16 %v161
    %v1734 = vunpack.c.l.b16 %v162
    %v1735 = vunpack.c.h.b16 %v162
    %v1736 = vunpack.c.l.b16 %v163
    %v1737 = vunpack.c.h.b16 %v163
    %v1738 = vunpack.c.l.b16 %v164
    %v1739 = vunpack.c.h.b16 %v164
    %v1740 = vunpack.c.l.b16 %v165
    %v1741 = vunpack.c.h.b16 %v165
    %v1742 = vunpack.c.l.b16 %v166
    %v1743 = vunpack.c.h.b16 %v166
    %v1744 = vunpack.c.l.b16 %v167
    %v1745 = vunpack.c.h.b16 %v167
    %v1746 = vunpack.c.l.b16 %v168
    %v1747 = vunpack.c.h.b16 %v168
    %v1748 = vunpack.c.l.b16 %v169
    %v1749 = vunpack.c.h.b16 %v169
    %v1750 = vunpack.c.l.b16 %v170
    %v1751 = vunpack.c.h.b16 %v170
    %v1752 = vunpack.c.l.b16 %v171
    %v1753 = vunpack.c.h.b16 %v171
    %v1754 = vunpack.c.l.b16 %v172
    %v1755 = vunpack.c.h.b16 %v172
    %v1756 = vunpack.c.l.b16 %v173
    %v1757 = vunpack.c.h.b16 %v173
    %v1758 = vunpack.c.l.b16 %v174
    %v1759 = vunpack.c.h.b16 %v174
    %v1760 = vunpack.c.l.b16 %v175
    %v1761 = vunpack.c.h.b16 %v175
    %v1762 = vunpack.c.l.b16 %v176
    %v1763 = vunpack.c.h.b16 %v176
    %v1764 = vunpack.c.l.b16 %v177
    %v1765 = vunpack.c.h.b16 %v177
    %v1766 = vunpack.c.l.b16 %v178
    %v1767 = vunpack.c.h.b16 %v178
    %v1768 = vunpack.c.l.b16 %v179
    %v1769 = vunpack.c.h.b16 %v179
    %v1770 = vunpack.c.l.b16 %v180
    %v1771 = vunpack.c.h.b16 %v180
    %v1772 = vunpack.c.l.b16 %v181
    %v1773 = vunpack.c.h.b16 %v181
    %v1774 = vunpack.c.l.b16 %v182
    %v1775 = vunpack.c.h.b16 %v182
    %v1776 = vunpack.c.l.b16 %v183
    %v1777 = vunpack.c.h.b16 %v183
    %v1778 = vunpack.c.l.b16 %v184
    %v1779 = vunpack.c.h.b16 %v184
    %v1780 = vunpack.c.l.b16 %v185
    %v1781 = vunpack.c.h.b16 %v185
    %v1782 = vunpack.c.l.b16 %v186
    %v1783 = vunpack.c.h.b16 %v186
    %v1784 = vunpack.c.l.b16 %v187
    %v1785 = vunpack.c.h.b16 %v187
    %v1786 = vunpack.c.l.b16 %v188
    %v1787 = vunpack.c.h.b16 %v188
    %v1788 = vunpack.c.l.b16 %v189
    %v1789 = vunpack.c.h.b16 %v189
    %v1790 = vunpack.c.l.b16 %v190
    %v1791 = vunpack.c.h.b16 %v190
    %v1792 = vunpack.c.l.b16 %v191
    %v1793 = vunpack.c.h.b16 %v191
    %v1794 = vunpack.c.l.b16 %v192
    %v1795 = vunpack.c.h.b16 %v192
    %v1796 = vunpack.c.l.b16 %v193
    %v1797 = vunpack.c.h.b16 %v193
    %v1798 = vunpack.c.l.b16 %v194
    %v1799 = vunpack.c.h.b16 %v194
    %v1800 = vunpack.c.l.b16 %v195
    %v1801 = vunpack.c.h.b16 %v195
    %v1802 = vunpack.c.l.b16 %v196
    %v1803 = vunpack.c.h.b16 %v196
    %v1804 = vunpack.c.l.b16 %v197
    %v1805 = vunpack.c.h.b16 %v197
    %v1806 = vunpack.c.l.b16 %v198
    %v1807 = vunpack.c.h.b16 %v198
    %v1808 = vunpack.c.l.b16 %v199
    %v1809 = vunpack.c.h.b16 %v199
    %v1810 = vunpack.c.l.b16 %v200
    %v1811 = vunpack.c.h.b16 %v200
    %v1812 = vunpack.c.l.b16 %v201
    %v1813 = vunpack.c.h.b16 %v201
    %v1814 = vunpack.c.l.b16 %v202
    %v1815 = vunpack.c.h.b16 %v202
    %v1816 = vunpack.c.l.b16 %v203
    %v1817 = vunpack.c.h.b16 %v203
    %v1818 = vunpack.c.l.b16 %v204
    %v1819 = vunpack.c.h.b16 %v204
    %v1820 = vunpack.c.l.b16 %v205
    %v1821 = vunpack.c.h.b16 %v205
    %v1822 = vunpack.c.l.b16 %v206
    %v1823 = vunpack.c.h.b16 %v206
    %v1824 = vunpack.c.l.b16 %v207
    %v1825 = vunpack.c.h.b16 %v207
    %v1826 = vunpack.c.l.b16 %v208
    %v1827 = vunpack.c.h.b16 %v208
    %v1828 = vunpack.c.l.b16 %v209
    %v1829 = vunpack.c.h.b16 %v209
    %v1830 = vunpack.c.l.b16 %v210
    %v1831 = vunpack.c.h.b16 %v210
    %v1832 = vunpack.c.l.b16 %v211
    %v1833 = vunpack.c.h.b16 %v211
    %v1834 = vunpack.c.l.b16 %v212
    %v1835 = vunpack.c.h.b16 %v212
    %v1836 = vunpack.c.l.b16 %v213
    %v1837 = vunpack.c.h.b16 %v213
    %v1838 = vunpack.c.l.b16 %v214
    %v1839 = vunpack.c.h.b16 %v214
    %v1840 = vunpack.c.l.b16 %v215
    %v1841 = vunpack.c.h.b16 %v215
    %v1842 = vunpack.c.l.b16 %v216
    %v1843 = vunpack.c.h.b16 %v216
    %v1844 = vunpack.c.l.b16 %v217
    %v1845 = vunpack.c.h.b16 %v217
    %v1846 = vunpack.c.l.b16 %v218
    %v1847 = vunpack.c.h.b16 %v218
    %v1848 = vunpack.c.l.b16 %v219
    %v1849 = vunpack.c.h.b16 %v219
    %v1850 = vunpack.c.l.b16 %v220
    %v1851 = vunpack.c.h.b16 %v220
    %v1852 = vunpack.c.l.b16 %v221
    %v1853 = vunpack.c.h.b16 %v221
    %v1854 = vunpack.c.l.b16 %v222
    %v1855 = vunpack.c.h.b16 %v222
    %v1856 = vunpack.c.l.b16 %v223
    %v1857 = vunpack.c.h.b16 %v223
    %v1858 = vunpack.c.l.b16 %v224
    %v1859 = vunpack.c.h.b16 %v224
    %v1860 = vunpack.c.l.b16 %v225
    %v1861 = vunpack.c.h.b16 %v225
    %v1862 = vunpack.c.l.b16 %v226
    %v1863 = vunpack.c.h.b16 %v226
    %v1864 = vunpack.c.l.b16 %v227
    %v1865 = vunpack.c.h.b16 %v227
    %v1866 = vunpack.c.l.b16 %v228
    %v1867 = vunpack.c.h.b16 %v228
    %v1868 = vunpack.c.l.b16 %v229
    %v1869 = vunpack.c.h.b16 %v229
    %v1870 = vunpack.c.l.b16 %v230
    %v1871 = vunpack.c.h.b16 %v230
    %v1872 = vunpack.c.l.b16 %v231
    %v1873 = vunpack.c.h.b16 %v231
    %v1874 = vunpack.c.l.b16 %v232
    %v1875 = vunpack.c.h.b16 %v232
    %v1876 = vunpack.c.l.b16 %v233
    %v1877 = vunpack.c.h.b16 %v233
    %v1878 = vunpack.c.l.b16 %v234
    %v1879 = vunpack.c.h.b16 %v234
    %v1880 = vunpack.c.l.b16 %v235
    %v1881 = vunpack.c.h.b16 %v235
    %v1882 = vunpack.c.l.b16 %v236
    %v1883 = vunpack.c.h.b16 %v236
    %v1884 = vunpack.c.l.b16 %v237
    %v1885 = vunpack.c.h.b16 %v237
    %v1886 = vunpack.c.l.b16 %v238
    %v1887 = vunpack.c.h.b16 %v238
    %v1888 = vunpack.c.l.b16 %v239
    %v1889 = vunpack.c.h.b16 %v239
    %v1890 = vunpack.c.l.b16 %v240
    %v1891 = vunpack.c.h.b16 %v240
    %v1892 = vunpack.c.l.b16 %v241
    %v1893 = vunpack.c.h.b16 %v241
    %v1894 = vunpack.c.l.b16 %v242
    %v1895 = vunpack.c.h.b16 %v242
    %v1896 = vunpack.c.l.b16 %v243
    %v1897 = vunpack.c.h.b16 %v243
    %v1898 = vunpack.c.l.b16 %v244
    %v1899 = vunpack.c.h.b16 %v244
    %v1900 = vunpack.c.l.b16 %v245
    %v1901 = vunpack.c.h.b16 %v245
    %v1902 = vunpack.c.l.b16 %v246
    %v1903 = vunpack.c.h.b16 %v246
    %v1904 = vunpack.c.l.b16 %v247
    %v1905 = vunpack.c.h.b16 %v247
    %v1906 = vunpack.c.l.b16 %v248
    %v1907 = vunpack.c.h.b16 %v248
    %v1908 = vunpack.c.l.b16 %v249
    %v1909 = vunpack.c.h.b16 %v249
    %v1910 = vunpack.c.l.b16 %v250
    %v1911 = vunpack.c.h.b16 %v250
    %v1912 = vunpack.c.l.b16 %v251
    %v1913 = vunpack.c.h.b16 %v251
    %v1914 = vunpack.c.l.b16 %v252
    %v1915 = vunpack.c.h.b16 %v252
    %v1916 = vunpack.c.l.b16 %v253
    %v1917 = vunpack.c.h.b16 %v253
    %v1918 = vunpack.c.l.b16 %v254
    %v1919 = vunpack.c.h.b16 %v254
    %v1920 = vunpack.c.l.b16 %v255
    %v1921 = vunpack.c.h.b16 %v255
    %v1922 = vunpack.c.l.b16 %v256
    %v1923 = vunpack.c.h.b16 %v256
    %v1924 = vunpack.c.l.b16 %v257
    %v1925 = vunpack.c.h.b16 %v257
    %v1926 = vunpack.c.l.b16 %v258
    %v1927 = vunpack.c.h.b16 %v258
    %v1928 = vunpack.c.l.b16 %v259
    %v1929 = vunpack.c.h.b16 %v259
    %v1930 = vunpack.c.l.b16 %v260
    %v1931 = vunpack.c.h.b16 %v260
    %v1932 = vunpack.c.l.b16 %v261
    %v1933 = vunpack.c.h.b16 %v261
    %v1934 = vunpack.c.l.b16 %v262
    %v1935 = vunpack.c.h.b16 %v262
    %v1936 = vunpack.c.l.b16 %v263
    %v1937 = vunpack.c.h.b16 %v263
    %v1938 = vunpack.c.l.b16 %v264
    %v1939 = vunpack.c.h.b16 %v264
    %v1940 = vunpack.c.l.b16 %v265
    %v1941 = vunpack.c.h.b16 %v265
    %v1942 = vunpack.c.l.b16 %v266
    %v1943 = vunpack.c.h.b16 %v266
    %v1944 = vunpack.c.l.b16 %v267
    %v1945 = vunpack.c.h.b16 %v267
    %v1946 = vunpack.c.l.b16 %v268
    %v1947 = vunpack.c.h.b16 %v268
    %v1948 = vunpack.c.l.b16 %v269
    %v1949 = vunpack.c.h.b16 %v269
    %v1950 = vunpack.c.l.b16 %v270
    %v1951 = vunpack.c.h.b16 %v270
    %v1952 = vunpack.c.l.b16 %v271
    %v1953 = vunpack.c.h.b16 %v271
    %v1954 = vunpack.c.l.b16 %v272
    %v1955 = vunpack.c.h.b16 %v272
    %v1956 = vunpack.c.l.b16 %v273
    %v1957 = vunpack.c.h.b16 %v273
    %v1958 = vunpack.c.l.b16 %v274
    %v1959 = vunpack.c.h.b16 %v274
    %v1960 = vunpack.c.l.b16 %v275
    %v1961 = vunpack.c.h.b16 %v275
    %v1962 = vunpack.c.l.b16 %v276
    %v1963 = vunpack.c.h.b16 %v276
    %v1964 = vunpack.c.l.b16 %v277
    %v1965 = vunpack.c.h.b16 %v277
    %v1966 = vunpack.c.l.b16 %v278
    %v1967 = vunpack.c.h.b16 %v278
    %v1968 = vunpack.c.l.b16 %v279
    %v1969 = vunpack.c.h.b16 %v279
    %v1970 = vunpack.c.l.b16 %v280
    %v1971 = vunpack.c.h.b16 %v280
    %v1972 = vunpack.c.l.b16 %v281
    %v1973 = vunpack.c.h.b16 %v281
    %v1974 = vunpack.c.l.b16 %v282
    %v1975 = vunpack.c.h.b16 %v282
    %v1976 = vunpack.c.l.b16 %v283
    %v1977 = vunpack.c.h.b16 %v283
    %v1978 = vunpack.c.l.b16 %v284
    %v1979 = vunpack.c.h.b16 %v284
    %v1980 = vunpack.c.l.b16 %v285
    %v1981 = vunpack.c.h.b16 %v285
    %v1982 = vunpack.c.l.b16 %v286
    %v1983 = vunpack.c.h.b16 %v286
    %v1984 = vunpack.c.l.b16 %v287
    %v1985 = vunpack.c.h.b16 %v287
    %v1986 = vunpack.c.l.b16 %v288
    %v1987 = vunpack.c.h.b16 %v288
    %v1988 = vunpack.c.l.b16 %v289
    %v1989 = vunpack.c.h.b16 %v289
    %v1990 = vunpack.c.l.b16 %v290
    %v1991 = vunpack.c.h.b16 %v290
    %v1992 = vunpack.c.l.b16 %v291
    %v1993 = vunpack.c.h.b16 %v291
    %v1994 = vunpack.c.l.b16 %v292
    %v1995 = vunpack.c.h.b16 %v292
    %v1996 = vunpack.c.l.b16 %v293
    %v1997 = vunpack.c.h.b16 %v293
    %v1998 = vunpack.c.l.b16 %v294
    %v1999 = vunpack.c.h.b16 %v294
    %v2000 = vunpack.c.l.b16 %v295
    %v2001 = vunpack.c.h.b16 %v295
    %v2002 = vunpack.c.l.b16 %v296
    %v2003 = vunpack.c.h.b16 %v296
    %v2004 = vunpack.c.l.b16 %v297
    %v2005 = vunpack.c.h.b16 %v297
    %v2006 = vunpack.c.l.b16 %v298
    %v2007 = vunpack.c.h.b16 %v298
    %v2008 = vunpack.c.l.b16 %v299
    %v2009 = vunpack.c.h.b16 %v299
    %v2010 = vunpack.c.l.b16 %v300
    %v2011 = vunpack.c.h.b16 %v300
    %v2012 = vunpack.c.l.b16 %v301
    %v2013 = vunpack.c.h.b16 %v301
    %v2014 = vunpack.c.l.b16 %v302
    %v2015 = vunpack.c.h.b16 %v302
    %v2016 = vunpack.c.l.b16 %v303
    %v2017 = vunpack.c.h.b16 %v303
    %v2018 = vunpack.c.l.b16 %v304
    %v2019 = vunpack.c.h.b16 %v304
    %v2020 = vunpack.c.l.b16 %v305
    %v2021 = vunpack.c.h.b16 %v305
    %v2022 = vunpack.c.l.b16 %v306
    %v2023 = vunpack.c.h.b16 %v306
    %v2024 = vunpack.c.l.b16 %v307
    %v2025 = vunpack.c.h.b16 %v307
    %v2026 = vunpack.c.l.b16 %v308
    %v2027 = vunpack.c.h.b16 %v308
    %v2028 = vunpack.c.l.b16 %v309
    %v2029 = vunpack.c.h.b16 %v309
    %v2030 = vunpack.c.l.b16 %v310
    %v2031 = vunpack.c.h.b16 %v310
    %v2032 = vunpack.c.l.b16 %v311
    %v2033 = vunpack.c.h.b16 %v311
    %v2034 = vunpack.c.l.b16 %v312
    %v2035 = vunpack.c.h.b16 %v312
    %v2036 = vunpack.c.l.b16 %v313
    %v2037 = vunpack.c.h.b16 %v313
    %v2038 = vunpack.c.l.b16 %v314
    %v2039 = vunpack.c.h.b16 %v314
    %v2040 = vunpack.c.l.b16 %v315
    %v2041 = vunpack.c.h.b16 %v315
    %v2042 = vunpack.c.l.b16 %v316
    %v2043 = vunpack.c.h.b16 %v316
    %v2044 = vunpack.c.l.b16 %v317
    %v2045 = vunpack.c.h.b16 %v317
    %v2046 = vunpack.c.l.b16 %v318
    %v2047 = vunpack.c.h.b16 %v318
    %v2048 = vunpack.c.l.b16 %v319
    %v2049 = vunpack.c.h.b16 %v319
    %v2050 = vunpack.c.l.b16 %v320
    %v2051 = vunpack.c.h.b16 %v320
    %v2052 = vunpack.c.l.b16 %v321
    %v2053 = vunpack.c.h.b16 %v321
    %v2054 = vunpack.c.l.b16 %v322
    %v2055 = vunpack.c.h.b16 %v322
    %v2056 = vunpack.c.l.b16 %v323
    %v2057 = vunpack.c.h.b16 %v323
    %v2058 = vunpack.c.l.b16 %v324
    %v2059 = vunpack.c.h.b16 %v324
    %v2060 = vunpack.c.l.b16 %v325
    %v2061 = vunpack.c.h.b16 %v325
    %v2062 = vunpack.c.l.b16 %v326
    %v2063 = vunpack.c.h.b16 %v326
    %v2064 = vunpack.c.l.b16 %v327
    %v2065 = vunpack.c.h.b16 %v327
    %v2066 = vunpack.c.l.b16 %v328
    %v2067 = vunpack.c.h.b16 %v328
    %v2068 = vunpack.c.l.b16 %v329
    %v2069 = vunpack.c.h.b16 %v329
    %v2070 = vunpack.c.l.b16 %v330
    %v2071 = vunpack.c.h.b16 %v330
    %v2072 = vunpack.c.l.b16 %v331
    %v2073 = vunpack.c.h.b16 %v331
    %v2074 = vunpack.c.l.b16 %v332
    %v2075 = vunpack.c.h.b16 %v332
    %v2076 = vunpack.c.l.b16 %v333
    %v2077 = vunpack.c.h.b16 %v333
    %v2078 = vunpack.c.l.b16 %v334
    %v2079 = vunpack.c.h.b16 %v334
    %v2080 = vunpack.c.l.b16 %v335
    %v2081 = vunpack.c.h.b16 %v335
    %v2082 = vunpack.c.l.b16 %v336
    %v2083 = vunpack.c.h.b16 %v336
    %v2084 = vunpack.c.l.b16 %v337
    %v2085 = vunpack.c.h.b16 %v337
    %v2086 = vunpack.c.l.b16 %v338
    %v2087 = vunpack.c.h.b16 %v338
    %v2088 = vunpack.c.l.b16 %v339
    %v2089 = vunpack.c.h.b16 %v339
    %v2090 = vunpack.c.l.b16 %v340
    %v2091 = vunpack.c.h.b16 %v340
    %v2092 = vunpack.c.l.b16 %v341
    %v2093 = vunpack.c.h.b16 %v341
    %v2094 = vunpack.c.l.b16 %v342
    %v2095 = vunpack.c.h.b16 %v342
    %v2096 = vunpack.c.l.b16 %v343
    %v2097 = vunpack.c.h.b16 %v343
    %v2098 = vunpack.c.l.b16 %v344
    %v2099 = vunpack.c.h.b16 %v344
    %v2100 = vunpack.c.l.b16 %v345
    %v2101 = vunpack.c.h.b16 %v345
    %v2102 = vunpack.c.l.b16 %v346
    %v2103 = vunpack.c.h.b16 %v346
    %v2104 = vunpack.c.l.b16 %v347
    %v2105 = vunpack.c.h.b16 %v347
    %v2106 = vunpack.c.l.b16 %v348
    %v2107 = vunpack.c.h.b16 %v348
    %v2108 = vunpack.c.l.b16 %v349
    %v2109 = vunpack.c.h.b16 %v349
    %v2110 = vunpack.c.l.b16 %v350
    %v2111 = vunpack.c.h.b16 %v350
    %v2112 = vunpack.c.l.b16 %v351
    %v2113 = vunpack.c.h.b16 %v351
    %v2114 = vunpack.c.l.b16 %v352
    %v2115 = vunpack.c.h.b16 %v352
    %v2116 = vunpack.c.l.b16 %v353
    %v2117 = vunpack.c.h.b16 %v353
    %v2118 = vunpack.c.l.b16 %v354
    %v2119 = vunpack.c.h.b16 %v354
    %v2120 = vunpack.c.l.b16 %v355
    %v2121 = vunpack.c.h.b16 %v355
    %v2122 = vunpack.c.l.b16 %v356
    %v2123 = vunpack.c.h.b16 %v356
    %v2124 = vunpack.c.l.b16 %v357
    %v2125 = vunpack.c.h.b16 %v357
    %v2126 = vunpack.c.l.b16 %v358
    %v2127 = vunpack.c.h.b16 %v358
    %v2128 = vunpack.c.l.b16 %v359
    %v2129 = vunpack.c.h.b16 %v359
    %v2130 = vunpack.c.l.b16 %v360
    %v2131 = vunpack.c.h.b16 %v360
    %v2132 = vunpack.c.l.b16 %v361
    %v2133 = vunpack.c.h.b16 %v361
    %v2134 = vunpack.c.l.b16 %v362
    %v2135 = vunpack.c.h.b16 %v362
    %v2136 = vunpack.c.l.b16 %v363
    %v2137 = vunpack.c.h.b16 %v363
    %v2138 = vunpack.c.l.b16 %v364
    %v2139 = vunpack.c.h.b16 %v364
    %v2140 = vunpack.c.l.b16 %v365
    %v2141 = vunpack.c.h.b16 %v365
    %v2142 = vunpack.c.l.b16 %v366
    %v2143 = vunpack.c.h.b16 %v366
    %v2144 = vunpack.c.l.b16 %v367
    %v2145 = vunpack.c.h.b16 %v367
    %v2146 = vunpack.c.l.b16 %v368
    %v2147 = vunpack.c.h.b16 %v368
    %v2148 = vunpack.c.l.b16 %v369
    %v2149 = vunpack.c.h.b16 %v369
    %v2150 = vunpack.c.l.b16 %v370
    %v2151 = vunpack.c.h.b16 %v370
    %v2152 = vunpack.c.l.b16 %v371
    %v2153 = vunpack.c.h.b16 %v371
    %v2154 = vunpack.c.l.b16 %v372
    %v2155 = vunpack.c.h.b16 %v372
    %v2156 = vunpack.c.l.b16 %v373
    %v2157 = vunpack.c.h.b16 %v373
    %v2158 = vunpack.c.l.b16 %v374
    %v2159 = vunpack.c.h.b16 %v374
    %v2160 = vunpack.c.l.b16 %v375
    %v2161 = vunpack.c.h.b16 %v375
    %v2162 = vunpack.c.l.b16 %v376
    %v2163 = vunpack.c.h.b16 %v376
    %v2164 = vunpack.c.l.b16 %v377
    %v2165 = vunpack.c.h.b16 %v377
    %v2166 = vunpack.c.l.b16 %v378
    %v2167 = vunpack.c.h.b16 %v378
    %v2168 = vunpack.c.l.b16 %v379
    %v2169 = vunpack.c.h.b16 %v379
    %v2170 = vunpack.c.l.b16 %v380
    %v2171 = vunpack.c.h.b16 %v380
    %v2172 = vunpack.c.l.b16 %v381
    %v2173 = vunpack.c.h.b16 %v381
    %v2174 = vunpack.c.l.b16 %v382
    %v2175 = vunpack.c.h.b16 %v382
    %v2176 = vunpack.c.l.b16 %v383
    %v2177 = vunpack.c.h.b16 %v383
    %v2178 = vunpack.c.l.b16 %v384
    %v2179 = vunpack.c.h.b16 %v384
    %v2180 = vunpack.c.l.b16 %v385
    %v2181 = vunpack.c.h.b16 %v385
    %v2182 = vunpack.c.l.b16 %v386
    %v2183 = vunpack.c.h.b16 %v386
    %v2184 = vunpack.c.l.b16 %v387
    %v2185 = vunpack.c.h.b16 %v387
    %v2186 = vunpack.c.l.b16 %v388
    %v2187 = vunpack.c.h.b16 %v388
    %v2188 = vunpack.c.l.b16 %v389
    %v2189 = vunpack.c.h.b16 %v389
    %v2190 = vunpack.c.l.b16 %v390
    %v2191 = vunpack.c.h.b16 %v390
    %v2192 = vunpack.c.l.b16 %v391
    %v2193 = vunpack.c.h.b16 %v391
    %v2194 = vunpack.c.l.b16 %v392
    %v2195 = vunpack.c.h.b16 %v392
    %v2196 = vunpack.c.l.b16 %v393
    %v2197 = vunpack.c.h.b16 %v393
    %v2198 = vunpack.c.l.b16 %v394
    %v2199 = vunpack.c.h.b16 %v394
    %v2200 = vunpack.c.l.b16 %v395
    %v2201 = vunpack.c.h.b16 %v395
    %v2202 = vunpack.c.l.b16 %v396
    %v2203 = vunpack.c.h.b16 %v396
    %v2204 = vunpack.c.l.b16 %v397
    %v2205 = vunpack.c.h.b16 %v397
    %v2206 = vunpack.c.l.b16 %v398
    %v2207 = vunpack.c.h.b16 %v398
    %v2208 = vunpack.c.l.b16 %v399
    %v2209 = vunpack.c.h.b16 %v399
    %v2210 = vunpack.c.l.b16 %v400
    %v2211 = vunpack.c.h.b16 %v400
    %v2212 = vunpack.c.l.b16 %v401
    %v2213 = vunpack.c.h.b16 %v401
    %v2214 = vunpack.c.l.b16 %v402
    %v2215 = vunpack.c.h.b16 %v402
    %v2216 = vunpack.c.l.b16 %v403
    %v2217 = vunpack.c.h.b16 %v403
    %v2218 = vunpack.c.l.b16 %v404
    %v2219 = vunpack.c.h.b16 %v404
    %v2220 = vunpack.c.l.b16 %v405
    %v2221 = vunpack.c.h.b16 %v405
    %v2222 = vunpack.c.l.b16 %v406
    %v2223 = vunpack.c.h.b16 %v406
    %v2224 = vunpack.c.l.b16 %v407
    %v2225 = vunpack.c.h.b16 %v407
    %v2226 = vunpack.c.l.b16 %v408
    %v2227 = vunpack.c.h.b16 %v408
    %v2228 = vunpack.c.l.b16 %v409
    %v2229 = vunpack.c.h.b16 %v409
    %v2230 = vunpack.c.l.b16 %v410
    %v2231 = vunpack.c.h.b16 %v410
    %v2232 = vunpack.c.l.b16 %v411
    %v2233 = vunpack.c.h.b16 %v411
    %v2234 = vunpack.c.l.b16 %v412
    %v2235 = vunpack.c.h.b16 %v412
    %v2236 = vunpack.c.l.b16 %v413
    %v2237 = vunpack.c.h.b16 %v413
    %v2238 = vunpack.c.l.b16 %v414
    %v2239 = vunpack.c.h.b16 %v414
    %v2240 = vunpack.c.l.b16 %v415
    %v2241 = vunpack.c.h.b16 %v415
    %v2242 = vunpack.c.l.b16 %v416
    %v2243 = vunpack.c.h.b16 %v416
    %v2244 = vunpack.c.l.b16 %v417
    %v2245 = vunpack.c.h.b16 %v417
    %v2246 = vunpack.c.l.b16 %v418
    %v2247 = vunpack.c.h.b16 %v418
    %v2248 = vunpack.c.l.b16 %v419
    %v2249 = vunpack.c.h.b16 %v419
    %v2250 = vunpack.c.l.b16 %v420
    %v2251 = vunpack.c.h.b16 %v420
    %v2252 = vunpack.c.l.b16 %v421
    %v2253 = vunpack.c.h.b16 %v421
    %v2254 = vunpack.c.l.b16 %v422
    %v2255 = vunpack.c.h.b16 %v422
    %v2256 = vunpack.c.l.b16 %v423
    %v2257 = vunpack.c.h.b16 %v423
    %v2258 = vunpack.c.l.b16 %v424
    %v2259 = vunpack.c.h.b16 %v424
    %v2260 = vunpack.c.l.b16 %v425
    %v2261 = vunpack.c.h.b16 %v425
    %v2262 = vunpack.c.l.b16 %v426
    %v2263 = vunpack.c.h.b16 %v426
    %v2264 = vunpack.c.l.b16 %v427
    %v2265 = vunpack.c.h.b16 %v427
    %v2266 = vunpack.c.l.b16 %v428
    %v2267 = vunpack.c.h.b16 %v428
    %v2268 = vunpack.c.l.b16 %v429
    %v2269 = vunpack.c.h.b16 %v429
    %v2270 = vunpack.c.l.b16 %v430
    %v2271 = vunpack.c.h.b16 %v430
    %v2272 = vunpack.c.l.b16 %v431
    %v2273 = vunpack.c.h.b16 %v431
    %v2274 = vunpack.c.l.b16 %v432
    %v2275 = vunpack.c.h.b16 %v432
    %v2276 = vunpack.c.l.b16 %v433
    %v2277 = vunpack.c.h.b16 %v433
    %v2278 = vunpack.c.l.b16 %v434
    %v2279 = vunpack.c.h.b16 %v434
    %v2280 = vunpack.c.l.b16 %v435
    %v2281 = vunpack.c.h.b16 %v435
    %v2282 = vunpack.c.l.b16 %v436
    %v2283 = vunpack.c.h.b16 %v436
    %v2284 = vunpack.c.l.b16 %v437
    %v2285 = vunpack.c.h.b16 %v437
    %v2286 = vunpack.c.l.b16 %v438
    %v2287 = vunpack.c.h.b16 %v438
    %v2288 = vunpack.c.l.b16 %v439
    %v2289 = vunpack.c.h.b16 %v439
    %v2290 = vunpack.c.l.b16 %v440
    %v2291 = vunpack.c.h.b16 %v440
    %v2292 = vunpack.c.l.b16 %v441
    %v2293 = vunpack.c.h.b16 %v441
    %v2294 = vunpack.c.l.b16 %v442
    %v2295 = vunpack.c.h.b16 %v442
    %v2296 = vunpack.c.l.b16 %v443
    %v2297 = vunpack.c.h.b16 %v443
    %v2298 = vunpack.c.l.b16 %v444
    %v2299 = vunpack.c.h.b16 %v444
    %v2300 = vunpack.c.l.b16 %v445
    %v2301 = vunpack.c.h.b16 %v445
    %v2302 = vunpack.c.l.b16 %v446
    %v2303 = vunpack.c.h.b16 %v446
    %v2304 = vunpack.c.l.b16 %v447
    %v2305 = vunpack.c.h.b16 %v447
    %v2306 = vunpack.c.l.b16 %v448
    %v2307 = vunpack.c.h.b16 %v448
    %v2308 = vunpack.c.l.b16 %v449
    %v2309 = vunpack.c.h.b16 %v449
    %v2310 = vunpack.c.l.b16 %v450
    %v2311 = vunpack.c.h.b16 %v450
    %v2312 = vunpack.c.l.b16 %v451
    %v2313 = vunpack.c.h.b16 %v451
    %v2314 = vunpack.c.l.b16 %v452
    %v2315 = vunpack.c.h.b16 %v452
    %v2316 = vunpack.c.l.b16 %v453
    %v2317 = vunpack.c.h.b16 %v453
    %v2318 = vunpack.c.l.b16 %v454
    %v2319 = vunpack.c.h.b16 %v454
    %v2320 = vunpack.c.l.b16 %v455
    %v2321 = vunpack.c.h.b16 %v455
    %v2322 = vunpack.c.l.b16 %v456
    %v2323 = vunpack.c.h.b16 %v456
    %v2324 = vunpack.c.l.b16 %v457
    %v2325 = vunpack.c.h.b16 %v457
    %v2326 = vunpack.c.l.b16 %v458
    %v2327 = vunpack.c.h.b16 %v458
    %v2328 = vunpack.c.l.b16 %v459
    %v2329 = vunpack.c.h.b16 %v459
    %v2330 = vunpack.c.l.b16 %v460
    %v2331 = vunpack.c.h.b16 %v460
    %v2332 = vunpack.c.l.b16 %v461
    %v2333 = vunpack.c.h.b16 %v461
    %v2334 = vunpack.c.l.b16 %v462
    %v2335 = vunpack.c.h.b16 %v462
    %v2336 = vunpack.c.l.b16 %v463
    %v2337 = vunpack.c.h.b16 %v463
    %v2338 = vunpack.c.l.b16 %v464
    %v2339 = vunpack.c.h.b16 %v464
    %v2340 = vunpack.c.l.b16 %v465
    %v2341 = vunpack.c.h.b16 %v465
    %v2342 = vunpack.c.l.b16 %v466
    %v2343 = vunpack.c.h.b16 %v466
    %v2344 = vunpack.c.l.b16 %v467
    %v2345 = vunpack.c.h.b16 %v467
    %v2346 = vunpack.c.l.b16 %v468
    %v2347 = vunpack.c.h.b16 %v468
    %v2348 = vunpack.c.l.b16 %v469
    %v2349 = vunpack.c.h.b16 %v469
    %v2350 = vunpack.c.l.b16 %v470
    %v2351 = vunpack.c.h.b16 %v470
    %v2352 = vunpack.c.l.b16 %v471
    %v2353 = vunpack.c.h.b16 %v471
    %v2354 = vunpack.c.l.b16 %v472
    %v2355 = vunpack.c.h.b16 %v472
    %v2356 = vunpack.c.l.b16 %v473
    %v2357 = vunpack.c.h.b16 %v473
    %v2358 = vunpack.c.l.b16 %v474
    %v2359 = vunpack.c.h.b16 %v474
    %v2360 = vunpack.c.l.b16 %v475
    %v2361 = vunpack.c.h.b16 %v475
    %v2362 = vunpack.c.l.b16 %v476
    %v2363 = vunpack.c.h.b16 %v476
    %v2364 = vunpack.c.l.b16 %v477
    %v2365 = vunpack.c.h.b16 %v477
    %v2366 = vunpack.c.l.b16 %v478
    %v2367 = vunpack.c.h.b16 %v478
    %v2368 = vunpack.c.l.b16 %v479
    %v2369 = vunpack.c.h.b16 %v479
    %v2370 = vunpack.c.l.b16 %v480
    %v2371 = vunpack.c.h.b16 %v480
    %v2372 = vunpack.c.l.b16 %v481
    %v2373 = vunpack.c.h.b16 %v481
    %v2374 = vunpack.c.l.b16 %v482
    %v2375 = vunpack.c.h.b16 %v482
    %v2376 = vunpack.c.l.b16 %v483
    %v2377 = vunpack.c.h.b16 %v483
    %v2378 = vunpack.c.l.b16 %v484
    %v2379 = vunpack.c.h.b16 %v484
    %v2380 = vunpack.c.l.b16 %v485
    %v2381 = vunpack.c.h.b16 %v485
    %v2382 = vunpack.c.l.b16 %v486
    %v2383 = vunpack.c.h.b16 %v486
    %v2384 = vunpack.c.l.b16 %v487
    %v2385 = vunpack.c.h.b16 %v487
    %v2386 = vunpack.c.l.b16 %v488
    %v2387 = vunpack.c.h.b16 %v488
    %v2388 = vunpack.c.l.b16 %v489
    %v2389 = vunpack.c.h.b16 %v489
    %v2390 = vunpack.c.l.b16 %v490
    %v2391 = vunpack.c.h.b16 %v490
    %v2392 = vunpack.c.l.b16 %v491
    %v2393 = vunpack.c.h.b16 %v491
    %v2394 = vunpack.c.l.b16 %v492
    %v2395 = vunpack.c.h.b16 %v492
    %v2396 = vunpack.c.l.b16 %v493
    %v2397 = vunpack.c.h.b16 %v493
    %v2398 = vunpack.c.l.b16 %v494
    %v2399 = vunpack.c.h.b16 %v494
    %v2400 = vunpack.c.l.b16 %v495
    %v2401 = vunpack.c.h.b16 %v495
    %v2402 = vunpack.c.l.b16 %v496
    %v2403 = vunpack.c.h.b16 %v496
    %v2404 = vunpack.c.l.b16 %v497
    %v2405 = vunpack.c.h.b16 %v497
    %v2406 = vunpack.c.l.b16 %v498
    %v2407 = vunpack.c.h.b16 %v498
    %v2408 = vunpack.c.l.b16 %v499
    %v2409 = vunpack.c.h.b16 %v499
    %v2410 = vunpack.c.l.b16 %v500
    %v2411 = vunpack.c.h.b16 %v500
    %v2412 = vunpack.c.l.b16 %v501
    %v2413 = vunpack.c.h.b16 %v501
    %v2414 = vunpack.c.l.b16 %v502
    %v2415 = vunpack.c.h.b16 %v502
    %v2416 = vunpack.c.l.b16 %v503
    %v2417 = vunpack.c.h.b16 %v503
    %v2418 = vunpack.c.l.b16 %v504
    %v2419 = vunpack.c.h.b16 %v504
    %v2420 = vunpack.c.l.b16 %v505
    %v2421 = vunpack.c.h.b16 %v505
    %v2422 = vunpack.c.l.b16 %v506
    %v2423 = vunpack.c.h.b16 %v506
    %v2424 = vunpack.c.l.b16 %v507
    %v2425 = vunpack.c.h.b16 %v507
    %v2426 = vunpack.c.l.b16 %v508
    %v2427 = vunpack.c.h.b16 %v508
    %v2428 = vunpack.c.l.b16 %v509
    %v2429 = vunpack.c.h.b16 %v509
    %v2430 = vunpack.c.l.b16 %v510
    %v2431 = vunpack.c.h.b16 %v510
    %v2432 = vunpack.c.l.b16 %v511
    %v2433 = vunpack.c.h.b16 %v511
    %v2434 = vunpack.c.l.b16 %v512
    %v2435 = vunpack.c.h.b16 %v512
    %v2436 = vunpack.c.l.b16 %v513
    %v2437 = vunpack.c.h.b16 %v513
    %v2438 = vunpack.c.l.b16 %v514
    %v2439 = vunpack.c.h.b16 %v514
    %v2440 = vunpack.c.l.b16 %v515
    %v2441 = vunpack.c.h.b16 %v515
    %v2442 = vunpack.c.l.b16 %v516
    %v2443 = vunpack.c.h.b16 %v516
    %v2444 = vunpack.c.l.b16 %v517
    %v2445 = vunpack.c.h.b16 %v517
    %v2446 = vunpack.c.l.b16 %v518
    %v2447 = vunpack.c.h.b16 %v518
    %v2448 = vunpack.c.l.b16 %v519
    %v2449 = vunpack.c.h.b16 %v519
    %v2450 = vunpack.c.l.b16 %v520
    %v2451 = vunpack.c.h.b16 %v520
    %v2452 = vunpack.c.l.b16 %v521
    %v2453 = vunpack.c.h.b16 %v521
    %v2454 = vunpack.c.l.b16 %v522
    %v2455 = vunpack.c.h.b16 %v522
    %v2456 = vunpack.c.l.b16 %v523
    %v2457 = vunpack.c.h.b16 %v523
    %v2458 = vunpack.c.l.b16 %v524
    %v2459 = vunpack.c.h.b16 %v524
    %v2460 = vunpack.c.l.b16 %v525
    %v2461 = vunpack.c.h.b16 %v525
    %v2462 = vunpack.c.l.b16 %v526
    %v2463 = vunpack.c.h.b16 %v526
    %v2464 = vunpack.c.l.b16 %v527
    %v2465 = vunpack.c.h.b16 %v527
    %v2466 = vunpack.c.l.b16 %v528
    %v2467 = vunpack.c.h.b16 %v528
    %v2468 = vunpack.c.l.b16 %v529
    %v2469 = vunpack.c.h.b16 %v529
    %v2470 = vunpack.c.l.b16 %v530
    %v2471 = vunpack.c.h.b16 %v530
    %v2472 = vunpack.c.l.b16 %v531
    %v2473 = vunpack.c.h.b16 %v531
    %v2474 = vunpack.c.l.b16 %v532
    %v2475 = vunpack.c.h.b16 %v532
    %v2476 = vunpack.c.l.b16 %v533
    %v2477 = vunpack.c.h.b16 %v533
    %v2478 = vunpack.c.l.b16 %v534
    %v2479 = vunpack.c.h.b16 %v534
    %v2480 = vunpack.c.l.b16 %v535
    %v2481 = vunpack.c.h.b16 %v535
    %v2482 = vunpack.c.l.b16 %v536
    %v2483 = vunpack.c.h.b16 %v536
    %v2484 = vunpack.c.l.b16 %v537
    %v2485 = vunpack.c.h.b16 %v537
    %v2486 = vunpack.c.l.b16 %v538
    %v2487 = vunpack.c.h.b16 %v538
    %v2488 = vunpack.c.l.b16 %v539
    %v2489 = vunpack.c.h.b16 %v539
    %v2490 = vunpack.c.l.b16 %v540
    %v2491 = vunpack.c.h.b16 %v540
    %v2492 = vunpack.c.l.b16 %v541
    %v2493 = vunpack.c.h.b16 %v541
    %v2494 = vunpack.c.l.b16 %v542
    %v2495 = vunpack.c.h.b16 %v542
    %v2496 = vunpack.c.l.b16 %v543
    %v2497 = vunpack.c.h.b16 %v543
    %v2498 = vunpack.c.l.b16 %v544
    %v2499 = vunpack.c.h.b16 %v544
    %v2500 = vunpack.c.l.b16 %v545
    %v2501 = vunpack.c.h.b16 %v545
    %v2502 = vunpack.c.l.b16 %v546
    %v2503 = vunpack.c.h.b16 %v546
    %v2504 = vunpack.c.l.b16 %v547
    %v2505 = vunpack.c.h.b16 %v547
    %v2506 = vunpack.c.l.b16 %v548
    %v2507 = vunpack.c.h.b16 %v548
    %v2508 = vunpack.c.l.b16 %v549
    %v2509 = vunpack.c.h.b16 %v549
    %v2510 = vunpack.c.l.b16 %v550
    %v2511 = vunpack.c.h.b16 %v550
    %v2512 = vunpack.c.l.b16 %v551
    %v2513 = vunpack.c.h.b16 %v551
    %v2514 = vunpack.c.l.b16 %v552
    %v2515 = vunpack.c.h.b16 %v552
    %v2516 = vunpack.c.l.b16 %v553
    %v2517 = vunpack.c.h.b16 %v553
    %v2518 = vunpack.c.l.b16 %v554
    %v2519 = vunpack.c.h.b16 %v554
    %v2520 = vunpack.c.l.b16 %v555
    %v2521 = vunpack.c.h.b16 %v555
    %v2522 = vunpack.c.l.b16 %v556
    %v2523 = vunpack.c.h.b16 %v556
    %v2524 = vunpack.c.l.b16 %v557
    %v2525 = vunpack.c.h.b16 %v557
    %v2526 = vunpack.c.l.b16 %v558
    %v2527 = vunpack.c.h.b16 %v558
    %v2528 = vunpack.c.l.b16 %v559
    %v2529 = vunpack.c.h.b16 %v559
    %v2530 = vunpack.c.l.b16 %v560
    %v2531 = vunpack.c.h.b16 %v560
    %v2532 = vunpack.c.l.b16 %v561
    %v2533 = vunpack.c.h.b16 %v561
    %v2534 = vunpack.c.l.b16 %v562
    %v2535 = vunpack.c.h.b16 %v562
    %v2536 = vunpack.c.l.b16 %v563
    %v2537 = vunpack.c.h.b16 %v563
    %v2538 = vunpack.c.l.b16 %v564
    %v2539 = vunpack.c.h.b16 %v564
    %v2540 = vunpack.c.l.b16 %v565
    %v2541 = vunpack.c.h.b16 %v565
    %v2542 = vunpack.c.l.b16 %v566
    %v2543 = vunpack.c.h.b16 %v566
    %v2544 = vunpack.c.l.b16 %v567
    %v2545 = vunpack.c.h.b16 %v567
    %v2546 = vunpack.c.l.b16 %v568
    %v2547 = vunpack.c.h.b16 %v568
    %v2548 = vunpack.c.l.b16 %v569
    %v2549 = vunpack.c.h.b16 %v569
    %v2550 = vunpack.c.l.b16 %v570
    %v2551 = vunpack.c.h.b16 %v570
    %v2552 = vunpack.c.l.b16 %v571
    %v2553 = vunpack.c.h.b16 %v571
    %v2554 = vunpack.c.l.b16 %v572
    %v2555 = vunpack.c.h.b16 %v572
    %v2556 = vunpack.c.l.b16 %v573
    %v2557 = vunpack.c.h.b16 %v573
    %v2558 = vunpack.c.l.b16 %v574
    %v2559 = vunpack.c.h.b16 %v574
    %v2560 = vunpack.c.l.b16 %v575
    %v2561 = vunpack.c.h.b16 %v575
    %v2562 = vunpack.c.l.b16 %v576
    %v2563 = vunpack.c.h.b16 %v576
    %v2564 = vunpack.c.l.b16 %v577
    %v2565 = vunpack.c.h.b16 %v577
    %v2566 = vunpack.c.l.b16 %v578
    %v2567 = vunpack.c.h.b16 %v578
    %v2568 = vunpack.c.l.b16 %v579
    %v2569 = vunpack.c.h.b16 %v579
    %v2570 = vunpack.c.l.b16 %v580
    %v2571 = vunpack.c.h.b16 %v580
    %v2572 = vunpack.c.l.b16 %v581
    %v2573 = vunpack.c.h.b16 %v581
    %v2574 = vunpack.c.l.b16 %v582
    %v2575 = vunpack.c.h.b16 %v582
    %v2576 = vunpack.c.l.b16 %v583
    %v2577 = vunpack.c.h.b16 %v583
    %v2578 = vunpack.c.l.b16 %v584
    %v2579 = vunpack.c.h.b16 %v584
    %v2580 = vunpack.c.l.b16 %v585
    %v2581 = vunpack.c.h.b16 %v585
    %v2582 = vunpack.c.l.b16 %v586
    %v2583 = vunpack.c.h.b16 %v586
    %v2584 = vunpack.c.l.b16 %v587
    %v2585 = vunpack.c.h.b16 %v587
    %v2586 = vunpack.c.l.b16 %v588
    %v2587 = vunpack.c.h.b16 %v588
    %v2588 = vunpack.c.l.b16 %v589
    %v2589 = vunpack.c.h.b16 %v589
    %v2590 = vunpack.c.l.b16 %v590
    %v2591 = vunpack.c.h.b16 %v590
    %v2592 = vunpack.c.l.b16 %v591
    %v2593 = vunpack.c.h.b16 %v591
    %v2594 = vunpack.c.l.b16 %v592
    %v2595 = vunpack.c.h.b16 %v592
    %v2596 = vunpack.c.l.b16 %v593
    %v2597 = vunpack.c.h.b16 %v593
    %v2598 = vunpack.c.l.b16 %v594
    %v2599 = vunpack.c.h.b16 %v594
    %v2600 = vunpack.c.l.b16 %v595
    %v2601 = vunpack.c.h.b16 %v595
    %v2602 = vunpack.c.l.b16 %v596
    %v2603 = vunpack.c.h.b16 %v596
    %v2604 = vunpack.c.l.b16 %v597
    %v2605 = vunpack.c.h.b16 %v597
    %v2606 = vunpack.c.l.b16 %v598
    %v2607 = vunpack.c.h.b16 %v598
    %v2608 = vunpack.c.l.b16 %v599
    %v2609 = vunpack.c.h.b16 %v599
    %v2610 = vunpack.c.l.b16 %v600
    %v2611 = vunpack.c.h.b16 %v600
    %v2612 = vunpack.c.l.b16 %v601
    %v2613 = vunpack.c.h.b16 %v601
    %v2614 = vunpack.c.l.b16 %v602
    %v2615 = vunpack.c.h.b16 %v602
    %v2616 = vunpack.c.l.b16 %v603
    %v2617 = vunpack.c.h.b16 %v603
    %v2618 = vunpack.c.l.b16 %v604
    %v2619 = vunpack.c.h.b16 %v604
    %v2620 = vunpack.c.l.b16 %v605
    %v2621 = vunpack.c.h.b16 %v605
    %v2622 = vunpack.c.l.b16 %v606
    %v2623 = vunpack.c.h.b16 %v606
    %v2624 = vunpack.c.l.b16 %v607
    %v2625 = vunpack.c.h.b16 %v607
    %v2626 = vunpack.c.l.b16 %v608
    %v2627 = vunpack.c.h.b16 %v608
    %v2628 = vunpack.c.l.b16 %v609
    %v2629 = vunpack.c.h.b16 %v609
    %v2630 = vunpack.c.l.b16 %v610
    %v2631 = vunpack.c.h.b16 %v610
    %v2632 = vunpack.c.l.b16 %v611
    %v2633 = vunpack.c.h.b16 %v611
    %v2634 = vunpack.c.l.b16 %v612
    %v2635 = vunpack.c.h.b16 %v612
    %v2636 = vunpack.c.l.b16 %v613
    %v2637 = vunpack.c.h.b16 %v613
    %v2638 = vunpack.c.l.b16 %v614
    %v2639 = vunpack.c.h.b16 %v614
    %v2640 = vunpack.c.l.b16 %v615
    %v2641 = vunpack.c.h.b16 %v615
    %v2642 = vunpack.c.l.b16 %v616
    %v2643 = vunpack.c.h.b16 %v616
    %v2644 = vunpack.c.l.b16 %v617
    %v2645 = vunpack.c.h.b16 %v617
    %v2646 = vunpack.c.l.b16 %v618
    %v2647 = vunpack.c.h.b16 %v618
    %v2648 = vunpack.c.l.b16 %v619
    %v2649 = vunpack.c.h.b16 %v619
    %v2650 = vunpack.c.l.b16 %v620
    %v2651 = vunpack.c.h.b16 %v620
    %v2652 = vunpack.c.l.b16 %v621
    %v2653 = vunpack.c.h.b16 %v621
    %v2654 = vunpack.c.l.b16 %v622
    %v2655 = vunpack.c.h.b16 %v622
    %v2656 = vunpack.c.l.b16 %v623
    %v2657 = vunpack.c.h.b16 %v623
    %v2658 = vunpack.c.l.b16 %v624
    %v2659 = vunpack.c.h.b16 %v624
    %v2660 = vunpack.c.l.b16 %v625
    %v2661 = vunpack.c.h.b16 %v625
    %v2662 = vunpack.c.l.b16 %v626
    %v2663 = vunpack.c.h.b16 %v626
    %v2664 = vunpack.c.l.b16 %v627
    %v2665 = vunpack.c.h.b16 %v627
    %v2666 = vunpack.c.l.b16 %v628
    %v2667 = vunpack.c.h.b16 %v628
    %v2668 = vunpack.c.l.b16 %v629
    %v2669 = vunpack.c.h.b16 %v629
    %v2670 = vunpack.c.l.b16 %v630
    %v2671 = vunpack.c.h.b16 %v630
    %v2672 = vunpack.c.l.b16 %v631
    %v2673 = vunpack.c.h.b16 %v631
    %v2674 = vunpack.c.l.b16 %v632
    %v2675 = vunpack.c.h.b16 %v632
    %v2676 = vunpack.c.l.b16 %v633
    %v2677 = vunpack.c.h.b16 %v633
    %v2678 = vunpack.c.l.b16 %v634
    %v2679 = vunpack.c.h.b16 %v634
    %v2680 = vunpack.c.l.b16 %v635
    %v2681 = vunpack.c.h.b16 %v635
    %v2682 = vunpack.c.l.b16 %v636
    %v2683 = vunpack.c.h.b16 %v636
    %v2684 = vunpack.c.l.b16 %v637
    %v2685 = vunpack.c.h.b16 %v637
    %v2686 = vunpack.c.l.b16 %v638
    %v2687 = vunpack.c.h.b16 %v638
    %v2688 = vunpack.c.l.b16 %v639
    %v2689 = vunpack.c.h.b16 %v639
    %v2690 = vunpack.c.l.b16 %v640
    %v2691 = vunpack.c.h.b16 %v640
    %v2692 = vunpack.c.l.b16 %v641
    %v2693 = vunpack.c.h.b16 %v641
    %v2694 = vunpack.c.l.b16 %v642
    %v2695 = vunpack.c.h.b16 %v642
    %v2696 = vunpack.c.l.b16 %v643
    %v2697 = vunpack.c.h.b16 %v643
    %v2698 = vunpack.c.l.b16 %v644
    %v2699 = vunpack.c.h.b16 %v644
    %v2700 = vunpack.c.l.b16 %v645
    %v2701 = vunpack.c.h.b16 %v645
    %v2702 = vunpack.c.l.b16 %v646
    %v2703 = vunpack.c.h.b16 %v646
    %v2704 = vunpack.c.l.b16 %v647
    %v2705 = vunpack.c.h.b16 %v647
    %v2706 = vunpack.c.l.b16 %v648
    %v2707 = vunpack.c.h.b16 %v648
    %v2708 = vunpack.c.l.b16 %v649
    %v2709 = vunpack.c.h.b16 %v649
    %v2710 = vunpack.c.l.b16 %v650
    %v2711 = vunpack.c.h.b16 %v650
    %v2712 = vunpack.c.l.b16 %v651
    %v2713 = vunpack.c.h.b16 %v651
    %v2714 = vunpack.c.l.b16 %v652
    %v2715 = vunpack.c.h.b16 %v652
    %v2716 = vunpack.c.l.b16 %v653
    %v2717 = vunpack.c.h.b16 %v653
    %v2718 = vunpack.c.l.b16 %v654
    %v2719 = vunpack.c.h.b16 %v654
    %v2720 = vunpack.c.l.b16 %v655
    %v2721 = vunpack.c.h.b16 %v655
    %v2722 = vunpack.c.l.b16 %v656
    %v2723 = vunpack.c.h.b16 %v656
    %v2724 = vunpack.c.l.b16 %v657
    %v2725 = vunpack.c.h.b16 %v657
    %v2726 = vunpack.c.l.b16 %v658
    %v2727 = vunpack.c.h.b16 %v658
    %v2728 = vunpack.c.l.b16 %v659
    %v2729 = vunpack.c.h.b16 %v659
    %v2730 = vunpack.c.l.b16 %v660
    %v2731 = vunpack.c.h.b16 %v660
    %v2732 = vunpack.c.l.b16 %v661
    %v2733 = vunpack.c.h.b16 %v661
    %v2734 = vunpack.c.l.b16 %v662
    %v2735 = vunpack.c.h.b16 %v662
    %v2736 = vunpack.c.l.b16 %v663
    %v2737 = vunpack.c.h.b16 %v663
    %v2738 = vunpack.c.l.b16 %v664
    %v2739 = vunpack.c.h.b16 %v664
    %v2740 = vunpack.c.l.b16 %v665
    %v2741 = vunpack.c.h.b16 %v665
    %v2742 = vunpack.c.l.b16 %v666
    %v2743 = vunpack.c.h.b16 %v666
    %v2744 = vunpack.c.l.b16 %v667
    %v2745 = vunpack.c.h.b16 %v667
    %v2746 = vunpack.c.l.b16 %v668
    %v2747 = vunpack.c.h.b16 %v668
    %v2748 = vunpack.c.l.b16 %v669
    %v2749 = vunpack.c.h.b16 %v669
    %v2750 = vunpack.c.l.b16 %v670
    %v2751 = vunpack.c.h.b16 %v670
    %v2752 = vunpack.c.l.b16 %v671
    %v2753 = vunpack.c.h.b16 %v671
    %v2754 = vunpack.c.l.b16 %v672
    %v2755 = vunpack.c.h.b16 %v672
    %v2756 = vunpack.c.l.b16 %v673
    %v2757 = vunpack.c.h.b16 %v673
    %v2758 = vunpack.c.l.b16 %v674
    %v2759 = vunpack.c.h.b16 %v674
    %v2760 = vunpack.c.l.b16 %v675
    %v2761 = vunpack.c.h.b16 %v675
    %v2762 = vunpack.c.l.b16 %v676
    %v2763 = vunpack.c.h.b16 %v676
    %v2764 = vunpack.c.l.b16 %v677
    %v2765 = vunpack.c.h.b16 %v677
    %v2766 = vunpack.c.l.b16 %v678
    %v2767 = vunpack.c.h.b16 %v678
    %v2768 = vunpack.c.l.b16 %v679
    %v2769 = vunpack.c.h.b16 %v679
    %v2770 = vunpack.c.l.b16 %v680
    %v2771 = vunpack.c.h.b16 %v680
    %v2772 = vunpack.c.l.b16 %v681
    %v2773 = vunpack.c.h.b16 %v681
    %v2774 = vunpack.c.l.b16 %v682
    %v2775 = vunpack.c.h.b16 %v682
    %v2776 = vunpack.c.l.b16 %v683
    %v2777 = vunpack.c.h.b16 %v683
    %v2778 = vunpack.c.l.b16 %v684
    %v2779 = vunpack.c.h.b16 %v684
    %v2780 = vunpack.c.l.b16 %v685
    %v2781 = vunpack.c.h.b16 %v685
    %v2782 = vunpack.c.l.b16 %v686
    %v2783 = vunpack.c.h.b16 %v686
    %v2784 = vunpack.c.l.b16 %v687
    %v2785 = vunpack.c.h.b16 %v687
    %v2786 = vunpack.c.l.b16 %v688
    %v2787 = vunpack.c.h.b16 %v688
    %v2788 = vunpack.c.l.b16 %v689
    %v2789 = vunpack.c.h.b16 %v689
    %v2790 = vunpack.c.l.b16 %v690
    %v2791 = vunpack.c.h.b16 %v690
    %v2792 = vunpack.c.l.b16 %v691
    %v2793 = vunpack.c.h.b16 %v691
    %v2794 = vunpack.c.l.b16 %v692
    %v2795 = vunpack.c.h.b16 %v692
    %v2796 = vunpack.c.l.b16 %v693
    %v2797 = vunpack.c.h.b16 %v693
    %v2798 = vunpack.c.l.b16 %v694
    %v2799 = vunpack.c.h.b16 %v694
    %v2800 = vunpack.c.l.b16 %v695
    %v2801 = vunpack.c.h.b16 %v695
    %v2802 = vunpack.c.l.b16 %v696
    %v2803 = vunpack.c.h.b16 %v696
    %v2804 = vunpack.c.l.b16 %v697
    %v2805 = vunpack.c.h.b16 %v697
    %v2806 = vunpack.c.l.b16 %v698
    %v2807 = vunpack.c.h.b16 %v698
    %v2808 = vunpack.c.l.b16 %v699
    %v2809 = vunpack.c.h.b16 %v699
    %v2810 = vunpack.c.l.b16 %v700
    %v2811 = vunpack.c.h.b16 %v700
    %v2812 = vunpack.c.l.b16 %v701
    %v2813 = vunpack.c.h.b16 %v701
    %v2814 = vunpack.c.l.b16 %v702
    %v2815 = vunpack.c.h.b16 %v702
    %v2816 = vunpack.c.l.b16 %v703
    %v2817 = vunpack.c.h.b16 %v703
    %v2818 = vunpack.c.l.b16 %v704
    %v2819 = vunpack.c.h.b16 %v704
    %v2820 = vunpack.c.l.b16 %v705
    %v2821 = vunpack.c.h.b16 %v705
    %v2822 = vunpack.c.l.b16 %v706
    %v2823 = vunpack.c.h.b16 %v706
    %v2824 = vunpack.c.l.b16 %v707
    %v2825 = vunpack.c.h.b16 %v707
    %v2826 = vunpack.c.l.b16 %v708
    %v2827 = vunpack.c.h.b16 %v708
    %v2828 = vunpack.c.l.b16 %v709
    %v2829 = vunpack.c.h.b16 %v709
    %v2830 = vunpack.c.l.b16 %v710
    %v2831 = vunpack.c.h.b16 %v710
    %v2832 = vunpack.c.l.b16 %v711
    %v2833 = vunpack.c.h.b16 %v711
    %v2834 = vunpack.c.l.b16 %v712
    %v2835 = vunpack.c.h.b16 %v712
    %v2836 = vunpack.c.l.b16 %v713
    %v2837 = vunpack.c.h.b16 %v713
    %v2838 = vunpack.c.l.b16 %v714
    %v2839 = vunpack.c.h.b16 %v714
    %v2840 = vunpack.c.l.b16 %v715
    %v2841 = vunpack.c.h.b16 %v715
    %v2842 = vunpack.c.l.b16 %v716
    %v2843 = vunpack.c.h.b16 %v716
    %v2844 = vunpack.c.l.b16 %v717
    %v2845 = vunpack.c.h.b16 %v717
    %v2846 = vunpack.c.l.b16 %v718
    %v2847 = vunpack.c.h.b16 %v718
    %v2848 = vunpack.c.l.b16 %v719
    %v2849 = vunpack.c.h.b16 %v719
    %v2850 = vunpack.c.l.b16 %v720
    %v2851 = vunpack.c.h.b16 %v720
    %v2852 = vunpack.c.l.b16 %v721
    %v2853 = vunpack.c.h.b16 %v721
    %v2854 = vunpack.c.l.b16 %v722
    %v2855 = vunpack.c.h.b16 %v722
    %v2856 = vunpack.c.l.b16 %v723
    %v2857 = vunpack.c.h.b16 %v723
    %v2858 = vunpack.c.l.b16 %v724
    %v2859 = vunpack.c.h.b16 %v724
    %v2860 = vunpack.c.l.b16 %v725
    %v2861 = vunpack.c.h.b16 %v725
    %v2862 = vunpack.c.l.b16 %v726
    %v2863 = vunpack.c.h.b16 %v726
    %v2864 = vunpack.c.l.b16 %v727
    %v2865 = vunpack.c.h.b16 %v727
    %v2866 = vunpack.c.l.b16 %v728
    %v2867 = vunpack.c.h.b16 %v728
    %v2868 = vunpack.c.l.b16 %v729
    %v2869 = vunpack.c.h.b16 %v729
    %v2870 = vunpack.c.l.b16 %v730
    %v2871 = vunpack.c.h.b16 %v730
    %v2872 = vunpack.c.l.b16 %v731
    %v2873 = vunpack.c.h.b16 %v731
    %v2874 = vunpack.c.l.b16 %v732
    %v2875 = vunpack.c.h.b16 %v732
    %v2876 = vunpack.c.l.b16 %v733
    %v2877 = vunpack.c.h.b16 %v733
    %v2878 = vunpack.c.l.b16 %v734
    %v2879 = vunpack.c.h.b16 %v734
    %v2880 = vunpack.c.l.b16 %v735
    %v2881 = vunpack.c.h.b16 %v735
    %v2882 = vunpack.c.l.b16 %v736
    %v2883 = vunpack.c.h.b16 %v736
    %v2884 = vunpack.c.l.b16 %v737
    %v2885 = vunpack.c.h.b16 %v737
    %v2886 = vunpack.c.l.b16 %v738
    %v2887 = vunpack.c.h.b16 %v738
    %v2888 = vunpack.c.l.b16 %v739
    %v2889 = vunpack.c.h.b16 %v739
    %v2890 = vunpack.c.l.b16 %v740
    %v2891 = vunpack.c.h.b16 %v740
    %v2892 = vunpack.c.l.b16 %v741
    %v2893 = vunpack.c.h.b16 %v741
    %v2894 = vunpack.c.l.b16 %v742
    %v2895 = vunpack.c.h.b16 %v742
    %v2896 = vunpack.c.l.b16 %v743
    %v2897 = vunpack.c.h.b16 %v743
    %v2898 = vunpack.c.l.b16 %v744
    %v2899 = vunpack.c.h.b16 %v744
    %v2900 = vunpack.c.l.b16 %v745
    %v2901 = vunpack.c.h.b16 %v745
    %v2902 = vunpack.c.l.b16 %v746
    %v2903 = vunpack.c.h.b16 %v746
    %v2904 = vunpack.c.l.b16 %v747
    %v2905 = vunpack.c.h.b16 %v747
    %v2906 = vunpack.c.l.b16 %v748
    %v2907 = vunpack.c.h.b16 %v748
    %v2908 = vunpack.c.l.b16 %v749
    %v2909 = vunpack.c.h.b16 %v749
    %v2910 = vunpack.c.l.b16 %v750
    %v2911 = vunpack.c.h.b16 %v750
    %v2912 = vunpack.c.l.b16 %v751
    %v2913 = vunpack.c.h.b16 %v751
    %v2914 = vunpack.c.l.b16 %v752
    %v2915 = vunpack.c.h.b16 %v752
    %v2916 = vunpack.c.l.b16 %v753
    %v2917 = vunpack.c.h.b16 %v753
    %v2918 = vunpack.c.l.b16 %v754
    %v2919 = vunpack.c.h.b16 %v754
    %v2920 = vunpack.c.l.b16 %v755
    %v2921 = vunpack.c.h.b16 %v755
    %v2922 = vunpack.c.l.b16 %v756
    %v2923 = vunpack.c.h.b16 %v756
    %v2924 = vunpack.c.l.b16 %v757
    %v2925 = vunpack.c.h.b16 %v757
    %v2926 = vunpack.c.l.b16 %v758
    %v2927 = vunpack.c.h.b16 %v758
    %v2928 = vunpack.c.l.b16 %v759
    %v2929 = vunpack.c.h.b16 %v759
    %v2930 = vunpack.c.l.b16 %v760
    %v2931 = vunpack.c.h.b16 %v760
    %v2932 = vunpack.c.l.b16 %v761
    %v2933 = vunpack.c.h.b16 %v761
    %v2934 = vunpack.c.l.b16 %v762
    %v2935 = vunpack.c.h.b16 %v762
    %v2936 = vunpack.c.l.b16 %v763
    %v2937 = vunpack.c.h.b16 %v763
    %v2938 = vunpack.c.l.b16 %v764
    %v2939 = vunpack.c.h.b16 %v764
    %v2940 = vpack.c.b16 %v1598, %v1596
    %v2941 = vpack.c.b16 %v1599, %v1597
    %v2942 = vpack.c.b16 %v1602, %v1600
    %v2943 = vpack.c.b16 %v1603, %v1601
    %v2944 = vpack.c.b16 %v1606, %v1604
    %v2945 = vpack.c.b16 %v1607, %v1605
    %v2946 = vpack.c.b16 %v1610, %v1608
    %v2947 = vpack.c.b16 %v1611, %v1609
    %v2948 = vpack.c.b16 %v1614, %v1612
    %v2949 = vpack.c.b16 %v1615, %v1613
    %v2950 = vpack.c.b16 %v1618, %v1616
    %v2951 = vpack.c.b16 %v1619, %v1617
    %v2952 = vpack.c.b16 %v1622, %v1620
    %v2953 = vpack.c.b16 %v1623, %v1621
    %v2954 = vpack.c.b16 %v1626, %v1624
    %v2955 = vpack.c.b16 %v1627, %v1625
    %v2956 = vpack.c.b16 %v1630, %v1628
    %v2957 = vpack.c.b16 %v1631, %v1629
    %v2958 = vpack.c.b16 %v1634, %v1632
    %v2959 = vpack.c.b16 %v1635, %v1633
    %v2960 = vpack.c.b16 %v1638, %v1636
    %v2961 = vpack.c.b16 %v1639, %v1637
    %v2962 = vpack.c.b16 %v1642, %v1640
    %v2963 = vpack.c.b16 %v1643, %v1641
    %v2964 = vpack.c.b16 %v1646, %v1644
    %v2965 = vpack.c.b16 %v1647, %v1645
    %v2966 = vpack.c.b16 %v1650, %v1648
    %v2967 = vpack.c.b16 %v1651, %v1649
    %v2968 = vpack.c.b16 %v1654, %v1652
    %v2969 = vpack.c.b16 %v1655, %v1653
    %v2970 = vpack.c.b16 %v1658, %v1656
    %v2971 = vpack.c.b16 %v1659, %v1657
    %v2972 = vpack.c.b16 %v1662, %v1660
    %v2973 = vpack.c.b16 %v1663, %v1661
    %v2974 = vpack.c.b16 %v1666, %v1664
    %v2975 = vpack.c.b16 %v1667, %v1665
    %v2976 = vpack.c.b16 %v1670, %v1668
    %v2977 = vpack.c.b16 %v1671, %v1669
    %v2978 = vpack.c.b16 %v1674, %v1672
    %v2979 = vpack.c.b16 %v1675, %v1673
    %v2980 = vpack.c.b16 %v1678, %v1676
    %v2981 = vpack.c.b16 %v1679, %v1677
    %v2982 = vpack.c.b16 %v1682, %v1680
    %v2983 = vpack.c.b16 %v1683, %v1681
    %v2984 = vpack.c.b16 %v1686, %v1684
    %v2985 = vpack.c.b16 %v1687, %v1685
    %v2986 = vpack.c.b16 %v1690, %v1688
    %v2987 = vpack.c.b16 %v1691, %v1689
    %v2988 = vpack.c.b16 %v1694, %v1692
    %v2989 = vpack.c.b16 %v1695, %v1693
    %v2990 = vpack.c.b16 %v1698, %v1696
    %v2991 = vpack.c.b16 %v1699, %v1697
    %v2992 = vpack.c.b16 %v1702, %v1700
    %v2993 = vpack.c.b16 %v1703, %v1701
    %v2994 = vpack.c.b16 %v1706, %v1704
    %v2995 = vpack.c.b16 %v1707, %v1705
    %v2996 = vpack.c.b16 %v1710, %v1708
    %v2997 = vpack.c.b16 %v1711, %v1709
    %v2998 = vpack.c.b16 %v1714, %v1712
    %v2999 = vpack.c.b16 %v1715, %v1713
    %v3000 = vpack.c.b16 %v1718, %v1716
    %v3001 = vpack.c.b16 %v1719, %v1717
    %v3002 = vpack.c.b16 %v1722, %v1720
    %v3003 = vpack.c.b16 %v1723, %v1721
    %v3004 = vpack.c.b16 %v1726, %v1724
    %v3005 = vpack.c.b16 %v1727, %v1725
    %v3006 = vpack.c.b16 %v1730, %v1728
    %v3007 = vpack.c.b16 %v1731, %v1729
    %v3008 = vpack.c.b16 %v1734, %v1732
    %v3009 = vpack.c.b16 %v1735, %v1733
    %v3010 = vpack.c.b16 %v1738, %v1736
    %v3011 = vpack.c.b16 %v1739, %v1737
    %v3012 = vpack.c.b16 %v1742, %v1740
    %v3013 = vpack.c.b16 %v1743, %v1741
    %v3014 = vpack.c.b16 %v1746, %v1744
    %v3015 = vpack.c.b16 %v1747, %v1745
    %v3016 = vpack.c.b16 %v1750, %v1748
    %v3017 = vpack.c.b16 %v1751, %v1749
    %v3018 = vpack.c.b16 %v1754, %v1752
    %v3019 = vpack.c.b16 %v1755, %v1753
    %v3020 = vpack.c.b16 %v1758, %v1756
    %v3021 = vpack.c.b16 %v1759, %v1757
    %v3022 = vpack.c.b16 %v1762, %v1760
    %v3023 = vpack.c.b16 %v1763, %v1761
    %v3024 = vpack.c.b16 %v1766, %v1764
    %v3025 = vpack.c.b16 %v1767, %v1765
    %v3026 = vpack.c.b16 %v1770, %v1768
    %v3027 = vpack.c.b16 %v1771, %v1769
    %v3028 = vpack.c.b16 %v1774, %v1772
    %v3029 = vpack.c.b16 %v1775, %v1773
    %v3030 = vpack.c.b16 %v1778, %v1776
    %v3031 = vpack.c.b16 %v1779, %v1777
    %v3032 = vpack.c.b16 %v1782, %v1780
    %v3033 = vpack.c.b16 %v1783, %v1781
    %v3034 = vpack.c.b16 %v1786, %v1784
    %v3035 = vpack.c.b16 %v1787, %v1785
    %v3036 = vpack.c.b16 %v1790, %v1788
    %v3037 = vpack.c.b16 %v1791, %v1789
    %v3038 = vpack.c.b16 %v1794, %v1792
    %v3039 = vpack.c.b16 %v1795, %v1793
    %v3040 = vpack.c.b16 %v1798, %v1796
    %v3041 = vpack.c.b16 %v1799, %v1797
    %v3042 = vpack.c.b16 %v1802, %v1800
    %v3043 = vpack.c.b16 %v1803, %v1801
    %v3044 = vpack.c.b16 %v1806, %v1804
    %v3045 = vpack.c.b16 %v1807, %v1805
    %v3046 = vpack.c.b16 %v1810, %v1808
    %v3047 = vpack.c.b16 %v1811, %v1809
    %v3048 = vpack.c.b16 %v1814, %v1812
    %v3049 = vpack.c.b16 %v1815, %v1813
    %v3050 = vpack.c.b16 %v1818, %v1816
    %v3051 = vpack.c.b16 %v1819, %v1817
    %v3052 = vpack.c.b16 %v1822, %v1820
    %v3053 = vpack.c.b16 %v1823, %v1821
    %v3054 = vpack.c.b16 %v1826, %v1824
    %v3055 = vpack.c.b16 %v1827, %v1825
    %v3056 = vpack.c.b16 %v1830, %v1828
    %v3057 = vpack.c.b16 %v1831, %v1829
    %v3058 = vpack.c.b16 %v1834, %v1832
    %v3059 = vpack.c.b16 %v1835, %v1833
    %v3060 = vpack.c.b16 %v1838, %v1836
    %v3061 = vpack.c.b16 %v1839, %v1837
    %v3062 = vpack.c.b16 %v1842, %v1840
    %v3063 = vpack.c.b16 %v1843, %v1841
    %v3064 = vpack.c.b16 %v1846, %v1844
    %v3065 = vpack.c.b16 %v1847, %v1845
    %v3066 = vpack.c.b16 %v1850, %v1848
    %v3067 = vpack.c.b16 %v1851, %v1849
    %v3068 = vpack.c.b16 %v1854, %v1852
    %v3069 = vpack.c.b16 %v1855, %v1853
    %v3070 = vpack.c.b16 %v1858, %v1856
    %v3071 = vpack.c.b16 %v1859, %v1857
    %v3072 = vpack.c.b16 %v1862, %v1860
    %v3073 = vpack.c.b16 %v1863, %v1861
    %v3074 = vpack.c.b16 %v1866, %v1864
    %v3075 = vpack.c.b16 %v1867, %v1865
    %v3076 = vpack.c.b16 %v1870, %v1868
    %v3077 = vpack.c.b16 %v1871, %v1869
    %v3078 = vpack.c.b16 %v1874, %v1872
    %v3079 = vpack.c.b16 %v1875, %v1873
    %v3080 = vpack.c.b16 %v1878, %v1876
    %v3081 = vpack.c.b16 %v1879, %v1877
    %v3082 = vpack.c.b16 %v1882, %v1880
    %v3083 = vpack.c.b16 %v1883, %v1881
    %v3084 = vpack.c.b16 %v1886, %v1884
    %v3085 = vpack.c.b16 %v1887, %v1885
    %v3086 = vpack.c.b16 %v1890, %v1888
    %v3087 = vpack.c.b16 %v1891, %v1889
    %v3088 = vpack.c.b16 %v1894, %v1892
    %v3089 = vpack.c.b16 %v1895, %v1893
    %v3090 = vpack.c.b16 %v1898, %v1896
    %v3091 = vpack.c.b16 %v1899, %v1897
    %v3092 = vpack.c.b16 %v1902, %v1900
    %v3093 = vpack.c.b16 %v1903, %v1901
    %v3094 = vpack.c.b16 %v1906, %v1904
    %v3095 = vpack.c.b16 %v1907, %v1905
    %v3096 = vpack.c.b16 %v1910, %v1908
    %v3097 = vpack.c.b16 %v1911, %v1909
    %v3098 = vpack.c.b16 %v1914, %v1912
    %v3099 = vpack.c.b16 %v1915, %v1913
    %v3100 = vpack.c.b16 %v1918, %v1916
    %v3101 = vpack.c.b16 %v1919, %v1917
    %v3102 = vpack.c.b16 %v1922, %v1920
    %v3103 = vpack.c.b16 %v1923, %v1921
    %v3104 = vpack.c.b16 %v1926, %v1924
    %v3105 = vpack.c.b16 %v1927, %v1925
    %v3106 = vpack.c.b16 %v1930, %v1928
    %v3107 = vpack.c.b16 %v1931, %v1929
    %v3108 = vpack.c.b16 %v1934, %v1932
    %v3109 = vpack.c.b16 %v1935, %v1933
    %v3110 = vpack.c.b16 %v1938, %v1936
    %v3111 = vpack.c.b16 %v1939, %v1937
    %v3112 = vpack.c.b16 %v1942, %v1940
    %v3113 = vpack.c.b16 %v1943, %v1941
    %v3114 = vpack.c.b16 %v1946, %v1944
    %v3115 = vpack.c.b16 %v1947, %v1945
    %v3116 = vpack.c.b16 %v1950, %v1948
    %v3117 = vpack.c.b16 %v1951, %v1949
    %v3118 = vpack.c.b16 %v1954, %v1952
    %v3119 = vpack.c.b16 %v1955, %v1953
    %v3120 = vpack.c.b16 %v1958, %v1956
    %v3121 = vpack.c.b16 %v1959, %v1957
    %v3122 = vpack.c.b16 %v1962, %v1960
    %v3123 = vpack.c.b16 %v1963, %v1961
    %v3124 = vpack.c.b16 %v1966, %v1964
    %v3125 = vpack.c.b16 %v1967, %v1965
    %v3126 = vpack.c.b16 %v1970, %v1968
    %v3127 = vpack.c.b16 %v1971, %v1969
    %v3128 = vpack.c.b16 %v1974, %v1972
    %v3129 = vpack.c.b16 %v1975, %v1973
    %v3130 = vpack.c.b16 %v1978, %v1976
    %v3131 = vpack.c.b16 %v1979, %v1977
    %v3132 = vpack.c.b16 %v1982, %v1980
    %v3133 = vpack.c.b16 %v1983, %v1981
    %v3134 = vpack.c.b16 %v1986, %v1984
    %v3135 = vpack.c.b16 %v1987, %v1985
    %v3136 = vpack.c.b16 %v1990, %v1988
    %v3137 = vpack.c.b16 %v1991, %v1989
    %v3138 = vpack.c.b16 %v1994, %v1992
    %v3139 = vpack.c.b16 %v1995, %v1993
    %v3140 = vpack.c.b16 %v1998, %v1996
    %v3141 = vpack.c.b16 %v1999, %v1997
    %v3142 = vpack.c.b16 %v2002, %v2000
    %v3143 = vpack.c.b16 %v2003, %v2001
    %v3144 = vpack.c.b16 %v2006, %v2004
    %v3145 = vpack.c.b16 %v2007, %v2005
    %v3146 = vpack.c.b16 %v2010, %v2008
    %v3147 = vpack.c.b16 %v2011, %v2009
    %v3148 = vpack.c.b16 %v2014, %v2012
    %v3149 = vpack.c.b16 %v2015, %v2013
    %v3150 = vpack.c.b16 %v2018, %v2016
    %v3151 = vpack.c.b16 %v2019, %v2017
    %v3152 = vpack.c.b16 %v2022, %v2020
    %v3153 = vpack.c.b16 %v2023, %v2021
    %v3154 = vpack.c.b16 %v2026, %v2024
    %v3155 = vpack.c.b16 %v2027, %v2025
    %v3156 = vpack.c.b16 %v2030, %v2028
    %v3157 = vpack.c.b16 %v2031, %v2029
    %v3158 = vpack.c.b16 %v2034, %v2032
    %v3159 = vpack.c.b16 %v2035, %v2033
    %v3160 = vpack.c.b16 %v2038, %v2036
    %v3161 = vpack.c.b16 %v2039, %v2037
    %v3162 = vpack.c.b16 %v2042, %v2040
    %v3163 = vpack.c.b16 %v2043, %v2041
    %v3164 = vpack.c.b16 %v2046, %v2044
    %v3165 = vpack.c.b16 %v2047, %v2045
    %v3166 = vpack.c.b16 %v2050, %v2048
    %v3167 = vpack.c.b16 %v2051, %v2049
    %v3168 = vpack.c.b16 %v2054, %v2052
    %v3169 = vpack.c.b16 %v2055, %v2053
    %v3170 = vpack.c.b16 %v2058, %v2056
    %v3171 = vpack.c.b16 %v2059, %v2057
    %v3172 = vpack.c.b16 %v2062, %v2060
    %v3173 = vpack.c.b16 %v2063, %v2061
    %v3174 = vpack.c.b16 %v2066, %v2064
    %v3175 = vpack.c.b16 %v2067, %v2065
    %v3176 = vpack.c.b16 %v2070, %v2068
    %v3177 = vpack.c.b16 %v2071, %v2069
    %v3178 = vpack.c.b16 %v2074, %v2072
    %v3179 = vpack.c.b16 %v2075, %v2073
    %v3180 = vpack.c.b16 %v2078, %v2076
    %v3181 = vpack.c.b16 %v2079, %v2077
    %v3182 = vpack.c.b16 %v2082, %v2080
    %v3183 = vpack.c.b16 %v2083, %v2081
    %v3184 = vpack.c.b16 %v2086, %v2084
    %v3185 = vpack.c.b16 %v2087, %v2085
    %v3186 = vpack.c.b16 %v2090, %v2088
    %v3187 = vpack.c.b16 %v2091, %v2089
    %v3188 = vpack.c.b16 %v2094, %v2092
    %v3189 = vpack.c.b16 %v2095, %v2093
    %v3190 = vpack.c.b16 %v2098, %v2096
    %v3191 = vpack.c.b16 %v2099, %v2097
    %v3192 = vpack.c.b16 %v2102, %v2100
    %v3193 = vpack.c.b16 %v2103, %v2101
    %v3194 = vpack.c.b16 %v2106, %v2104
    %v3195 = vpack.c.b16 %v2107, %v2105
    %v3196 = vpack.c.b16 %v2110, %v2108
    %v3197 = vpack.c.b16 %v2111, %v2109
    %v3198 = vpack.c.b16 %v2114, %v2112
    %v3199 = vpack.c.b16 %v2115, %v2113
    %v3200 = vpack.c.b16 %v2118, %v2116
    %v3201 = vpack.c.b16 %v2119, %v2117
    %v3202 = vpack.c.b16 %v2122, %v2120
    %v3203 = vpack.c.b16 %v2123, %v2121
    %v3204 = vpack.c.b16 %v2126, %v2124
    %v3205 = vpack.c.b16 %v2127, %v2125
    %v3206 = vpack.c.b16 %v2130, %v2128
    %v3207 = vpack.c.b16 %v2131, %v2129
    %v3208 = vpack.c.b16 %v2134, %v2132
    %v3209 = vpack.c.b16 %v2135, %v2133
    %v3210 = vpack.c.b16 %v2138, %v2136
    %v3211 = vpack.c.b16 %v2139, %v2137
    %v3212 = vpack.c.b16 %v2142, %v2140
    %v3213 = vpack.c.b16 %v2143, %v2141
    %v3214 = vpack.c.b16 %v2146, %v2144
    %v3215 = vpack.c.b16 %v2147, %v2145
    %v3216 = vpack.c.b16 %v2150, %v2148
    %v3217 = vpack.c.b16 %v2151, %v2149
    %v3218 = vpack.c.b16 %v2154, %v2152
    %v3219 = vpack.c.b16 %v2155, %v2153
    %v3220 = vpack.c.b16 %v2158, %v2156
    %v3221 = vpack.c.b16 %v2159, %v2157
    %v3222 = vpack.c.b16 %v2162, %v2160
    %v3223 = vpack.c.b16 %v2163, %v2161
    %v3224 = vpack.c.b16 %v2166, %v2164
    %v3225 = vpack.c.b16 %v2167, %v2165
    %v3226 = vpack.c.b16 %v2170, %v2168
    %v3227 = vpack.c.b16 %v2171, %v2169
    %v3228 = vpack.c.b16 %v2174, %v2172
    %v3229 = vpack.c.b16 %v2175, %v2173
    %v3230 = vpack.c.b16 %v2178, %v2176
    %v3231 = vpack.c.b16 %v2179, %v2177
    %v3232 = vpack.c.b16 %v2182, %v2180
    %v3233 = vpack.c.b16 %v2183, %v2181
    %v3234 = vpack.c.b16 %v2186, %v2184
    %v3235 = vpack.c.b16 %v2187, %v2185
    %v3236 = vpack.c.b16 %v2190, %v2188
    %v3237 = vpack.c.b16 %v2191, %v2189
    %v3238 = vpack.c.b16 %v2194, %v2192
    %v3239 = vpack.c.b16 %v2195, %v2193
    %v3240 = vpack.c.b16 %v2198, %v2196
    %v3241 = vpack.c.b16 %v2199, %v2197
    %v3242 = vpack.c.b16 %v2202, %v2200
    %v3243 = vpack.c.b16 %v2203, %v2201
    %v3244 = vpack.c.b16 %v2206, %v2204
    %v3245 = vpack.c.b16 %v2207, %v2205
    %v3246 = vpack.c.b16 %v2210, %v2208
    %v3247 = vpack.c.b16 %v2211, %v2209
    %v3248 = vpack.c.b16 %v2214, %v2212
    %v3249 = vpack.c.b16 %v2215, %v2213
    %v3250 = vpack.c.b16 %v2218, %v2216
    %v3251 = vpack.c.b16 %v2219, %v2217
    %v3252 = vpack.c.b16 %v2222, %v2220
    %v3253 = vpack.c.b16 %v2223, %v2221
    %v3254 = vpack.c.b16 %v2226, %v2224
    %v3255 = vpack.c.b16 %v2227, %v2225
    %v3256 = vpack.c.b16 %v2230, %v2228
    %v3257 = vpack.c.b16 %v2231, %v2229
    %v3258 = vpack.c.b16 %v2234, %v2232
    %v3259 = vpack.c.b16 %v2235, %v2233
    %v3260 = vpack.c.b16 %v2238, %v2236
    %v3261 = vpack.c.b16 %v2239, %v2237
    %v3262 = vpack.c.b16 %v2242, %v2240
    %v3263 = vpack.c.b16 %v2243, %v2241
    %v3264 = vpack.c.b16 %v2246, %v2244
    %v3265 = vpack.c.b16 %v2247, %v2245
    %v3266 = vpack.c.b16 %v2250, %v2248
    %v3267 = vpack.c.b16 %v2251, %v2249
    %v3268 = vpack.c.b16 %v2254, %v2252
    %v3269 = vpack.c.b16 %v2255, %v2253
    %v3270 = vpack.c.b16 %v2258, %v2256
    %v3271 = vpack.c.b16 %v2259, %v2257
    %v3272 = vpack.c.b16 %v2262, %v2260
    %v3273 = vpack.c.b16 %v2263, %v2261
    %v3274 = vpack.c.b16 %v2266, %v2264
    %v3275 = vpack.c.b16 %v2267, %v2265
    %v3276 = vpack.c.b16 %v2270, %v2268
    %v3277 = vpack.c.b16 %v2271, %v2269
    %v3278 = vpack.c.b16 %v2274, %v2272
    %v3279 = vpack.c.b16 %v2275, %v2273
    %v3280 = vpack.c.b16 %v2278, %v2276
    %v3281 = vpack.c.b16 %v2279, %v2277
    %v3282 = vpack.c.b16 %v2282, %v2280
    %v3283 = vpack.c.b16 %v2283, %v2281
    %v3284 = vpack.c.b16 %v2286, %v2284
    %v3285 = vpack.c.b16 %v2287, %v2285
    %v3286 = vpack.c.b16 %v2290, %v2288
    %v3287 = vpack.c.b16 %v2291, %v2289
    %v3288 = vpack.c.b16 %v2294, %v2292
    %v3289 = vpack.c.b16 %v2295, %v2293
    %v3290 = vpack.c.b16 %v2298, %v2296
    %v3291 = vpack.c.b16 %v2299, %v2297
    %v3292 = vpack.c.b16 %v2302, %v2300
    %v3293 = vpack.c.b16 %v2303, %v2301
    %v3294 = vpack.c.b16 %v2306, %v2304
    %v3295 = vpack.c.b16 %v2307, %v2305
    %v3296 = vpack.c.b16 %v2310, %v2308
    %v3297 = vpack.c.b16 %v2311, %v2309
    %v3298 = vpack.c.b16 %v2314, %v2312
    %v3299 = vpack.c.b16 %v2315, %v2313
    %v3300 = vpack.c.b16 %v2318, %v2316
    %v3301 = vpack.c.b16 %v2319, %v2317
    %v3302 = vpack.c.b16 %v2322, %v2320
    %v3303 = vpack.c.b16 %v2323, %v2321
    %v3304 = vpack.c.b16 %v2326, %v2324
    %v3305 = vpack.c.b16 %v2327, %v2325
    %v3306 = vpack.c.b16 %v2330, %v2328
    %v3307 = vpack.c.b16 %v2331, %v2329
    %v3308 = vpack.c.b16 %v2334, %v2332
    %v3309 = vpack.c.b16 %v2335, %v2333
    %v3310 = vpack.c.b16 %v2338, %v2336
    %v3311 = vpack.c.b16 %v2339, %v2337
    %v3312 = vpack.c.b16 %v2342, %v2340
    %v3313 = vpack.c.b16 %v2343, %v2341
    %v3314 = vpack.c.b16 %v2346, %v2344
    %v3315 = vpack.c.b16 %v2347, %v2345
    %v3316 = vpack.c.b16 %v2350, %v2348
    %v3317 = vpack.c.b16 %v2351, %v2349
    %v3318 = vpack.c.b16 %v2354, %v2352
    %v3319 = vpack.c.b16 %v2355, %v2353
    %v3320 = vpack.c.b16 %v2358, %v2356
    %v3321 = vpack.c.b16 %v2359, %v2357
    %v3322 = vpack.c.b16 %v2362, %v2360
    %v3323 = vpack.c.b16 %v2363, %v2361
    %v3324 = vpack.c.b16 %v2366, %v2364
    %v3325 = vpack.c.b16 %v2367, %v2365
    %v3326 = vpack.c.b16 %v2370, %v2368
    %v3327 = vpack.c.b16 %v2371, %v2369
    %v3328 = vpack.c.b16 %v2374, %v2372
    %v3329 = vpack.c.b16 %v2375, %v2373
    %v3330 = vpack.c.b16 %v2378, %v2376
    %v3331 = vpack.c.b16 %v2379, %v2377
    %v3332 = vpack.c.b16 %v2382, %v2380
    %v3333 = vpack.c.b16 %v2383, %v2381
    %v3334 = vpack.c.b16 %v2386, %v2384
    %v3335 = vpack.c.b16 %v2387, %v2385
    %v3336 = vpack.c.b16 %v2390, %v2388
    %v3337 = vpack.c.b16 %v2391, %v2389
    %v3338 = vpack.c.b16 %v2394, %v2392
    %v3339 = vpack.c.b16 %v2395, %v2393
    %v3340 = vpack.c.b16 %v2398, %v2396
    %v3341 = vpack.c.b16 %v2399, %v2397
    %v3342 = vpack.c.b16 %v2402, %v2400
    %v3343 = vpack.c.b16 %v2403, %v2401
    %v3344 = vpack.c.b16 %v2406, %v2404
    %v3345 = vpack.c.b16 %v2407, %v2405
    %v3346 = vpack.c.b16 %v2410, %v2408
    %v3347 = vpack.c.b16 %v2411, %v2409
    %v3348 = vpack.c.b16 %v2414, %v2412
    %v3349 = vpack.c.b16 %v2415, %v2413
    %v3350 = vpack.c.b16 %v2418, %v2416
    %v3351 = vpack.c.b16 %v2419, %v2417
    %v3352 = vpack.c.b16 %v2422, %v2420
    %v3353 = vpack.c.b16 %v2423, %v2421
    %v3354 = vpack.c.b16 %v2426, %v2424
    %v3355 = vpack.c.b16 %v2427, %v2425
    %v3356 = vpack.c.b16 %v2430, %v2428
    %v3357 = vpack.c.b16 %v2431, %v2429
    %v3358 = vpack.c.b16 %v2434, %v2432
    %v3359 = vpack.c.b16 %v2435, %v2433
    %v3360 = vpack.c.b16 %v2438, %v2436
    %v3361 = vpack.c.b16 %v2439, %v2437
    %v3362 = vpack.c.b16 %v2442, %v2440
    %v3363 = vpack.c.b16 %v2443, %v2441
    %v3364 = vpack.c.b16 %v2446, %v2444
    %v3365 = vpack.c.b16 %v2447, %v2445
    %v3366 = vpack.c.b16 %v2450, %v2448
    %v3367 = vpack.c.b16 %v2451, %v2449
    %v3368 = vpack.c.b16 %v2454, %v2452
    %v3369 = vpack.c.b16 %v2455, %v2453
    %v3370 = vpack.c.b16 %v2458, %v2456
    %v3371 = vpack.c.b16 %v2459, %v2457
    %v3372 = vpack.c.b16 %v2462, %v2460
    %v3373 = vpack.c.b16 %v2463, %v2461
    %v3374 = vpack.c.b16 %v2466, %v2464
    %v3375 = vpack.c.b16 %v2467, %v2465
    %v3376 = vpack.c.b16 %v2470, %v2468
    %v3377 = vpack.c.b16 %v2471, %v2469
    %v3378 = vpack.c.b16 %v2474, %v2472
    %v3379 = vpack.c.b16 %v2475, %v2473
    %v3380 = vpack.c.b16 %v2478, %v2476
    %v3381 = vpack.c.b16 %v2479, %v2477
    %v3382 = vpack.c.b16 %v2482, %v2480
    %v3383 = vpack.c.b16 %v2483, %v2481
    %v3384 = vpack.c.b16 %v2486, %v2484
    %v3385 = vpack.c.b16 %v2487, %v2485
    %v3386 = vpack.c.b16 %v2490, %v2488
    %v3387 = vpack.c.b16 %v2491, %v2489
    %v3388 = vpack.c.b16 %v2494, %v2492
    %v3389 = vpack.c.b16 %v2495, %v2493
    %v3390 = vpack.c.b16 %v2498, %v2496
    %v3391 = vpack.c.b16 %v2499, %v2497
    %v3392 = vpack.c.b16 %v2502, %v2500
    %v3393 = vpack.c.b16 %v2503, %v2501
    %v3394 = vpack.c.b16 %v2506, %v2504
    %v3395 = vpack.c.b16 %v2507, %v2505
    %v3396 = vpack.c.b16 %v2510, %v2508
    %v3397 = vpack.c.b16 %v2511, %v2509
    %v3398 = vpack.c.b16 %v2514, %v2512
    %v3399 = vpack.c.b16 %v2515, %v2513
    %v3400 = vpack.c.b16 %v2518, %v2516
    %v3401 = vpack.c.b16 %v2519, %v2517
    %v3402 = vpack.c.b16 %v2522, %v2520
    %v3403 = vpack.c.b16 %v2523, %v2521
    %v3404 = vpack.c.b16 %v2526, %v2524
    %v3405 = vpack.c.b16 %v2527, %v2525
    %v3406 = vpack.c.b16 %v2530, %v2528
    %v3407 = vpack.c.b16 %v2531, %v2529
    %v3408 = vpack.c.b16 %v2534, %v2532
    %v3409 = vpack.c.b16 %v2535, %v2533
    %v3410 = vpack.c.b16 %v2538, %v2536
    %v3411 = vpack.c.b16 %v2539, %v2537
    %v3412 = vpack.c.b16 %v2542, %v2540
    %v3413 = vpack.c.b16 %v2543, %v2541
    %v3414 = vpack.c.b16 %v2546, %v2544
    %v3415 = vpack.c.b16 %v2547, %v2545
    %v3416 = vpack.c.b16 %v2550, %v2548
    %v3417 = vpack.c.b16 %v2551, %v2549
    %v3418 = vpack.c.b16 %v2554, %v2552
    %v3419 = vpack.c.b16 %v2555, %v2553
    %v3420 = vpack.c.b16 %v2558, %v2556
    %v3421 = vpack.c.b16 %v2559, %v2557
    %v3422 = vpack.c.b16 %v2562, %v2560
    %v3423 = vpack.c.b16 %v2563, %v2561
    %v3424 = vpack.c.b16 %v2566, %v2564
    %v3425 = vpack.c.b16 %v2567, %v2565
    %v3426 = vpack.c.b16 %v2570, %v2568
    %v3427 = vpack.c.b16 %v2571, %v2569
    %v3428 = vpack.c.b16 %v2574, %v2572
    %v3429 = vpack.c.b16 %v2575, %v2573
    %v3430 = vpack.c.b16 %v2578, %v2576
    %v3431 = vpack.c.b16 %v2579, %v2577
    %v3432 = vpack.c.b16 %v2582, %v2580
    %v3433 = vpack.c.b16 %v2583, %v2581
    %v3434 = vpack.c.b16 %v2586, %v2584
    %v3435 = vpack.c.b16 %v2587, %v2585
    %v3436 = vpack.c.b16 %v2590, %v2588
    %v3437 = vpack.c.b16 %v2591, %v2589
    %v3438 = vpack.c.b16 %v2594, %v2592
    %v3439 = vpack.c.b16 %v2595, %v2593
    %v3440 = vpack.c.b16 %v2598, %v2596
    %v3441 = vpack.c.b16 %v2599, %v2597
    %v3442 = vpack.c.b16 %v2602, %v2600
    %v3443 = vpack.c.b16 %v2603, %v2601
    %v3444 = vpack.c.b16 %v2606, %v2604
    %v3445 = vpack.c.b16 %v2607, %v2605
    %v3446 = vpack.c.b16 %v2610, %v2608
    %v3447 = vpack.c.b16 %v2611, %v2609
    %v3448 = vpack.c.b16 %v2614, %v2612
    %v3449 = vpack.c.b16 %v2615, %v2613
    %v3450 = vpack.c.b16 %v2618, %v2616
    %v3451 = vpack.c.b16 %v2619, %v2617
    %v3452 = vpack.c.b16 %v2622, %v2620
    %v3453 = vpack.c.b16 %v2623, %v2621
    %v3454 = vpack.c.b16 %v2626, %v2624
    %v3455 = vpack.c.b16 %v2627, %v2625
    %v3456 = vpack.c.b16 %v2630, %v2628
    %v3457 = vpack.c.b16 %v2631, %v2629
    %v3458 = vpack.c.b16 %v2634, %v2632
    %v3459 = vpack.c.b16 %v2635, %v2633
    %v3460 = vpack.c.b16 %v2638, %v2636
    %v3461 = vpack.c.b16 %v2639, %v2637
    %v3462 = vpack.c.b16 %v2642, %v2640
    %v3463 = vpack.c.b16 %v2643, %v2641
    %v3464 = vpack.c.b16 %v2646, %v2644
    %v3465 = vpack.c.b16 %v2647, %v2645
    %v3466 = vpack.c.b16 %v2650, %v2648
    %v3467 = vpack.c.b16 %v2651, %v2649
    %v3468 = vpack.c.b16 %v2654, %v2652
    %v3469 = vpack.c.b16 %v2655, %v2653
    %v3470 = vpack.c.b16 %v2658, %v2656
    %v3471 = vpack.c.b16 %v2659, %v2657
    %v3472 = vpack.c.b16 %v2662, %v2660
    %v3473 = vpack.c.b16 %v2663, %v2661
    %v3474 = vpack.c.b16 %v2666, %v2664
    %v3475 = vpack.c.b16 %v2667, %v2665
    %v3476 = vpack.c.b16 %v2670, %v2668
    %v3477 = vpack.c.b16 %v2671, %v2669
    %v3478 = vpack.c.b16 %v2674, %v2672
    %v3479 = vpack.c.b16 %v2675, %v2673
    %v3480 = vpack.c.b16 %v2678, %v2676
    %v3481 = vpack.c.b16 %v2679, %v2677
    %v3482 = vpack.c.b16 %v2682, %v2680
    %v3483 = vpack.c.b16 %v2683, %v2681
    %v3484 = vpack.c.b16 %v2686, %v2684
    %v3485 = vpack.c.b16 %v2687, %v2685
    %v3486 = vpack.c.b16 %v2690, %v2688
    %v3487 = vpack.c.b16 %v2691, %v2689
    %v3488 = vpack.c.b16 %v2694, %v2692
    %v3489 = vpack.c.b16 %v2695, %v2693
    %v3490 = vpack.c.b16 %v2698, %v2696
    %v3491 = vpack.c.b16 %v2699, %v2697
    %v3492 = vpack.c.b16 %v2702, %v2700
    %v3493 = vpack.c.b16 %v2703, %v2701
    %v3494 = vpack.c.b16 %v2706, %v2704
    %v3495 = vpack.c.b16 %v2707, %v2705
    %v3496 = vpack.c.b16 %v2710, %v2708
    %v3497 = vpack.c.b16 %v2711, %v2709
    %v3498 = vpack.c.b16 %v2714, %v2712
    %v3499 = vpack.c.b16 %v2715, %v2713
    %v3500 = vpack.c.b16 %v2718, %v2716
    %v3501 = vpack.c.b16 %v2719, %v2717
    %v3502 = vpack.c.b16 %v2722, %v2720
    %v3503 = vpack.c.b16 %v2723, %v2721
    %v3504 = vpack.c.b16 %v2726, %v2724
    %v3505 = vpack.c.b16 %v2727, %v2725
    %v3506 = vpack.c.b16 %v2730, %v2728
    %v3507 = vpack.c.b16 %v2731, %v2729
    %v3508 = vpack.c.b16 %v2734, %v2732
    %v3509 = vpack.c.b16 %v2735, %v2733
    %v3510 = vpack.c.b16 %v2738, %v2736
    %v3511 = vpack.c.b16 %v2739, %v2737
    %v3512 = vpack.c.b16 %v2742, %v2740
    %v3513 = vpack.c.b16 %v2743, %v2741
    %v3514 = vpack.c.b16 %v2746, %v2744
    %v3515 = vpack.c.b16 %v2747, %v2745
    %v3516 = vpack.c.b16 %v2750, %v2748
    %v3517 = vpack.c.b16 %v2751, %v2749
    %v3518 = vpack.c.b16 %v2754, %v2752
    %v3519 = vpack.c.b16 %v2755, %v2753
    %v3520 = vpack.c.b16 %v2758, %v2756
    %v3521 = vpack.c.b16 %v2759, %v2757
    %v3522 = vpack.c.b16 %v2762, %v2760
    %v3523 = vpack.c.b16 %v2763, %v2761
    %v3524 = vpack.c.b16 %v2766, %v2764
    %v3525 = vpack.c.b16 %v2767, %v2765
    %v3526 = vpack.c.b16 %v2770, %v2768
    %v3527 = vpack.c.b16 %v2771, %v2769
    %v3528 = vpack.c.b16 %v2774, %v2772
    %v3529 = vpack.c.b16 %v2775, %v2773
    %v3530 = vpack.c.b16 %v2778, %v2776
    %v3531 = vpack.c.b16 %v2779, %v2777
    %v3532 = vpack.c.b16 %v2782, %v2780
    %v3533 = vpack.c.b16 %v2783, %v2781
    %v3534 = vpack.c.b16 %v2786, %v2784
    %v3535 = vpack.c.b16 %v2787, %v2785
    %v3536 = vpack.c.b16 %v2790, %v2788
    %v3537 = vpack.c.b16 %v2791, %v2789
    %v3538 = vpack.c.b16 %v2794, %v2792
    %v3539 = vpack.c.b16 %v2795, %v2793
    %v3540 = vpack.c.b16 %v2798, %v2796
    %v3541 = vpack.c.b16 %v2799, %v2797
    %v3542 = vpack.c.b16 %v2802, %v2800
    %v3543 = vpack.c.b16 %v2803, %v2801
    %v3544 = vpack.c.b16 %v2806, %v2804
    %v3545 = vpack.c.b16 %v2807, %v2805
    %v3546 = vpack.c.b16 %v2810, %v2808
    %v3547 = vpack.c.b16 %v2811, %v2809
    %v3548 = vpack.c.b16 %v2814, %v2812
    %v3549 = vpack.c.b16 %v2815, %v2813
    %v3550 = vpack.c.b16 %v2818, %v2816
    %v3551 = vpack.c.b16 %v2819, %v2817
    %v3552 = vpack.c.b16 %v2822, %v2820
    %v3553 = vpack.c.b16 %v2823, %v2821
    %v3554 = vpack.c.b16 %v2826, %v2824
    %v3555 = vpack.c.b16 %v2827, %v2825
    %v3556 = vpack.c.b16 %v2830, %v2828
    %v3557 = vpack.c.b16 %v2831, %v2829
    %v3558 = vpack.c.b16 %v2834, %v2832
    %v3559 = vpack.c.b16 %v2835, %v2833
    %v3560 = vpack.c.b16 %v2838, %v2836
    %v3561 = vpack.c.b16 %v2839, %v2837
    %v3562 = vpack.c.b16 %v2842, %v2840
    %v3563 = vpack.c.b16 %v2843, %v2841
    %v3564 = vpack.c.b16 %v2846, %v2844
    %v3565 = vpack.c.b16 %v2847, %v2845
    %v3566 = vpack.c.b16 %v2850, %v2848
    %v3567 = vpack.c.b16 %v2851, %v2849
    %v3568 = vpack.c.b16 %v2854, %v2852
    %v3569 = vpack.c.b16 %v2855, %v2853
    %v3570 = vpack.c.b16 %v2858, %v2856
    %v3571 = vpack.c.b16 %v2859, %v2857
    %v3572 = vpack.c.b16 %v2862, %v2860
    %v3573 = vpack.c.b16 %v2863, %v2861
    %v3574 = vpack.c.b16 %v2866, %v2864
    %v3575 = vpack.c.b16 %v2867, %v2865
    %v3576 = vpack.c.b16 %v2870, %v2868
    %v3577 = vpack.c.b16 %v2871, %v2869
    %v3578 = vpack.c.b16 %v2874, %v2872
    %v3579 = vpack.c.b16 %v2875, %v2873
    %v3580 = vpack.c.b16 %v2878, %v2876
    %v3581 = vpack.c.b16 %v2879, %v2877
    %v3582 = vpack.c.b16 %v2882, %v2880
    %v3583 = vpack.c.b16 %v2883, %v2881
    %v3584 = vpack.c.b16 %v2886, %v2884
    %v3585 = vpack.c.b16 %v2887, %v2885
    %v3586 = vpack.c.b16 %v2890, %v2888
    %v3587 = vpack.c.b16 %v2891, %v2889
    %v3588 = vpack.c.b16 %v2894, %v2892
    %v3589 = vpack.c.b16 %v2895, %v2893
    %v3590 = vpack.c.b16 %v2898, %v2896
    %v3591 = vpack.c.b16 %v2899, %v2897
    %v3592 = vpack.c.b16 %v2902, %v2900
    %v3593 = vpack.c.b16 %v2903, %v2901
    %v3594 = vpack.c.b16 %v2906, %v2904
    %v3595 = vpack.c.b16 %v2907, %v2905
    %v3596 = vpack.c.b16 %v2910, %v2908
    %v3597 = vpack.c.b16 %v2911, %v2909
    %v3598 = vpack.c.b16 %v2914, %v2912
    %v3599 = vpack.c.b16 %v2915, %v2913
    %v3600 = vpack.c.b16 %v2918, %v2916
    %v3601 = vpack.c.b16 %v2919, %v2917
    %v3602 = vpack.c.b16 %v2922, %v2920
    %v3603 = vpack.c.b16 %v2923, %v2921
    %v3604 = vpack.c.b16 %v2926, %v2924
    %v3605 = vpack.c.b16 %v2927, %v2925
    %v3606 = vpack.c.b16 %v2930, %v2928
    %v3607 = vpack.c.b16 %v2931, %v2929
    %v3608 = vpack.c.b16 %v2934, %v2932
    %v3609 = vpack.c.b16 %v2935, %v2933
    %v3610 = vpack.c.b16 %v2938, %v2936
    %v3611 = vpack.c.b16 %v2939, %v2937
    %4284 = vmatprep.subr.bf16.mxu0 %v2941
    %4285 = vmatpush1.bf16.msra.mxu0 %v2940
    %4286 = vmatprep.subr.bf16.mxu0 %v2943
    %4287 = vmatpush1.bf16.msra.mxu0 %v2942
    %4288 = vmatprep.subr.bf16.mxu0 %v2945
    %4289 = vmatpush1.bf16.msra.mxu0 %v2944
    %4290 = vmatprep.subr.bf16.mxu0 %v2947
    %4291 = vmatpush1.bf16.msra.mxu0 %v2946
    %4292 = vmatprep.subr.bf16.mxu0 %v2949
    %4293 = vmatpush1.bf16.msra.mxu0 %v2948
    %4294 = vmatprep.subr.bf16.mxu0 %v2951
    %4295 = vmatpush1.bf16.msra.mxu0 %v2950
    %4296 = vmatprep.subr.bf16.mxu0 %v2953
    %4297 = vmatpush1.bf16.msra.mxu0 %v2952
    %4298 = vmatprep.subr.bf16.mxu0 %v2955
    %4299 = vmatpush1.bf16.msra.mxu0 %v2954
    %4300 = vmatprep.subr.bf16.mxu0 %v2957
    %4301 = vmatpush1.bf16.msra.mxu0 %v2956
    %4302 = vmatprep.subr.bf16.mxu0 %v2959
    %4303 = vmatpush1.bf16.msra.mxu0 %v2958
    %4304 = vmatprep.subr.bf16.mxu0 %v2961
    %4305 = vmatpush1.bf16.msra.mxu0 %v2960
    %4306 = vmatprep.subr.bf16.mxu0 %v2963
    %4307 = vmatpush1.bf16.msra.mxu0 %v2962
    %4308 = vmatprep.subr.bf16.mxu0 %v2965
    %4309 = vmatpush1.bf16.msra.mxu0 %v2964
    %4310 = vmatprep.subr.bf16.mxu0 %v2967
    %4311 = vmatpush1.bf16.msra.mxu0 %v2966
    %4312 = vmatprep.subr.bf16.mxu0 %v2969
    %4313 = vmatpush1.bf16.msra.mxu0 %v2968
    %4314 = vmatprep.subr.bf16.mxu0 %v2971
    %4315 = vmatpush1.bf16.msra.mxu0 %v2970
    %4316 = vmatprep.mubr.bf16.mxu0 %v841
    %4317 = vmatmul.mubr.bf16.gmra.mrb[0].mxu0 %v840
    %v4318 = vpop.f32.mrb[0].mxu0
    %v4319 = vadd.f32 %v770, %v4318
    %v4320 = vpop.f32.mrb[0].mxu0
    %v4321 = vadd.f32 %v774, %v4320
    %v4322 = vpop.f32.mrb[0].mxu0
    %v4323 = vpop.f32.mrb[0].mxu0
    %4324 = vdwg.mxu0
    %4325 = vmatprep.subr.bf16.mxu0 %v2973
    %4326 = vmatpush1.bf16.msra.mxu0 %v2972
    %4327 = vmatprep.subr.bf16.mxu0 %v2975
    %4328 = vmatpush1.bf16.msra.mxu0 %v2974
    %4329 = vmatprep.subr.bf16.mxu0 %v2977
    %4330 = vmatpush1.bf16.msra.mxu0 %v2976
    %4331 = vmatprep.subr.bf16.mxu0 %v2979
    %4332 = vmatpush1.bf16.msra.mxu0 %v2978
    %4333 = vmatprep.subr.bf16.mxu0 %v2981
    %4334 = vmatpush1.bf16.msra.mxu0 %v2980
    %4335 = vmatprep.subr.bf16.mxu0 %v2983
    %4336 = vmatpush1.bf16.msra.mxu0 %v2982
    %4337 = vmatprep.subr.bf16.mxu0 %v2985
    %4338 = vmatpush1.bf16.msra.mxu0 %v2984
    %4339 = vmatprep.subr.bf16.mxu0 %v2987
    %4340 = vmatpush1.bf16.msra.mxu0 %v2986
    %4341 = vmatprep.subr.bf16.mxu0 %v2989
    %4342 = vmatpush1.bf16.msra.mxu0 %v2988
    %4343 = vmatprep.subr.bf16.mxu0 %v2991
    %4344 = vmatpush1.bf16.msra.mxu0 %v2990
    %4345 = vmatprep.subr.bf16.mxu0 %v2993
    %4346 = vmatpush1.bf16.msra.mxu0 %v2992
    %4347 = vmatprep.subr.bf16.mxu0 %v2995
    %4348 = vmatpush1.bf16.msra.mxu0 %v2994
    %4349 = vmatprep.subr.bf16.mxu0 %v2997
    %4350 = vmatpush1.bf16.msra.mxu0 %v2996
    %4351 = vmatprep.subr.bf16.mxu0 %v2999
    %4352 = vmatpush1.bf16.msra.mxu0 %v2998
    %4353 = vmatprep.subr.bf16.mxu0 %v3001
    %4354 = vmatpush1.bf16.msra.mxu0 %v3000
    %4355 = vmatprep.subr.bf16.mxu0 %v3003
    %4356 = vmatpush1.bf16.msra.mxu0 %v3002
    %4357 = vmatprep.mubr.bf16.mxu0 %v843
    %4358 = vmatmul.mubr.bf16.gmra.mrb[0].mxu0 %v842
    %v4359 = vpop.f32.mrb[0].mxu0
    %v4360 = vadd.f32 %v4319, %v4359
    %v4361 = vpop.f32.mrb[0].mxu0
    %v4362 = vadd.f32 %v4321, %v4361
    %v4363 = vpop.f32.mrb[0].mxu0
    %v4364 = vpop.f32.mrb[0].mxu0
    %4365 = vdwg.mxu0
    %4366 = vmatprep.subr.bf16.mxu0 %v3005
    %4367 = vmatpush1.bf16.msra.mxu0 %v3004
    %4368 = vmatprep.subr.bf16.mxu0 %v3007
    %4369 = vmatpush1.bf16.msra.mxu0 %v3006
    %4370 = vmatprep.subr.bf16.mxu0 %v3009
    %4371 = vmatpush1.bf16.msra.mxu0 %v3008
    %4372 = vmatprep.subr.bf16.mxu0 %v3011
    %4373 = vmatpush1.bf16.msra.mxu0 %v3010
    %4374 = vmatprep.subr.bf16.mxu0 %v3013
    %4375 = vmatpush1.bf16.msra.mxu0 %v3012
    %4376 = vmatprep.subr.bf16.mxu0 %v3015
    %4377 = vmatpush1.bf16.msra.mxu0 %v3014
    %4378 = vmatprep.subr.bf16.mxu0 %v3017
    %4379 = vmatpush1.bf16.msra.mxu0 %v3016
    %4380 = vmatprep.subr.bf16.mxu0 %v3019
    %4381 = vmatpush1.bf16.msra.mxu0 %v3018
    %4382 = vmatprep.subr.bf16.mxu0 %v3021
    %4383 = vmatpush1.bf16.msra.mxu0 %v3020
    %4384 = vmatprep.subr.bf16.mxu0 %v3023
    %4385 = vmatpush1.bf16.msra.mxu0 %v3022
    %4386 = vmatprep.subr.bf16.mxu0 %v3025
    %4387 = vmatpush1.bf16.msra.mxu0 %v3024
    %4388 = vmatprep.subr.bf16.mxu0 %v3027
    %4389 = vmatpush1.bf16.msra.mxu0 %v3026
    %4390 = vmatprep.subr.bf16.mxu0 %v3029
    %4391 = vmatpush1.bf16.msra.mxu0 %v3028
    %4392 = vmatprep.subr.bf16.mxu0 %v3031
    %4393 = vmatpush1.bf16.msra.mxu0 %v3030
    %4394 = vmatprep.subr.bf16.mxu0 %v3033
    %4395 = vmatpush1.bf16.msra.mxu0 %v3032
    %4396 = vmatprep.subr.bf16.mxu0 %v3035
    %4397 = vmatpush1.bf16.msra.mxu0 %v3034
    %4398 = vmatprep.mubr.bf16.mxu0 %v845
    %4399 = vmatmul.mubr.bf16.gmra.mrb[0].mxu0 %v844
    %v4400 = vpop.f32.mrb[0].mxu0
    %v4401 = vadd.f32 %v4360, %v4400
    %v4402 = vpop.f32.mrb[0].mxu0
    %v4403 = vadd.f32 %v4362, %v4402
    %v4404 = vpop.f32.mrb[0].mxu0
    %v4405 = vpop.f32.mrb[0].mxu0
    %4406 = vdwg.mxu0
    %4407 = vmatprep.subr.bf16.mxu0 %v3037
    %4408 = vmatpush1.bf16.msra.mxu0 %v3036
    %4409 = vmatprep.subr.bf16.mxu0 %v3039
    %4410 = vmatpush1.bf16.msra.mxu0 %v3038
    %4411 = vmatprep.subr.bf16.mxu0 %v3041
    %4412 = vmatpush1.bf16.msra.mxu0 %v3040
    %4413 = vmatprep.subr.bf16.mxu0 %v3043
    %4414 = vmatpush1.bf16.msra.mxu0 %v3042
    %4415 = vmatprep.subr.bf16.mxu0 %v3045
    %4416 = vmatpush1.bf16.msra.mxu0 %v3044
    %4417 = vmatprep.subr.bf16.mxu0 %v3047
    %4418 = vmatpush1.bf16.msra.mxu0 %v3046
    %4419 = vmatprep.subr.bf16.mxu0 %v3049
    %4420 = vmatpush1.bf16.msra.mxu0 %v3048
    %4421 = vmatprep.subr.bf16.mxu0 %v3051
    %4422 = vmatpush1.bf16.msra.mxu0 %v3050
    %4423 = vmatprep.subr.bf16.mxu0 %v3053
    %4424 = vmatpush1.bf16.msra.mxu0 %v3052
    %4425 = vmatprep.subr.bf16.mxu0 %v3055
    %4426 = vmatpush1.bf16.msra.mxu0 %v3054
    %4427 = vmatprep.subr.bf16.mxu0 %v3057
    %4428 = vmatpush1.bf16.msra.mxu0 %v3056
    %4429 = vmatprep.subr.bf16.mxu0 %v3059
    %4430 = vmatpush1.bf16.msra.mxu0 %v3058
    %4431 = vmatprep.subr.bf16.mxu0 %v3061
    %4432 = vmatpush1.bf16.msra.mxu0 %v3060
    %4433 = vmatprep.subr.bf16.mxu0 %v3063
    %4434 = vmatpush1.bf16.msra.mxu0 %v3062
    %4435 = vmatprep.subr.bf16.mxu0 %v3065
    %4436 = vmatpush1.bf16.msra.mxu0 %v3064
    %4437 = vmatprep.subr.bf16.mxu0 %v3067
    %4438 = vmatpush1.bf16.msra.mxu0 %v3066
    %4439 = vmatprep.mubr.bf16.mxu0 %v847
    %4440 = vmatmul.mubr.bf16.gmra.mrb[0].mxu0 %v846
    %v4441 = vpop.f32.mrb[0].mxu0
    %v4442 = vadd.f32 %v4401, %v4441
    %v4443 = vpop.f32.mrb[0].mxu0
    %v4444 = vadd.f32 %v4403, %v4443
    %v4445 = vpop.f32.mrb[0].mxu0
    %v4446 = vpop.f32.mrb[0].mxu0
    %4447 = vdwg.mxu0
    %4448 = vmatprep.subr.bf16.mxu0 %v3069
    %4449 = vmatpush1.bf16.msra.mxu0 %v3068
    %4450 = vmatprep.subr.bf16.mxu0 %v3071
    %4451 = vmatpush1.bf16.msra.mxu0 %v3070
    %4452 = vmatprep.subr.bf16.mxu0 %v3073
    %4453 = vmatpush1.bf16.msra.mxu0 %v3072
    %4454 = vmatprep.subr.bf16.mxu0 %v3075
    %4455 = vmatpush1.bf16.msra.mxu0 %v3074
    %4456 = vmatprep.subr.bf16.mxu0 %v3077
    %4457 = vmatpush1.bf16.msra.mxu0 %v3076
    %4458 = vmatprep.subr.bf16.mxu0 %v3079
    %4459 = vmatpush1.bf16.msra.mxu0 %v3078
    %4460 = vmatprep.subr.bf16.mxu0 %v3081
    %4461 = vmatpush1.bf16.msra.mxu0 %v3080
    %4462 = vmatprep.subr.bf16.mxu0 %v3083
    %4463 = vmatpush1.bf16.msra.mxu0 %v3082
    %4464 = vmatprep.subr.bf16.mxu0 %v3085
    %4465 = vmatpush1.bf16.msra.mxu0 %v3084
    %4466 = vmatprep.subr.bf16.mxu0 %v3087
    %4467 = vmatpush1.bf16.msra.mxu0 %v3086
    %4468 = vmatprep.subr.bf16.mxu0 %v3089
    %4469 = vmatpush1.bf16.msra.mxu0 %v3088
    %4470 = vmatprep.subr.bf16.mxu0 %v3091
    %4471 = vmatpush1.bf16.msra.mxu0 %v3090
    %4472 = vmatprep.subr.bf16.mxu0 %v3093
    %4473 = vmatpush1.bf16.msra.mxu0 %v3092
    %4474 = vmatprep.subr.bf16.mxu0 %v3095
    %4475 = vmatpush1.bf16.msra.mxu0 %v3094
    %4476 = vmatprep.subr.bf16.mxu0 %v3097
    %4477 = vmatpush1.bf16.msra.mxu0 %v3096
    %4478 = vmatprep.subr.bf16.mxu0 %v3099
    %4479 = vmatpush1.bf16.msra.mxu0 %v3098
    %4480 = vmatprep.mubr.bf16.mxu0 %v849
    %4481 = vmatmul.mubr.bf16.gmra.mrb[0].mxu0 %v848
    %v4482 = vpop.f32.mrb[0].mxu0
    %v4483 = vadd.f32 %v4442, %v4482
    %v4484 = vpop.f32.mrb[0].mxu0
    %v4485 = vadd.f32 %v4444, %v4484
    %v4486 = vpop.f32.mrb[0].mxu0
    %v4487 = vpop.f32.mrb[0].mxu0
    %4488 = vdwg.mxu0
    %4489 = vmatprep.subr.bf16.mxu0 %v3101
    %4490 = vmatpush1.bf16.msra.mxu0 %v3100
    %4491 = vmatprep.subr.bf16.mxu0 %v3103
    %4492 = vmatpush1.bf16.msra.mxu0 %v3102
    %4493 = vmatprep.subr.bf16.mxu0 %v3105
    %4494 = vmatpush1.bf16.msra.mxu0 %v3104
    %4495 = vmatprep.subr.bf16.mxu0 %v3107
    %4496 = vmatpush1.bf16.msra.mxu0 %v3106
    %4497 = vmatprep.subr.bf16.mxu0 %v3109
    %4498 = vmatpush1.bf16.msra.mxu0 %v3108
    %4499 = vmatprep.subr.bf16.mxu0 %v3111
    %4500 = vmatpush1.bf16.msra.mxu0 %v3110
    %4501 = vmatprep.subr.bf16.mxu0 %v3113
    %4502 = vmatpush1.bf16.msra.mxu0 %v3112
    %4503 = vmatprep.subr.bf16.mxu0 %v3115
    %4504 = vmatpush1.bf16.msra.mxu0 %v3114
    %4505 = vmatprep.subr.bf16.mxu0 %v3117
    %4506 = vmatpush1.bf16.msra.mxu0 %v3116
    %4507 = vmatprep.subr.bf16.mxu0 %v3119
    %4508 = vmatpush1.bf16.msra.mxu0 %v3118
    %4509 = vmatprep.subr.bf16.mxu0 %v3121
    %4510 = vmatpush1.bf16.msra.mxu0 %v3120
    %4511 = vmatprep.subr.bf16.mxu0 %v3123
    %4512 = vmatpush1.bf16.msra.mxu0 %v3122
    %4513 = vmatprep.subr.bf16.mxu0 %v3125
    %4514 = vmatpush1.bf16.msra.mxu0 %v3124
    %4515 = vmatprep.subr.bf16.mxu0 %v3127
    %4516 = vmatpush1.bf16.msra.mxu0 %v3126
    %4517 = vmatprep.subr.bf16.mxu0 %v3129
    %4518 = vmatpush1.bf16.msra.mxu0 %v3128
    %4519 = vmatprep.subr.bf16.mxu0 %v3131
    %4520 = vmatpush1.bf16.msra.mxu0 %v3130
    %4521 = vmatprep.mubr.bf16.mxu0 %v851
    %4522 = vmatmul.mubr.bf16.gmra.mrb[0].mxu0 %v850
    %v4523 = vpop.f32.mrb[0].mxu0
    %v4524 = vadd.f32 %v4483, %v4523
    %v4525 = vpop.f32.mrb[0].mxu0
    %v4526 = vadd.f32 %v4485, %v4525
    %v4527 = vpop.f32.mrb[0].mxu0
    %v4528 = vpop.f32.mrb[0].mxu0
    %4529 = vdwg.mxu0
    %4530 = vmatprep.subr.bf16.mxu0 %v3133
    %4531 = vmatpush1.bf16.msra.mxu0 %v3132
    %4532 = vmatprep.subr.bf16.mxu0 %v3135
    %4533 = vmatpush1.bf16.msra.mxu0 %v3134
    %4534 = vmatprep.subr.bf16.mxu0 %v3137
    %4535 = vmatpush1.bf16.msra.mxu0 %v3136
    %4536 = vmatprep.subr.bf16.mxu0 %v3139
    %4537 = vmatpush1.bf16.msra.mxu0 %v3138
    %4538 = vmatprep.subr.bf16.mxu0 %v3141
    %4539 = vmatpush1.bf16.msra.mxu0 %v3140
    %4540 = vmatprep.subr.bf16.mxu0 %v3143
    %4541 = vmatpush1.bf16.msra.mxu0 %v3142
    %4542 = vmatprep.subr.bf16.mxu0 %v3145
    %4543 = vmatpush1.bf16.msra.mxu0 %v3144
    %4544 = vmatprep.subr.bf16.mxu0 %v3147
    %4545 = vmatpush1.bf16.msra.mxu0 %v3146
    %4546 = vmatprep.subr.bf16.mxu0 %v3149
    %4547 = vmatpush1.bf16.msra.mxu0 %v3148
    %4548 = vmatprep.subr.bf16.mxu0 %v3151
    %4549 = vmatpush1.bf16.msra.mxu0 %v3150
    %4550 = vmatprep.subr.bf16.mxu0 %v3153
    %4551 = vmatpush1.bf16.msra.mxu0 %v3152
    %4552 = vmatprep.subr.bf16.mxu0 %v3155
    %4553 = vmatpush1.bf16.msra.mxu0 %v3154
    %4554 = vmatprep.subr.bf16.mxu0 %v3157
    %4555 = vmatpush1.bf16.msra.mxu0 %v3156
    %4556 = vmatprep.subr.bf16.mxu0 %v3159
    %4557 = vmatpush1.bf16.msra.mxu0 %v3158
    %4558 = vmatprep.subr.bf16.mxu0 %v3161
    %4559 = vmatpush1.bf16.msra.mxu0 %v3160
    %4560 = vmatprep.subr.bf16.mxu0 %v3163
    %4561 = vmatpush1.bf16.msra.mxu0 %v3162
    %4562 = vmatprep.mubr.bf16.mxu0 %v853
    %4563 = vmatmul.mubr.bf16.gmra.mrb[0].mxu0 %v852
    %v4564 = vpop.f32.mrb[0].mxu0
    %v4565 = vadd.f32 %v4524, %v4564
    %v4566 = vpop.f32.mrb[0].mxu0
    %v4567 = vadd.f32 %v4526, %v4566
    %v4568 = vpop.f32.mrb[0].mxu0
    %v4569 = vpop.f32.mrb[0].mxu0
    %4570 = vdwg.mxu0
    %4571 = vmatprep.subr.bf16.mxu0 %v3165
    %4572 = vmatpush1.bf16.msra.mxu0 %v3164
    %4573 = vmatprep.subr.bf16.mxu0 %v3167
    %4574 = vmatpush1.bf16.msra.mxu0 %v3166
    %4575 = vmatprep.subr.bf16.mxu0 %v3169
    %4576 = vmatpush1.bf16.msra.mxu0 %v3168
    %4577 = vmatprep.subr.bf16.mxu0 %v3171
    %4578 = vmatpush1.bf16.msra.mxu0 %v3170
    %4579 = vmatprep.subr.bf16.mxu0 %v3173
    %4580 = vmatpush1.bf16.msra.mxu0 %v3172
    %4581 = vmatprep.subr.bf16.mxu0 %v3175
    %4582 = vmatpush1.bf16.msra.mxu0 %v3174
    %4583 = vmatprep.subr.bf16.mxu0 %v3177
    %4584 = vmatpush1.bf16.msra.mxu0 %v3176
    %4585 = vmatprep.subr.bf16.mxu0 %v3179
    %4586 = vmatpush1.bf16.msra.mxu0 %v3178
    %4587 = vmatprep.subr.bf16.mxu0 %v3181
    %4588 = vmatpush1.bf16.msra.mxu0 %v3180
    %4589 = vmatprep.subr.bf16.mxu0 %v3183
    %4590 = vmatpush1.bf16.msra.mxu0 %v3182
    %4591 = vmatprep.subr.bf16.mxu0 %v3185
    %4592 = vmatpush1.bf16.msra.mxu0 %v3184
    %4593 = vmatprep.subr.bf16.mxu0 %v3187
    %4594 = vmatpush1.bf16.msra.mxu0 %v3186
    %4595 = vmatprep.subr.bf16.mxu0 %v3189
    %4596 = vmatpush1.bf16.msra.mxu0 %v3188
    %4597 = vmatprep.subr.bf16.mxu0 %v3191
    %4598 = vmatpush1.bf16.msra.mxu0 %v3190
    %4599 = vmatprep.subr.bf16.mxu0 %v3193
    %4600 = vmatpush1.bf16.msra.mxu0 %v3192
    %4601 = vmatprep.subr.bf16.mxu0 %v3195
    %4602 = vmatpush1.bf16.msra.mxu0 %v3194
    %4603 = vmatprep.mubr.bf16.mxu0 %v855
    %4604 = vmatmul.mubr.bf16.gmra.mrb[0].mxu0 %v854
    %v4605 = vpop.f32.mrb[0].mxu0
    %v4606 = vadd.f32 %v4565, %v4605
    %v4607 = vpop.f32.mrb[0].mxu0
    %v4608 = vadd.f32 %v4567, %v4607
    %v4609 = vpop.f32.mrb[0].mxu0
    %v4610 = vpop.f32.mrb[0].mxu0
    %4611 = vdwg.mxu0
    %4612 = vmatprep.subr.bf16.mxu0 %v3197
    %4613 = vmatpush1.bf16.msra.mxu0 %v3196
    %4614 = vmatprep.subr.bf16.mxu0 %v3199
    %4615 = vmatpush1.bf16.msra.mxu0 %v3198
    %4616 = vmatprep.subr.bf16.mxu0 %v3201
    %4617 = vmatpush1.bf16.msra.mxu0 %v3200
    %4618 = vmatprep.subr.bf16.mxu0 %v3203
    %4619 = vmatpush1.bf16.msra.mxu0 %v3202
    %4620 = vmatprep.subr.bf16.mxu0 %v3205
    %4621 = vmatpush1.bf16.msra.mxu0 %v3204
    %4622 = vmatprep.subr.bf16.mxu0 %v3207
    %4623 = vmatpush1.bf16.msra.mxu0 %v3206
    %4624 = vmatprep.subr.bf16.mxu0 %v3209
    %4625 = vmatpush1.bf16.msra.mxu0 %v3208
    %4626 = vmatprep.subr.bf16.mxu0 %v3211
    %4627 = vmatpush1.bf16.msra.mxu0 %v3210
    %4628 = vmatprep.subr.bf16.mxu0 %v3213
    %4629 = vmatpush1.bf16.msra.mxu0 %v3212
    %4630 = vmatprep.subr.bf16.mxu0 %v3215
    %4631 = vmatpush1.bf16.msra.mxu0 %v3214
    %4632 = vmatprep.subr.bf16.mxu0 %v3217
    %4633 = vmatpush1.bf16.msra.mxu0 %v3216
    %4634 = vmatprep.subr.bf16.mxu0 %v3219
    %4635 = vmatpush1.bf16.msra.mxu0 %v3218
    %4636 = vmatprep.subr.bf16.mxu0 %v3221
    %4637 = vmatpush1.bf16.msra.mxu0 %v3220
    %4638 = vmatprep.subr.bf16.mxu0 %v3223
    %4639 = vmatpush1.bf16.msra.mxu0 %v3222
    %4640 = vmatprep.subr.bf16.mxu0 %v3225
    %4641 = vmatpush1.bf16.msra.mxu0 %v3224
    %4642 = vmatprep.subr.bf16.mxu0 %v3227
    %4643 = vmatpush1.bf16.msra.mxu0 %v3226
    %4644 = vmatprep.mubr.bf16.mxu0 %v857
    %4645 = vmatmul.mubr.bf16.gmra.mrb[0].mxu0 %v856
    %v4646 = vpop.f32.mrb[0].mxu0
    %v4647 = vadd.f32 %v4606, %v4646
    %v4648 = vpop.f32.mrb[0].mxu0
    %v4649 = vadd.f32 %v4608, %v4648
    %v4650 = vpop.f32.mrb[0].mxu0
    %v4651 = vpop.f32.mrb[0].mxu0
    %4652 = vdwg.mxu0
    %4653 = vmatprep.subr.bf16.mxu0 %v3229
    %4654 = vmatpush1.bf16.msra.mxu0 %v3228
    %4655 = vmatprep.subr.bf16.mxu0 %v3231
    %4656 = vmatpush1.bf16.msra.mxu0 %v3230
    %4657 = vmatprep.subr.bf16.mxu0 %v3233
    %4658 = vmatpush1.bf16.msra.mxu0 %v3232
    %4659 = vmatprep.subr.bf16.mxu0 %v3235
    %4660 = vmatpush1.bf16.msra.mxu0 %v3234
    %4661 = vmatprep.subr.bf16.mxu0 %v3237
    %4662 = vmatpush1.bf16.msra.mxu0 %v3236
    %4663 = vmatprep.subr.bf16.mxu0 %v3239
    %4664 = vmatpush1.bf16.msra.mxu0 %v3238
    %4665 = vmatprep.subr.bf16.mxu0 %v3241
    %4666 = vmatpush1.bf16.msra.mxu0 %v3240
    %4667 = vmatprep.subr.bf16.mxu0 %v3243
    %4668 = vmatpush1.bf16.msra.mxu0 %v3242
    %4669 = vmatprep.subr.bf16.mxu0 %v3245
    %4670 = vmatpush1.bf16.msra.mxu0 %v3244
    %4671 = vmatprep.subr.bf16.mxu0 %v3247
    %4672 = vmatpush1.bf16.msra.mxu0 %v3246
    %4673 = vmatprep.subr.bf16.mxu0 %v3249
    %4674 = vmatpush1.bf16.msra.mxu0 %v3248
    %4675 = vmatprep.subr.bf16.mxu0 %v3251
    %4676 = vmatpush1.bf16.msra.mxu0 %v3250
    %4677 = vmatprep.subr.bf16.mxu0 %v3253
    %4678 = vmatpush1.bf16.msra.mxu0 %v3252
    %4679 = vmatprep.subr.bf16.mxu0 %v3255
    %4680 = vmatpush1.bf16.msra.mxu0 %v3254
    %4681 = vmatprep.subr.bf16.mxu0 %v3257
    %4682 = vmatpush1.bf16.msra.mxu0 %v3256
    %4683 = vmatprep.subr.bf16.mxu0 %v3259
    %4684 = vmatpush1.bf16.msra.mxu0 %v3258
    %4685 = vmatprep.mubr.bf16.mxu0 %v859
    %4686 = vmatmul.mubr.bf16.gmra.mrb[0].mxu0 %v858
    %v4687 = vpop.f32.mrb[0].mxu0
    %v4688 = vadd.f32 %v4647, %v4687
    %v4689 = vpop.f32.mrb[0].mxu0
    %v4690 = vadd.f32 %v4649, %v4689
    %v4691 = vpop.f32.mrb[0].mxu0
    %v4692 = vpop.f32.mrb[0].mxu0
    %4693 = vdwg.mxu0
    %4694 = vmatprep.subr.bf16.mxu0 %v3261
    %4695 = vmatpush1.bf16.msra.mxu0 %v3260
    %4696 = vmatprep.subr.bf16.mxu0 %v3263
    %4697 = vmatpush1.bf16.msra.mxu0 %v3262
    %4698 = vmatprep.subr.bf16.mxu0 %v3265
    %4699 = vmatpush1.bf16.msra.mxu0 %v3264
    %4700 = vmatprep.subr.bf16.mxu0 %v3267
    %4701 = vmatpush1.bf16.msra.mxu0 %v3266
    %4702 = vmatprep.subr.bf16.mxu0 %v3269
    %4703 = vmatpush1.bf16.msra.mxu0 %v3268
    %4704 = vmatprep.subr.bf16.mxu0 %v3271
    %4705 = vmatpush1.bf16.msra.mxu0 %v3270
    %4706 = vmatprep.subr.bf16.mxu0 %v3273
    %4707 = vmatpush1.bf16.msra.mxu0 %v3272
    %4708 = vmatprep.subr.bf16.mxu0 %v3275
    %4709 = vmatpush1.bf16.msra.mxu0 %v3274
    %4710 = vmatprep.subr.bf16.mxu0 %v3277
    %4711 = vmatpush1.bf16.msra.mxu0 %v3276
    %4712 = vmatprep.subr.bf16.mxu0 %v3279
    %4713 = vmatpush1.bf16.msra.mxu0 %v3278
    %4714 = vmatprep.subr.bf16.mxu0 %v3281
    %4715 = vmatpush1.bf16.msra.mxu0 %v3280
    %4716 = vmatprep.subr.bf16.mxu0 %v3283
    %4717 = vmatpush1.bf16.msra.mxu0 %v3282
    %4718 = vmatprep.subr.bf16.mxu0 %v3285
    %4719 = vmatpush1.bf16.msra.mxu0 %v3284
    %4720 = vmatprep.subr.bf16.mxu0 %v3287
    %4721 = vmatpush1.bf16.msra.mxu0 %v3286
    %4722 = vmatprep.subr.bf16.mxu0 %v3289
    %4723 = vmatpush1.bf16.msra.mxu0 %v3288
    %4724 = vmatprep.subr.bf16.mxu0 %v3291
    %4725 = vmatpush1.bf16.msra.mxu0 %v3290
    %4726 = vmatprep.mubr.bf16.mxu0 %v861
    %4727 = vmatmul.mubr.bf16.gmra.mrb[0].mxu0 %v860
    %v4728 = vpop.f32.mrb[0].mxu0
    %v4729 = vadd.f32 %v4688, %v4728
    %v4730 = vpop.f32.mrb[0].mxu0
    %v4731 = vadd.f32 %v4690, %v4730
    %v4732 = vpop.f32.mrb[0].mxu0
    %v4733 = vpop.f32.mrb[0].mxu0
    %4734 = vdwg.mxu0
    %4735 = vmatprep.subr.bf16.mxu0 %v3293
    %4736 = vmatpush1.bf16.msra.mxu0 %v3292
    %4737 = vmatprep.subr.bf16.mxu0 %v3295
    %4738 = vmatpush1.bf16.msra.mxu0 %v3294
    %4739 = vmatprep.subr.bf16.mxu0 %v3297
    %4740 = vmatpush1.bf16.msra.mxu0 %v3296
    %4741 = vmatprep.subr.bf16.mxu0 %v3299
    %4742 = vmatpush1.bf16.msra.mxu0 %v3298
    %4743 = vmatprep.subr.bf16.mxu0 %v3301
    %4744 = vmatpush1.bf16.msra.mxu0 %v3300
    %4745 = vmatprep.subr.bf16.mxu0 %v3303
    %4746 = vmatpush1.bf16.msra.mxu0 %v3302
    %4747 = vmatprep.subr.bf16.mxu0 %v3305
    %4748 = vmatpush1.bf16.msra.mxu0 %v3304
    %4749 = vmatprep.subr.bf16.mxu0 %v3307
    %4750 = vmatpush1.bf16.msra.mxu0 %v3306
    %4751 = vmatprep.subr.bf16.mxu0 %v3309
    %4752 = vmatpush1.bf16.msra.mxu0 %v3308
    %4753 = vmatprep.subr.bf16.mxu0 %v3311
    %4754 = vmatpush1.bf16.msra.mxu0 %v3310
    %4755 = vmatprep.subr.bf16.mxu0 %v3313
    %4756 = vmatpush1.bf16.msra.mxu0 %v3312
    %4757 = vmatprep.subr.bf16.mxu0 %v3315
    %4758 = vmatpush1.bf16.msra.mxu0 %v3314
    %4759 = vmatprep.subr.bf16.mxu0 %v3317
    %4760 = vmatpush1.bf16.msra.mxu0 %v3316
    %4761 = vmatprep.subr.bf16.mxu0 %v3319
    %4762 = vmatpush1.bf16.msra.mxu0 %v3318
    %4763 = vmatprep.subr.bf16.mxu0 %v3321
    %4764 = vmatpush1.bf16.msra.mxu0 %v3320
    %4765 = vmatprep.subr.bf16.mxu0 %v3323
    %4766 = vmatpush1.bf16.msra.mxu0 %v3322
    %4767 = vmatprep.mubr.bf16.mxu0 %v863
    %4768 = vmatmul.mubr.bf16.gmra.mrb[0].mxu0 %v862
    %v4769 = vpop.f32.mrb[0].mxu0
    %v4770 = vadd.f32 %v4729, %v4769
    %v4771 = vpop.f32.mrb[0].mxu0
    %v4772 = vadd.f32 %v4731, %v4771
    %v4773 = vpop.f32.mrb[0].mxu0
    %v4774 = vpop.f32.mrb[0].mxu0
    %4775 = vdwg.mxu0
    %4776 = vmatprep.subr.bf16.mxu0 %v3325
    %4777 = vmatpush1.bf16.msra.mxu0 %v3324
    %4778 = vmatprep.subr.bf16.mxu0 %v3327
    %4779 = vmatpush1.bf16.msra.mxu0 %v3326
    %4780 = vmatprep.subr.bf16.mxu0 %v3329
    %4781 = vmatpush1.bf16.msra.mxu0 %v3328
    %4782 = vmatprep.subr.bf16.mxu0 %v3331
    %4783 = vmatpush1.bf16.msra.mxu0 %v3330
    %4784 = vmatprep.subr.bf16.mxu0 %v3333
    %4785 = vmatpush1.bf16.msra.mxu0 %v3332
    %4786 = vmatprep.subr.bf16.mxu0 %v3335
    %4787 = vmatpush1.bf16.msra.mxu0 %v3334
    %4788 = vmatprep.subr.bf16.mxu0 %v3337
    %4789 = vmatpush1.bf16.msra.mxu0 %v3336
    %4790 = vmatprep.subr.bf16.mxu0 %v3339
    %4791 = vmatpush1.bf16.msra.mxu0 %v3338
    %4792 = vmatprep.subr.bf16.mxu0 %v3341
    %4793 = vmatpush1.bf16.msra.mxu0 %v3340
    %4794 = vmatprep.subr.bf16.mxu0 %v3343
    %4795 = vmatpush1.bf16.msra.mxu0 %v3342
    %4796 = vmatprep.subr.bf16.mxu0 %v3345
    %4797 = vmatpush1.bf16.msra.mxu0 %v3344
    %4798 = vmatprep.subr.bf16.mxu0 %v3347
    %4799 = vmatpush1.bf16.msra.mxu0 %v3346
    %4800 = vmatprep.subr.bf16.mxu0 %v3349
    %4801 = vmatpush1.bf16.msra.mxu0 %v3348
    %4802 = vmatprep.subr.bf16.mxu0 %v3351
    %4803 = vmatpush1.bf16.msra.mxu0 %v3350
    %4804 = vmatprep.subr.bf16.mxu0 %v3353
    %4805 = vmatpush1.bf16.msra.mxu0 %v3352
    %4806 = vmatprep.subr.bf16.mxu0 %v3355
    %4807 = vmatpush1.bf16.msra.mxu0 %v3354
    %4808 = vmatprep.mubr.bf16.mxu0 %v865
    %4809 = vmatmul.mubr.bf16.gmra.mrb[0].mxu0 %v864
    %v4810 = vpop.f32.mrb[0].mxu0
    %v4811 = vadd.f32 %v4770, %v4810
    %v4812 = vpop.f32.mrb[0].mxu0
    %v4813 = vadd.f32 %v4772, %v4812
    %v4814 = vpop.f32.mrb[0].mxu0
    %v4815 = vpop.f32.mrb[0].mxu0
    %4816 = vdwg.mxu0
    %4817 = vmatprep.subr.bf16.mxu0 %v3357
    %4818 = vmatpush1.bf16.msra.mxu0 %v3356
    %4819 = vmatprep.subr.bf16.mxu0 %v3359
    %4820 = vmatpush1.bf16.msra.mxu0 %v3358
    %4821 = vmatprep.subr.bf16.mxu0 %v3361
    %4822 = vmatpush1.bf16.msra.mxu0 %v3360
    %4823 = vmatprep.subr.bf16.mxu0 %v3363
    %4824 = vmatpush1.bf16.msra.mxu0 %v3362
    %4825 = vmatprep.subr.bf16.mxu0 %v3365
    %4826 = vmatpush1.bf16.msra.mxu0 %v3364
    %4827 = vmatprep.subr.bf16.mxu0 %v3367
    %4828 = vmatpush1.bf16.msra.mxu0 %v3366
    %4829 = vmatprep.subr.bf16.mxu0 %v3369
    %4830 = vmatpush1.bf16.msra.mxu0 %v3368
    %4831 = vmatprep.subr.bf16.mxu0 %v3371
    %4832 = vmatpush1.bf16.msra.mxu0 %v3370
    %4833 = vmatprep.subr.bf16.mxu0 %v3373
    %4834 = vmatpush1.bf16.msra.mxu0 %v3372
    %4835 = vmatprep.subr.bf16.mxu0 %v3375
    %4836 = vmatpush1.bf16.msra.mxu0 %v3374
    %4837 = vmatprep.subr.bf16.mxu0 %v3377
    %4838 = vmatpush1.bf16.msra.mxu0 %v3376
    %4839 = vmatprep.subr.bf16.mxu0 %v3379
    %4840 = vmatpush1.bf16.msra.mxu0 %v3378
    %4841 = vmatprep.subr.bf16.mxu0 %v3381
    %4842 = vmatpush1.bf16.msra.mxu0 %v3380
    %4843 = vmatprep.subr.bf16.mxu0 %v3383
    %4844 = vmatpush1.bf16.msra.mxu0 %v3382
    %4845 = vmatprep.subr.bf16.mxu0 %v3385
    %4846 = vmatpush1.bf16.msra.mxu0 %v3384
    %4847 = vmatprep.subr.bf16.mxu0 %v3387
    %4848 = vmatpush1.bf16.msra.mxu0 %v3386
    %4849 = vmatprep.mubr.bf16.mxu0 %v867
    %4850 = vmatmul.mubr.bf16.gmra.mrb[0].mxu0 %v866
    %v4851 = vpop.f32.mrb[0].mxu0
    %v4852 = vadd.f32 %v4811, %v4851
    %v4853 = vpop.f32.mrb[0].mxu0
    %v4854 = vadd.f32 %v4813, %v4853
    %v4855 = vpop.f32.mrb[0].mxu0
    %v4856 = vpop.f32.mrb[0].mxu0
    %4857 = vdwg.mxu0
    %4858 = vmatprep.subr.bf16.mxu0 %v3389
    %4859 = vmatpush1.bf16.msra.mxu0 %v3388
    %4860 = vmatprep.subr.bf16.mxu0 %v3391
    %4861 = vmatpush1.bf16.msra.mxu0 %v3390
    %4862 = vmatprep.subr.bf16.mxu0 %v3393
    %4863 = vmatpush1.bf16.msra.mxu0 %v3392
    %4864 = vmatprep.subr.bf16.mxu0 %v3395
    %4865 = vmatpush1.bf16.msra.mxu0 %v3394
    %4866 = vmatprep.subr.bf16.mxu0 %v3397
    %4867 = vmatpush1.bf16.msra.mxu0 %v3396
    %4868 = vmatprep.subr.bf16.mxu0 %v3399
    %4869 = vmatpush1.bf16.msra.mxu0 %v3398
    %4870 = vmatprep.subr.bf16.mxu0 %v3401
    %4871 = vmatpush1.bf16.msra.mxu0 %v3400
    %4872 = vmatprep.subr.bf16.mxu0 %v3403
    %4873 = vmatpush1.bf16.msra.mxu0 %v3402
    %4874 = vmatprep.subr.bf16.mxu0 %v3405
    %4875 = vmatpush1.bf16.msra.mxu0 %v3404
    %4876 = vmatprep.subr.bf16.mxu0 %v3407
    %4877 = vmatpush1.bf16.msra.mxu0 %v3406
    %4878 = vmatprep.subr.bf16.mxu0 %v3409
    %4879 = vmatpush1.bf16.msra.mxu0 %v3408
    %4880 = vmatprep.subr.bf16.mxu0 %v3411
    %4881 = vmatpush1.bf16.msra.mxu0 %v3410
    %4882 = vmatprep.subr.bf16.mxu0 %v3413
    %4883 = vmatpush1.bf16.msra.mxu0 %v3412
    %4884 = vmatprep.subr.bf16.mxu0 %v3415
    %4885 = vmatpush1.bf16.msra.mxu0 %v3414
    %4886 = vmatprep.subr.bf16.mxu0 %v3417
    %4887 = vmatpush1.bf16.msra.mxu0 %v3416
    %4888 = vmatprep.subr.bf16.mxu0 %v3419
    %4889 = vmatpush1.bf16.msra.mxu0 %v3418
    %4890 = vmatprep.mubr.bf16.mxu0 %v869
    %4891 = vmatmul.mubr.bf16.gmra.mrb[0].mxu0 %v868
    %v4892 = vpop.f32.mrb[0].mxu0
    %v4893 = vadd.f32 %v4852, %v4892
    %v4894 = vpop.f32.mrb[0].mxu0
    %v4895 = vadd.f32 %v4854, %v4894
    %v4896 = vpop.f32.mrb[0].mxu0
    %v4897 = vpop.f32.mrb[0].mxu0
    %4898 = vdwg.mxu0
    %4899 = vmatprep.subr.bf16.mxu0 %v3421
    %4900 = vmatpush1.bf16.msra.mxu0 %v3420
    %4901 = vmatprep.subr.bf16.mxu0 %v3423
    %4902 = vmatpush1.bf16.msra.mxu0 %v3422
    %4903 = vmatprep.subr.bf16.mxu0 %v3425
    %4904 = vmatpush1.bf16.msra.mxu0 %v3424
    %4905 = vmatprep.subr.bf16.mxu0 %v3427
    %4906 = vmatpush1.bf16.msra.mxu0 %v3426
    %4907 = vmatprep.subr.bf16.mxu0 %v3429
    %4908 = vmatpush1.bf16.msra.mxu0 %v3428
    %4909 = vmatprep.subr.bf16.mxu0 %v3431
    %4910 = vmatpush1.bf16.msra.mxu0 %v3430
    %4911 = vmatprep.subr.bf16.mxu0 %v3433
    %4912 = vmatpush1.bf16.msra.mxu0 %v3432
    %4913 = vmatprep.subr.bf16.mxu0 %v3435
    %4914 = vmatpush1.bf16.msra.mxu0 %v3434
    %4915 = vmatprep.subr.bf16.mxu0 %v3437
    %4916 = vmatpush1.bf16.msra.mxu0 %v3436
    %4917 = vmatprep.subr.bf16.mxu0 %v3439
    %4918 = vmatpush1.bf16.msra.mxu0 %v3438
    %4919 = vmatprep.subr.bf16.mxu0 %v3441
    %4920 = vmatpush1.bf16.msra.mxu0 %v3440
    %4921 = vmatprep.subr.bf16.mxu0 %v3443
    %4922 = vmatpush1.bf16.msra.mxu0 %v3442
    %4923 = vmatprep.subr.bf16.mxu0 %v3445
    %4924 = vmatpush1.bf16.msra.mxu0 %v3444
    %4925 = vmatprep.subr.bf16.mxu0 %v3447
    %4926 = vmatpush1.bf16.msra.mxu0 %v3446
    %4927 = vmatprep.subr.bf16.mxu0 %v3449
    %4928 = vmatpush1.bf16.msra.mxu0 %v3448
    %4929 = vmatprep.subr.bf16.mxu0 %v3451
    %4930 = vmatpush1.bf16.msra.mxu0 %v3450
    %4931 = vmatprep.mubr.bf16.mxu0 %v871
    %4932 = vmatmul.mubr.bf16.gmra.mrb[0].mxu0 %v870
    %v4933 = vpop.f32.mrb[0].mxu0
    %v4934 = vadd.f32 %v4893, %v4933
    %v4935 = vpop.f32.mrb[0].mxu0
    %v4936 = vadd.f32 %v4895, %v4935
    %v4937 = vpop.f32.mrb[0].mxu0
    %v4938 = vpop.f32.mrb[0].mxu0
    %4939 = vdwg.mxu0
    %4940 = vmatprep.subr.bf16.mxu0 %v3453
    %4941 = vmatpush1.bf16.msra.mxu0 %v3452
    %4942 = vmatprep.subr.bf16.mxu0 %v3455
    %4943 = vmatpush1.bf16.msra.mxu0 %v3454
    %4944 = vmatprep.subr.bf16.mxu0 %v3457
    %4945 = vmatpush1.bf16.msra.mxu0 %v3456
    %4946 = vmatprep.subr.bf16.mxu0 %v3459
    %4947 = vmatpush1.bf16.msra.mxu0 %v3458
    %4948 = vmatprep.subr.bf16.mxu0 %v3461
    %4949 = vmatpush1.bf16.msra.mxu0 %v3460
    %4950 = vmatprep.subr.bf16.mxu0 %v3463
    %4951 = vmatpush1.bf16.msra.mxu0 %v3462
    %4952 = vmatprep.subr.bf16.mxu0 %v3465
    %4953 = vmatpush1.bf16.msra.mxu0 %v3464
    %4954 = vmatprep.subr.bf16.mxu0 %v3467
    %4955 = vmatpush1.bf16.msra.mxu0 %v3466
    %4956 = vmatprep.subr.bf16.mxu0 %v3469
    %4957 = vmatpush1.bf16.msra.mxu0 %v3468
    %4958 = vmatprep.subr.bf16.mxu0 %v3471
    %4959 = vmatpush1.bf16.msra.mxu0 %v3470
    %4960 = vmatprep.subr.bf16.mxu0 %v3473
    %4961 = vmatpush1.bf16.msra.mxu0 %v3472
    %4962 = vmatprep.subr.bf16.mxu0 %v3475
    %4963 = vmatpush1.bf16.msra.mxu0 %v3474
    %4964 = vmatprep.subr.bf16.mxu0 %v3477
    %4965 = vmatpush1.bf16.msra.mxu0 %v3476
    %4966 = vmatprep.subr.bf16.mxu0 %v3479
    %4967 = vmatpush1.bf16.msra.mxu0 %v3478
    %4968 = vmatprep.subr.bf16.mxu0 %v3481
    %4969 = vmatpush1.bf16.msra.mxu0 %v3480
    %4970 = vmatprep.subr.bf16.mxu0 %v3483
    %4971 = vmatpush1.bf16.msra.mxu0 %v3482
    %4972 = vmatprep.mubr.bf16.mxu0 %v873
    %4973 = vmatmul.mubr.bf16.gmra.mrb[0].mxu0 %v872
    %v4974 = vpop.f32.mrb[0].mxu0
    %v4975 = vadd.f32 %v4934, %v4974
    %v4976 = vpop.f32.mrb[0].mxu0
    %v4977 = vadd.f32 %v4936, %v4976
    %v4978 = vpop.f32.mrb[0].mxu0
    %v4979 = vpop.f32.mrb[0].mxu0
    %4980 = vdwg.mxu0
    %4981 = vmatprep.subr.bf16.mxu0 %v3485
    %4982 = vmatpush1.bf16.msra.mxu0 %v3484
    %4983 = vmatprep.subr.bf16.mxu0 %v3487
    %4984 = vmatpush1.bf16.msra.mxu0 %v3486
    %4985 = vmatprep.subr.bf16.mxu0 %v3489
    %4986 = vmatpush1.bf16.msra.mxu0 %v3488
    %4987 = vmatprep.subr.bf16.mxu0 %v3491
    %4988 = vmatpush1.bf16.msra.mxu0 %v3490
    %4989 = vmatprep.subr.bf16.mxu0 %v3493
    %4990 = vmatpush1.bf16.msra.mxu0 %v3492
    %4991 = vmatprep.subr.bf16.mxu0 %v3495
    %4992 = vmatpush1.bf16.msra.mxu0 %v3494
    %4993 = vmatprep.subr.bf16.mxu0 %v3497
    %4994 = vmatpush1.bf16.msra.mxu0 %v3496
    %4995 = vmatprep.subr.bf16.mxu0 %v3499
    %4996 = vmatpush1.bf16.msra.mxu0 %v3498
    %4997 = vmatprep.subr.bf16.mxu0 %v3501
    %4998 = vmatpush1.bf16.msra.mxu0 %v3500
    %4999 = vmatprep.subr.bf16.mxu0 %v3503
    %5000 = vmatpush1.bf16.msra.mxu0 %v3502
    %5001 = vmatprep.subr.bf16.mxu0 %v3505
    %5002 = vmatpush1.bf16.msra.mxu0 %v3504
    %5003 = vmatprep.subr.bf16.mxu0 %v3507
    %5004 = vmatpush1.bf16.msra.mxu0 %v3506
    %5005 = vmatprep.subr.bf16.mxu0 %v3509
    %5006 = vmatpush1.bf16.msra.mxu0 %v3508
    %5007 = vmatprep.subr.bf16.mxu0 %v3511
    %5008 = vmatpush1.bf16.msra.mxu0 %v3510
    %5009 = vmatprep.subr.bf16.mxu0 %v3513
    %5010 = vmatpush1.bf16.msra.mxu0 %v3512
    %5011 = vmatprep.subr.bf16.mxu0 %v3515
    %5012 = vmatpush1.bf16.msra.mxu0 %v3514
    %5013 = vmatprep.mubr.bf16.mxu0 %v875
    %5014 = vmatmul.mubr.bf16.gmra.mrb[0].mxu0 %v874
    %v5015 = vpop.f32.mrb[0].mxu0
    %v5016 = vadd.f32 %v4975, %v5015
    %v5017 = vpop.f32.mrb[0].mxu0
    %v5018 = vadd.f32 %v4977, %v5017
    %v5019 = vpop.f32.mrb[0].mxu0
    %v5020 = vpop.f32.mrb[0].mxu0
    %5021 = vdwg.mxu0
    %5022 = vmatprep.subr.bf16.mxu0 %v3517
    %5023 = vmatpush1.bf16.msra.mxu0 %v3516
    %5024 = vmatprep.subr.bf16.mxu0 %v3519
    %5025 = vmatpush1.bf16.msra.mxu0 %v3518
    %5026 = vmatprep.subr.bf16.mxu0 %v3521
    %5027 = vmatpush1.bf16.msra.mxu0 %v3520
    %5028 = vmatprep.subr.bf16.mxu0 %v3523
    %5029 = vmatpush1.bf16.msra.mxu0 %v3522
    %5030 = vmatprep.subr.bf16.mxu0 %v3525
    %5031 = vmatpush1.bf16.msra.mxu0 %v3524
    %5032 = vmatprep.subr.bf16.mxu0 %v3527
    %5033 = vmatpush1.bf16.msra.mxu0 %v3526
    %5034 = vmatprep.subr.bf16.mxu0 %v3529
    %5035 = vmatpush1.bf16.msra.mxu0 %v3528
    %5036 = vmatprep.subr.bf16.mxu0 %v3531
    %5037 = vmatpush1.bf16.msra.mxu0 %v3530
    %5038 = vmatprep.subr.bf16.mxu0 %v3533
    %5039 = vmatpush1.bf16.msra.mxu0 %v3532
    %5040 = vmatprep.subr.bf16.mxu0 %v3535
    %5041 = vmatpush1.bf16.msra.mxu0 %v3534
    %5042 = vmatprep.subr.bf16.mxu0 %v3537
    %5043 = vmatpush1.bf16.msra.mxu0 %v3536
    %5044 = vmatprep.subr.bf16.mxu0 %v3539
    %5045 = vmatpush1.bf16.msra.mxu0 %v3538
    %5046 = vmatprep.subr.bf16.mxu0 %v3541
    %5047 = vmatpush1.bf16.msra.mxu0 %v3540
    %5048 = vmatprep.subr.bf16.mxu0 %v3543
    %5049 = vmatpush1.bf16.msra.mxu0 %v3542
    %5050 = vmatprep.subr.bf16.mxu0 %v3545
    %5051 = vmatpush1.bf16.msra.mxu0 %v3544
    %5052 = vmatprep.subr.bf16.mxu0 %v3547
    %5053 = vmatpush1.bf16.msra.mxu0 %v3546
    %5054 = vmatprep.mubr.bf16.mxu0 %v877
    %5055 = vmatmul.mubr.bf16.gmra.mrb[0].mxu0 %v876
    %v5056 = vpop.f32.mrb[0].mxu0
    %v5057 = vadd.f32 %v5016, %v5056
    %v5058 = vpop.f32.mrb[0].mxu0
    %v5059 = vadd.f32 %v5018, %v5058
    %v5060 = vpop.f32.mrb[0].mxu0
    %v5061 = vpop.f32.mrb[0].mxu0
    %5062 = vdwg.mxu0
    %5063 = vmatprep.subr.bf16.mxu0 %v3549
    %5064 = vmatpush1.bf16.msra.mxu0 %v3548
    %5065 = vmatprep.subr.bf16.mxu0 %v3551
    %5066 = vmatpush1.bf16.msra.mxu0 %v3550
    %5067 = vmatprep.subr.bf16.mxu0 %v3553
    %5068 = vmatpush1.bf16.msra.mxu0 %v3552
    %5069 = vmatprep.subr.bf16.mxu0 %v3555
    %5070 = vmatpush1.bf16.msra.mxu0 %v3554
    %5071 = vmatprep.subr.bf16.mxu0 %v3557
    %5072 = vmatpush1.bf16.msra.mxu0 %v3556
    %5073 = vmatprep.subr.bf16.mxu0 %v3559
    %5074 = vmatpush1.bf16.msra.mxu0 %v3558
    %5075 = vmatprep.subr.bf16.mxu0 %v3561
    %5076 = vmatpush1.bf16.msra.mxu0 %v3560
    %5077 = vmatprep.subr.bf16.mxu0 %v3563
    %5078 = vmatpush1.bf16.msra.mxu0 %v3562
    %5079 = vmatprep.subr.bf16.mxu0 %v3565
    %5080 = vmatpush1.bf16.msra.mxu0 %v3564
    %5081 = vmatprep.subr.bf16.mxu0 %v3567
    %5082 = vmatpush1.bf16.msra.mxu0 %v3566
    %5083 = vmatprep.subr.bf16.mxu0 %v3569
    %5084 = vmatpush1.bf16.msra.mxu0 %v3568
    %5085 = vmatprep.subr.bf16.mxu0 %v3571
    %5086 = vmatpush1.bf16.msra.mxu0 %v3570
    %5087 = vmatprep.subr.bf16.mxu0 %v3573
    %5088 = vmatpush1.bf16.msra.mxu0 %v3572
    %5089 = vmatprep.subr.bf16.mxu0 %v3575
    %5090 = vmatpush1.bf16.msra.mxu0 %v3574
    %5091 = vmatprep.subr.bf16.mxu0 %v3577
    %5092 = vmatpush1.bf16.msra.mxu0 %v3576
    %5093 = vmatprep.subr.bf16.mxu0 %v3579
    %5094 = vmatpush1.bf16.msra.mxu0 %v3578
    %5095 = vmatprep.mubr.bf16.mxu0 %v879
    %5096 = vmatmul.mubr.bf16.gmra.mrb[0].mxu0 %v878
    %v5097 = vpop.f32.mrb[0].mxu0
    %v5098 = vadd.f32 %v5057, %v5097
    %v5099 = vpop.f32.mrb[0].mxu0
    %v5100 = vadd.f32 %v5059, %v5099
    %v5101 = vpop.f32.mrb[0].mxu0
    %v5102 = vpop.f32.mrb[0].mxu0
    %5103 = vdwg.mxu0
    %5104 = vmatprep.subr.bf16.mxu0 %v3581
    %5105 = vmatpush1.bf16.msra.mxu0 %v3580
    %5106 = vmatprep.subr.bf16.mxu0 %v3583
    %5107 = vmatpush1.bf16.msra.mxu0 %v3582
    %5108 = vmatprep.subr.bf16.mxu0 %v3585
    %5109 = vmatpush1.bf16.msra.mxu0 %v3584
    %5110 = vmatprep.subr.bf16.mxu0 %v3587
    %5111 = vmatpush1.bf16.msra.mxu0 %v3586
    %5112 = vmatprep.subr.bf16.mxu0 %v3589
    %5113 = vmatpush1.bf16.msra.mxu0 %v3588
    %5114 = vmatprep.subr.bf16.mxu0 %v3591
    %5115 = vmatpush1.bf16.msra.mxu0 %v3590
    %5116 = vmatprep.subr.bf16.mxu0 %v3593
    %5117 = vmatpush1.bf16.msra.mxu0 %v3592
    %5118 = vmatprep.subr.bf16.mxu0 %v3595
    %5119 = vmatpush1.bf16.msra.mxu0 %v3594
    %5120 = vmatprep.subr.bf16.mxu0 %v3597
    %5121 = vmatpush1.bf16.msra.mxu0 %v3596
    %5122 = vmatprep.subr.bf16.mxu0 %v3599
    %5123 = vmatpush1.bf16.msra.mxu0 %v3598
    %5124 = vmatprep.subr.bf16.mxu0 %v3601
    %5125 = vmatpush1.bf16.msra.mxu0 %v3600
    %5126 = vmatprep.subr.bf16.mxu0 %v3603
    %5127 = vmatpush1.bf16.msra.mxu0 %v3602
    %5128 = vmatprep.subr.bf16.mxu0 %v3605
    %5129 = vmatpush1.bf16.msra.mxu0 %v3604
    %5130 = vmatprep.subr.bf16.mxu0 %v3607
    %5131 = vmatpush1.bf16.msra.mxu0 %v3606
    %5132 = vmatprep.subr.bf16.mxu0 %v3609
    %5133 = vmatpush1.bf16.msra.mxu0 %v3608
    %5134 = vmatprep.subr.bf16.mxu0 %v3611
    %5135 = vmatpush1.bf16.msra.mxu0 %v3610
    %5136 = vmatprep.mubr.bf16.mxu0 %v881
    %5137 = vmatmul.mubr.bf16.gmra.mrb[0].mxu0 %v880
    %v5138 = vpop.f32.mrb[0].mxu0
    %v5139 = vadd.f32 %v5098, %v5138
    %v5140 = vpop.f32.mrb[0].mxu0
    %v5141 = vadd.f32 %v5100, %v5140
    %v5142 = vpop.f32.mrb[0].mxu0
    %v5143 = vpop.f32.mrb[0].mxu0
    %5144 = vdwg.mxu0
    %v5145 = vmax.f32 %v5139, 0.0
    %v5146 = vmax.f32 %v5141, 0.0
    %v5147 = vpack.c.bf16 %v5145, %v5145
    %v5148 = vpack.c.bf16 %v5146, %v5146
    %v5149 = vld [vmem:[#allocation6] sm:$0xf]
    %v5150 = vld [vmem:[#allocation6 + $0x4] sm:$0xf]
    %v5151 = vld [vmem:[#allocation6 + $0x8] sm:$0xf]
    %v5152 = vld [vmem:[#allocation6 + $0xc] sm:$0xf]
    %v5153 = vld [vmem:[#allocation6 + $0x10] sm:$0xf]
    %v5154 = vld [vmem:[#allocation6 + $0x14] sm:$0xf]
    %v5155 = vld [vmem:[#allocation6 + $0x18] sm:$0xf]
    %v5156 = vld [vmem:[#allocation6 + $0x1c] sm:$0xf]
    %v5157 = vld [vmem:[#allocation6 + $0x20] sm:$0xf]
    %v5158 = vld [vmem:[#allocation6 + $0x24] sm:$0xf]
    %v5159 = vld [vmem:[#allocation6 + $0x28] sm:$0xf]
    %v5160 = vld [vmem:[#allocation6 + $0x2c] sm:$0xf]
    %v5161 = vld [vmem:[#allocation6 + $0x30] sm:$0xf]
    %v5162 = vld [vmem:[#allocation6 + $0x34] sm:$0xf]
    %v5163 = vld [vmem:[#allocation6 + $0x38] sm:$0xf]
    %v5164 = vld [vmem:[#allocation6 + $0x3c] sm:$0xf]
    %v5165 = vld [vmem:[#allocation6 + $0x40] sm:$0xf]
    %v5166 = vld [vmem:[#allocation6 + $0x44] sm:$0xf]
    %v5167 = vld [vmem:[#allocation6 + $0x48] sm:$0xf]
    %v5168 = vld [vmem:[#allocation6 + $0x4c] sm:$0xf]
    %v5169 = vld [vmem:[#allocation6 + $0x50] sm:$0xf]
    %v5170 = vld [vmem:[#allocation6 + $0x54] sm:$0xf]
    %v5171 = vld [vmem:[#allocation6 + $0x58] sm:$0xf]
    %v5172 = vld [vmem:[#allocation6 + $0x5c] sm:$0xf]
    %v5173 = vld [vmem:[#allocation6 + $0x60] sm:$0xf]
    %v5174 = vld [vmem:[#allocation6 + $0x64] sm:$0xf]
    %v5175 = vld [vmem:[#allocation6 + $0x68] sm:$0xf]
    %v5176 = vld [vmem:[#allocation6 + $0x6c] sm:$0xf]
    %v5177 = vld [vmem:[#allocation6 + $0x70] sm:$0xf]
    %v5178 = vld [vmem:[#allocation6 + $0x74] sm:$0xf]
    %v5179 = vld [vmem:[#allocation6 + $0x78] sm:$0xf]
    %v5180 = vld [vmem:[#allocation6 + $0x7c] sm:$0xf]
    %v5181 = vld [vmem:[#allocation7] sm:$0x1]
    %v5183 = vlaneseq
    %v5184 = vshrl.u32 %v5183, 7
    %v5185 = vsub.s32 0, %v5184
    %v5186 = vrot.slane %v5181, %v5185
    %v5220 = vunpack.c.l.b16 %v5149
    %v5221 = vunpack.c.l.b16 %v5150
    %v5222 = vunpack.c.l.b16 %v5151
    %v5223 = vunpack.c.l.b16 %v5152
    %v5224 = vunpack.c.l.b16 %v5153
    %v5225 = vunpack.c.l.b16 %v5154
    %v5226 = vunpack.c.l.b16 %v5155
    %v5227 = vunpack.c.l.b16 %v5156
    %v5228 = vunpack.c.l.b16 %v5157
    %v5229 = vunpack.c.l.b16 %v5158
    %v5230 = vunpack.c.l.b16 %v5159
    %v5231 = vunpack.c.l.b16 %v5160
    %v5232 = vunpack.c.l.b16 %v5161
    %v5233 = vunpack.c.l.b16 %v5162
    %v5234 = vunpack.c.l.b16 %v5163
    %v5235 = vunpack.c.l.b16 %v5164
    %v5236 = vunpack.c.l.b16 %v5165
    %v5237 = vunpack.c.l.b16 %v5166
    %v5238 = vunpack.c.l.b16 %v5167
    %v5239 = vunpack.c.l.b16 %v5168
    %v5240 = vunpack.c.l.b16 %v5169
    %v5241 = vunpack.c.l.b16 %v5170
    %v5242 = vunpack.c.l.b16 %v5171
    %v5243 = vunpack.c.l.b16 %v5172
    %v5244 = vunpack.c.l.b16 %v5173
    %v5245 = vunpack.c.l.b16 %v5174
    %v5246 = vunpack.c.l.b16 %v5175
    %v5247 = vunpack.c.l.b16 %v5176
    %v5248 = vunpack.c.l.b16 %v5177
    %v5249 = vunpack.c.l.b16 %v5178
    %v5250 = vunpack.c.l.b16 %v5179
    %v5251 = vunpack.c.l.b16 %v5180
    %v5252 = vpack.c.b16 %v5221, %v5220
    %v5253 = vpack.c.b16 %v5223, %v5222
    %v5254 = vpack.c.b16 %v5225, %v5224
    %v5255 = vpack.c.b16 %v5227, %v5226
    %v5256 = vpack.c.b16 %v5229, %v5228
    %v5257 = vpack.c.b16 %v5231, %v5230
    %v5258 = vpack.c.b16 %v5233, %v5232
    %v5259 = vpack.c.b16 %v5235, %v5234
    %v5260 = vpack.c.b16 %v5237, %v5236
    %v5261 = vpack.c.b16 %v5239, %v5238
    %v5262 = vpack.c.b16 %v5241, %v5240
    %v5263 = vpack.c.b16 %v5243, %v5242
    %v5264 = vpack.c.b16 %v5245, %v5244
    %v5265 = vpack.c.b16 %v5247, %v5246
    %v5266 = vpack.c.b16 %v5249, %v5248
    %v5267 = vpack.c.b16 %v5251, %v5250
    %5284 = vmatprep.subr.bf16.mxu0 0
    %5285 = vmatpush1.bf16.msra.mxu0 %v5252
    %5286 = vmatprep.subr.bf16.mxu0 0
    %5287 = vmatpush1.bf16.msra.mxu0 %v5253
    %5288 = vmatprep.subr.bf16.mxu0 0
    %5289 = vmatpush1.bf16.msra.mxu0 %v5254
    %5290 = vmatprep.subr.bf16.mxu0 0
    %5291 = vmatpush1.bf16.msra.mxu0 %v5255
    %5292 = vmatprep.subr.bf16.mxu0 0
    %5293 = vmatpush1.bf16.msra.mxu0 %v5256
    %5294 = vmatprep.subr.bf16.mxu0 0
    %5295 = vmatpush1.bf16.msra.mxu0 %v5257
    %5296 = vmatprep.subr.bf16.mxu0 0
    %5297 = vmatpush1.bf16.msra.mxu0 %v5258
    %5298 = vmatprep.subr.bf16.mxu0 0
    %5299 = vmatpush1.bf16.msra.mxu0 %v5259
    %5300 = vmatprep.subr.bf16.mxu0 0
    %5301 = vmatpush1.bf16.msra.mxu0 %v5260
    %5302 = vmatprep.subr.bf16.mxu0 0
    %5303 = vmatpush1.bf16.msra.mxu0 %v5261
    %5304 = vmatprep.subr.bf16.mxu0 0
    %5305 = vmatpush1.bf16.msra.mxu0 %v5262
    %5306 = vmatprep.subr.bf16.mxu0 0
    %5307 = vmatpush1.bf16.msra.mxu0 %v5263
    %5308 = vmatprep.subr.bf16.mxu0 0
    %5309 = vmatpush1.bf16.msra.mxu0 %v5264
    %5310 = vmatprep.subr.bf16.mxu0 0
    %5311 = vmatpush1.bf16.msra.mxu0 %v5265
    %5312 = vmatprep.subr.bf16.mxu0 0
    %5313 = vmatpush1.bf16.msra.mxu0 %v5266
    %5314 = vmatprep.subr.bf16.mxu0 0
    %5315 = vmatpush1.bf16.msra.mxu0 %v5267
    %5316 = vmatprep.mubr.bf16.mxu0 %v5148
    %5317 = vmatmul.mubr.bf16.gmra.mrb[0].mxu0 %v5147
    %v5318 = vpop.f32.mrb[0].mxu0
    %v5319 = vadd.f32 %v5186, %v5318
    %v5320 = vpop.f32.mrb[0].mxu0
    %v5321 = vpop.f32.mrb[0].mxu0
    %v5322 = vpop.f32.mrb[0].mxu0
    %5323 = vdwg.mxu0
    %5324 = vst [vmem:[%s5] sm:$0xff] %v5319
    // Predicated region
    $region38: #{dqn_forward.1} parent=1 // pred_check
      _
    $region39: #{dqn_forward.1} parent=1 // pred_check_branch
      %5326 = sbr.rel (0) target = $region41
    $region40: #{dqn_forward.1} parent=1 // pred_region
      _
    $region41: #{dqn_forward.1} parent=1 // pred_fallthru
      _
    // Predicated region
    $region42: #{dqn_forward.1} parent=1 // pred_check
      _
    $region43: #{dqn_forward.1} parent=1 // pred_check_branch
      %5328 = sbr.rel (0) target = $region45
    $region44: #{dqn_forward.1} parent=1 // pred_region
      _
    $region45: #{dqn_forward.1} parent=1 // pred_fallthru
      _
    %5329 = vsyncpa [#allocation3], 1
    %5330 = vsyncpa [#allocation5], 1
    %5331 = vsyncpa [#allocation8], 1

</llo_original>
